<compile_context>
chip_gen: v7x
topology: tpu7x:2x2x1
jax: 0.10.0
libtpu: 0.0.40
codegen_flags: <defaults>
</compile_context>

<pallas_src>
import jax
import jax.numpy as jnp
import numpy as np
from jax.experimental import pallas as pl
from jax.experimental.pallas import tpu as pltpu

NUM_LAYERS = 3
BN_EPS = 1e-5
LANE = 128


def _round_up(v, m):
    return ((v + m - 1) // m) * m


def _make_encoder_kernel(b_blk, n_nodes, p, num_layers):
    m = b_blk * n_nodes
    inv_n = 1.0 / n_nodes

    def kernel(eps_ref, x_ref, adj_ref, pool_ref, w1_ref, w2_ref, vec_ref,
               node_ref, graph_ref):
        """One grid step = b_blk independent Encoder.forward() mini-batches.

        eps_ref  : (L,)   SMEM   per-layer (1 + eps) scalars (scalar prefetch)
        x_ref    : (M, P)        node features, M = b_blk*N, P = lane-padded feat/hidden
        adj_ref  : (M, M)        block-diagonal dense adjacency, A[dst, src]
        pool_ref : (b_blk*G, M)  block-diagonal sum-pooling matrix
        w1_ref   : (L, P, P)     stacked first-MLP weights (padded)
        w2_ref   : (L, P, P)     stacked second-MLP weights (padded)
        vec_ref  : (4L, P)       per layer: g1, be1, g2, be2 (padded with zeros)
        node_ref : (M, L*P)      concatenated per-layer node reps
        graph_ref: (b_blk*G, L*P) concatenated per-layer pooled graph reps
        """
        h = x_ref[...]
        adj = adj_ref[...]
        pool = pool_ref[...]
        vecs = vec_ref[...]

        def bn_relu_train(z, gamma, beta):
            # Training-mode BatchNorm1d (biased variance, two-pass) computed per batch
            # element over its own N nodes, followed by ReLU.  Padded columns have
            # gamma = beta = 0, so they stay exactly zero.
            z3 = z.reshape(b_blk, n_nodes, p)
            mu = jnp.sum(z3, axis=1, keepdims=True) * inv_n
            d = z3 - mu
            var = jnp.sum(d * d, axis=1, keepdims=True) * inv_n
            scale = gamma * jax.lax.rsqrt(var + BN_EPS)
            return jnp.maximum(d * scale + beta, 0.0).reshape(m, p)

        for i in range(num_layers):
            row = 4 * i
            g1 = vecs[row + 0].reshape(1, 1, p)
            be1 = vecs[row + 1].reshape(1, 1, p)
            g2 = vecs[row + 2].reshape(1, 1, p)
            be2 = vecs[row + 3].reshape(1, 1, p)
            one_plus_eps = eps_ref[i]                       # SMEM scalar

            # GINLayer: (1+eps)*x + sum_{j in N(i)} x_j, as one lane-dense MXU matmul
            # over the block-diagonal adjacency (edges never cross mini-batches).
            z = one_plus_eps * h + jnp.dot(adj, h, preferred_element_type=jnp.float32)
            # GINMLP (num_mlp_layers=2): Linear -> BN -> ReLU -> Linear.
            # Linear biases are omitted: a per-column constant cancels under training BN.
            z = jnp.dot(z, w1_ref[i], preferred_element_type=jnp.float32)
            z = bn_relu_train(z, g1, be1)
            z = jnp.dot(z, w2_ref[i], preferred_element_type=jnp.float32)
            # Encoder: ReLU(BatchNorm1d(gin_out)).
            h = bn_relu_train(z, g2, be2)

            # 128-aligned static slice stores (unmasked vst); no epilogue concat buffer.
            node_ref[:, i * p:(i + 1) * p] = h
            graph_ref[:, i * p:(i + 1) * p] = jnp.dot(
                pool, h, preferred_element_type=jnp.float32)

    return kernel


def encoder_forward(x, adj, pool, params, *, b_blk=None):
    """x: (B, N, F); adj: (B, N, N) dense A[dst, src]; pool: (B, G, N) one-hot batch.

    Each of the B entries is one independent Encoder.forward() call (training-mode BN
    statistics computed per entry, matching torch). Returns (graph_rep, node_rep).
    """
    B, N, f_in = x.shape
    G = pool.shape[1]
    hid = params[0]["w2"].shape[1]
    L = len(params)
    P = _round_up(max(f_in, hid), LANE)       # lane-pad feature/hidden dims
    Pout = L * P

    if b_blk is None:
        # Aim for >=128 MXU rows per grid step while keeping >=2 grid steps so the
        # "parallel" batch axis still shards across both TensorCores on v7x.
        b_blk = max(1, min(B // 2, _round_up(LANE, N) // N))
    assert B % b_blk == 0, "B must be divisible by the batch block"
    assert N % 8 == 0, "N must be sublane-aligned (BN stats assume no node padding)"
    NB = B // b_blk
    M = b_blk * N
    Gb = b_blk * G

    # ---- wrapper-side packing (layout glue; all heavy math runs in the kernel) ----
    x_flat = jnp.pad(x, ((0, 0), (0, 0), (0, P - f_in))).reshape(B * N, P)

    # Block-diagonal adjacency / pooling per grid step: one lane-dense (M, M) matmul
    # replaces b_blk tiny lane-sparse (N, N) matmuls.
    adj4 = adj.reshape(NB, b_blk, N, N).astype(jnp.float32)
    pool4 = pool.reshape(NB, b_blk, G, N).astype(jnp.float32)
    adj_bd = jnp.zeros((NB, M, M), jnp.float32)
    pool_bd = jnp.zeros((NB, Gb, M), jnp.float32)
    for e in range(b_blk):
        adj_bd = adj_bd.at[:, e * N:(e + 1) * N, e * N:(e + 1) * N].set(adj4[:, e])
        pool_bd = pool_bd.at[:, e * G:(e + 1) * G, e * N:(e + 1) * N].set(pool4[:, e])

    def pad2(w):
        return jnp.pad(w, ((0, P - w.shape[0]), (0, P - w.shape[1])))

    def pad1(v):
        v = v.reshape(1, -1)
        return jnp.pad(v, ((0, 0), (0, P - v.shape[1])))

    w1s = jnp.stack([pad2(p_["w1"]) for p_ in params])            # (L, P, P)
    w2s = jnp.stack([pad2(p_["w2"]) for p_ in params])            # (L, P, P)
    # b1/b2 intentionally not packed: they cancel under training-mode BatchNorm.
    vec_rows = []
    for p_ in params:
        vec_rows += [pad1(p_["g1"]), pad1(p_["be1"]), pad1(p_["g2"]), pad1(p_["be2"])]
    vecs = jnp.concatenate(vec_rows, axis=0)                      # (4L, P)
    eps_arr = jnp.stack(
        [1.0 + p_["eps"].reshape(()).astype(jnp.float32) for p_ in params])  # (L,)

    kernel = _make_encoder_kernel(b_blk, N, P, L)

    node_flat, graph_flat = pl.pallas_call(
        kernel,
        out_shape=(
            jax.ShapeDtypeStruct((B * N, Pout), jnp.float32),
            jax.ShapeDtypeStruct((B * G, Pout), jnp.float32),
        ),
        grid_spec=pltpu.PrefetchScalarGridSpec(
            num_scalar_prefetch=1,                 # (1+eps) scalars live in SMEM
            grid=(NB,),
            in_specs=[
                pl.BlockSpec((M, P), lambda b, eps: (b, 0)),
                pl.BlockSpec((None, M, M), lambda b, eps: (b, 0, 0)),
                pl.BlockSpec((None, Gb, M), lambda b, eps: (b, 0, 0)),
                # Grid-invariant operands (constant index map -> fetched once, resident).
                pl.BlockSpec((L, P, P), lambda b, eps: (0, 0, 0)),
                pl.BlockSpec((L, P, P), lambda b, eps: (0, 0, 0)),
                pl.BlockSpec((4 * L, P), lambda b, eps: (0, 0)),
            ],
            out_specs=(
                pl.BlockSpec((M, Pout), lambda b, eps: (b, 0)),
                pl.BlockSpec((Gb, Pout), lambda b, eps: (b, 0)),
            ),
        ),
        compiler_params=pltpu.CompilerParams(
            dimension_semantics=("parallel",),     # shard batch blocks across TCs on v7x
            vmem_limit_bytes=32 * 1024 * 1024,     # explicit: safe on v5e/v6e/v7x defaults
        ),
    )(eps_arr, x_flat, adj_bd, pool_bd, w1s, w2s, vecs)

    # Strip lane padding and restore torch's layer-concat layout; module returns
    # (graph_rep, node_rep).
    node_rep = jnp.concatenate(
        [node_flat[:, l * P: l * P + hid] for l in range(L)], axis=-1).reshape(B, N, L * hid)
    graph_rep = jnp.concatenate(
        [graph_flat[:, l * P: l * P + hid] for l in range(L)], axis=-1).reshape(B, G, L * hid)
    return graph_rep, node_rep


def reference_forward(x, adj, pool, params):
    # Pure-JAX reference with torch semantics (training-mode BN, biased variance,
    # two-pass, linear biases included), applied independently per batch element.
    def bn(z, gamma, beta):
        mu = jnp.mean(z, axis=0, keepdims=True)
        var = jnp.mean((z - mu) ** 2, axis=0, keepdims=True)
        return gamma * (z - mu) * jax.lax.rsqrt(var + BN_EPS) + beta

    def one(xb, ab, pb):
        h = xb
        node_parts, graph_parts = [], []
        for p_ in params:
            z = (1.0 + p_["eps"].reshape(())) * h + ab @ h
            z = jnp.maximum(bn(z @ p_["w1"] + p_["b1"], p_["g1"], p_["be1"]), 0.0)
            z = z @ p_["w2"] + p_["b2"]
            h = jnp.maximum(bn(z, p_["g2"], p_["be2"]), 0.0)
            node_parts.append(h)
            graph_parts.append(pb @ h)
        return jnp.concatenate(graph_parts, axis=1), jnp.concatenate(node_parts, axis=1)

    return jax.vmap(one, in_axes=(0, 0, 0))(x, adj, pool)


def make_params(key, in_feats, hidden_dim):
    params = []
    for i in range(NUM_LAYERS):
        fan_in = in_feats if i == 0 else hidden_dim
        key, k1, k2, k3, k4, k5, k6, k7, k8, k9 = jax.random.split(key, 10)
        b1 = 1.0 / np.sqrt(fan_in)
        b2 = 1.0 / np.sqrt(hidden_dim)
        params.append(dict(
            # train_eps=True (module inits 0; nonzero here to exercise the learned-eps path)
            eps=0.1 * jax.random.normal(k5, (1, 1), jnp.float32),
            w1=jax.random.uniform(k1, (fan_in, hidden_dim), jnp.float32, -b1, b1),
            b1=jax.random.uniform(k2, (1, hidden_dim), jnp.float32, -b1, b1),
            g1=1.0 + 0.1 * jax.random.normal(k6, (1, hidden_dim), jnp.float32),
            be1=0.1 * jax.random.normal(k7, (1, hidden_dim), jnp.float32),
            w2=jax.random.uniform(k3, (hidden_dim, hidden_dim), jnp.float32, -b2, b2),
            b2=jax.random.uniform(k4, (1, hidden_dim), jnp.float32, -b2, b2),
            g2=1.0 + 0.1 * jax.random.normal(k8, (1, hidden_dim), jnp.float32),
            be2=0.1 * jax.random.normal(k9, (1, hidden_dim), jnp.float32),
        ))
    return params


if __name__ == "__main__":
    # 16 independent graph mini-batches per call; each has 2 graphs x 8 nodes = 16 nodes.
    # b_blk defaults to 8 -> 128 MXU rows per grid step, grid = (2,).
    B, N, F_IN, HID, G = 16, 16, 8, 32, 2

    key = jax.random.PRNGKey(0)
    key, kx, ka = jax.random.split(key, 3)
    x = jax.random.normal(kx, (B, N, F_IN), jnp.float32)

    # Each mini-batch: 2 graphs of 8 nodes; random directed edges within each graph.
    batch_vec = np.array([0] * 8 + [1] * 8, dtype=np.int32)          # graph id per node
    within = (batch_vec[:, None] == batch_vec[None, :]).astype(np.float32)
    adj = (jax.random.uniform(ka, (B, N, N)) < 0.3).astype(jnp.float32)
    adj = adj * jnp.asarray(within)[None]                            # A[dst, src]

    pool_np = np.zeros((G, N), np.float32)
    pool_np[batch_vec, np.arange(N)] = 1.0                           # sum pool == scatter_add
    pool = jnp.asarray(np.repeat(pool_np[None], B, axis=0))          # (B, G, N)

    params = make_params(key, F_IN, HID)

    graph_rep, node_rep = encoder_forward(x, adj, pool, params)
    jax.block_until_ready((graph_rep, node_rep))

    g_ref, n_ref = reference_forward(x, adj, pool, params)
    assert graph_rep.shape == (B, G, NUM_LAYERS * HID)
    assert node_rep.shape == (B, N, NUM_LAYERS * HID)
    np.testing.assert_allclose(np.asarray(graph_rep), np.asarray(g_ref), rtol=1e-4, atol=1e-4)
    np.testing.assert_allclose(np.asarray(node_rep), np.asarray(n_ref), rtol=1e-4, atol=1e-4)

    print("KERNEL_OK")
</pallas_src>

<mosaic_0001>
module attributes {stable_mosaic.version = 11 : i64} {
  func.func @kernel(%arg0: i32, %arg1: memref<3xf32, #tpu.memory_space<smem>>, %arg2: memref<128x128xf32, #tpu.memory_space<vmem>>, %arg3: memref<1x128x128xf32, #tpu.memory_space<vmem>>, %arg4: memref<1x16x128xf32, #tpu.memory_space<vmem>>, %arg5: memref<3x128x128xf32, #tpu.memory_space<vmem>>, %arg6: memref<3x128x128xf32, #tpu.memory_space<vmem>>, %arg7: memref<12x128xf32, #tpu.memory_space<vmem>>, %arg8: memref<128x384xf32, #tpu.memory_space<vmem>>, %arg9: memref<16x384xf32, #tpu.memory_space<vmem>>) attributes {dimension_semantics = [#tpu.dimension_semantics<parallel>], iteration_bounds = array<i64: 2>, scalar_prefetch = 1 : i64, scratch_operands = 0 : i64, tpu.core_type = #tpu.core_type<tc>, window_params = [{transform_indices = @transform_0, window_bounds = array<i64: 128, 128>}, {transform_indices = @transform_1, window_bounds = array<i64: 1, 128, 128>}, {transform_indices = @transform_2, window_bounds = array<i64: 1, 16, 128>}, {pipeline_mode = #tpu.pipeline_mode<synchronous>, transform_indices = @transform_3, window_bounds = array<i64: 3, 128, 128>}, {pipeline_mode = #tpu.pipeline_mode<synchronous>, transform_indices = @transform_4, window_bounds = array<i64: 3, 128, 128>}, {pipeline_mode = #tpu.pipeline_mode<synchronous>, transform_indices = @transform_5, window_bounds = array<i64: 12, 128>}, {transform_indices = @transform_6, window_bounds = array<i64: 128, 384>}, {transform_indices = @transform_7, window_bounds = array<i64: 16, 384>}]} {
    %c0 = arith.constant 0 : index
    %c0_0 = arith.constant 0 : index
    %0 = vector.load %arg2[%c0, %c0_0] : memref<128x128xf32, #tpu.memory_space<vmem>>, vector<128x128xf32>
    %c0_1 = arith.constant 0 : index
    %c0_2 = arith.constant 0 : index
    %c0_3 = arith.constant 0 : index
    %1 = vector.load %arg3[%c0_1, %c0_2, %c0_3] : memref<1x128x128xf32, #tpu.memory_space<vmem>>, vector<1x128x128xf32>
    %2 = vector.shape_cast %1 : vector<1x128x128xf32> to vector<128x128xf32>
    %c0_4 = arith.constant 0 : index
    %c0_5 = arith.constant 0 : index
    %c0_6 = arith.constant 0 : index
    %3 = vector.load %arg4[%c0_4, %c0_5, %c0_6] : memref<1x16x128xf32, #tpu.memory_space<vmem>>, vector<1x16x128xf32>
    %4 = vector.shape_cast %3 : vector<1x16x128xf32> to vector<16x128xf32>
    %c0_7 = arith.constant 0 : index
    %c0_8 = arith.constant 0 : index
    %5 = vector.load %arg7[%c0_7, %c0_8] : memref<12x128xf32, #tpu.memory_space<vmem>>, vector<12x128xf32>
    %6 = vector.extract_strided_slice %5 {offsets = [0, 0], sizes = [1, 128], strides = [1, 1]} : vector<12x128xf32> to vector<1x128xf32>
    %7 = vector.shape_cast %6 : vector<1x128xf32> to vector<128xf32>
    %8 = vector.shape_cast %7 : vector<128xf32> to vector<1x1x128xf32>
    %9 = vector.extract_strided_slice %5 {offsets = [1, 0], sizes = [1, 128], strides = [1, 1]} : vector<12x128xf32> to vector<1x128xf32>
    %10 = vector.shape_cast %9 : vector<1x128xf32> to vector<128xf32>
    %11 = vector.shape_cast %10 : vector<128xf32> to vector<1x1x128xf32>
    %12 = vector.extract_strided_slice %5 {offsets = [2, 0], sizes = [1, 128], strides = [1, 1]} : vector<12x128xf32> to vector<1x128xf32>
    %13 = vector.shape_cast %12 : vector<1x128xf32> to vector<128xf32>
    %14 = vector.shape_cast %13 : vector<128xf32> to vector<1x1x128xf32>
    %15 = vector.extract_strided_slice %5 {offsets = [3, 0], sizes = [1, 128], strides = [1, 1]} : vector<12x128xf32> to vector<1x128xf32>
    %16 = vector.shape_cast %15 : vector<1x128xf32> to vector<128xf32>
    %17 = vector.shape_cast %16 : vector<128xf32> to vector<1x1x128xf32>
    %c0_9 = arith.constant 0 : index
    %18 = memref.load %arg1[%c0_9] : memref<3xf32, #tpu.memory_space<smem>>
    %19 = vector.broadcast %18 : f32 to vector<128x128xf32>
    %20 = arith.mulf %19, %0 : vector<128x128xf32>
    %cst = arith.constant dense<0.000000e+00> : vector<128x128xf32>
    %21 = tpu.matmul %2, %0, %cst {dimension_numbers = #tpu.dot_dimension_numbers<[1], [0], [0], [1], [0, 0, 1, 1], [], []>} : vector<128x128xf32>, vector<128x128xf32>, vector<128x128xf32> -> vector<128x128xf32>
    %22 = arith.addf %20, %21 : vector<128x128xf32>
    %c0_10 = arith.constant 0 : index
    %c0_11 = arith.constant 0 : index
    %c0_12 = arith.constant 0 : index
    %23 = vector.load %arg5[%c0_10, %c0_11, %c0_12] : memref<3x128x128xf32, #tpu.memory_space<vmem>>, vector<1x128x128xf32>
    %24 = vector.shape_cast %23 : vector<1x128x128xf32> to vector<128x128xf32>
    %cst_13 = arith.constant dense<0.000000e+00> : vector<128x128xf32>
    %25 = tpu.matmul %22, %24, %cst_13 {dimension_numbers = #tpu.dot_dimension_numbers<[1], [0], [0], [1], [0, 0, 1, 1], [], []>} : vector<128x128xf32>, vector<128x128xf32>, vector<128x128xf32> -> vector<128x128xf32>
    %26 = vector.shape_cast %25 : vector<128x128xf32> to vector<8x16x128xf32>
    %cst_14 = arith.constant dense<0.000000e+00> : vector<8x128xf32>
    %27 = vector.multi_reduction <add>, %26, %cst_14 [1] : vector<8x16x128xf32> to vector<8x128xf32>
    %28 = vector.shape_cast %27 : vector<8x128xf32> to vector<8x1x128xf32>
    %cst_15 = arith.constant 6.250000e-02 : f32
    %29 = vector.broadcast %cst_15 : f32 to vector<8x1x128xf32>
    %30 = arith.mulf %28, %29 : vector<8x1x128xf32>
    %31 = vector.broadcast %30 : vector<8x1x128xf32> to vector<8x16x128xf32>
    %32 = arith.subf %26, %31 : vector<8x16x128xf32>
    %33 = arith.mulf %32, %32 : vector<8x16x128xf32>
    %cst_16 = arith.constant dense<0.000000e+00> : vector<8x128xf32>
    %34 = vector.multi_reduction <add>, %33, %cst_16 [1] : vector<8x16x128xf32> to vector<8x128xf32>
    %35 = vector.shape_cast %34 : vector<8x128xf32> to vector<8x1x128xf32>
    %cst_17 = arith.constant 6.250000e-02 : f32
    %36 = vector.broadcast %cst_17 : f32 to vector<8x1x128xf32>
    %37 = arith.mulf %35, %36 : vector<8x1x128xf32>
    %cst_18 = arith.constant 9.99999974E-6 : f32
    %38 = vector.broadcast %cst_18 : f32 to vector<8x1x128xf32>
    %39 = arith.addf %37, %38 : vector<8x1x128xf32>
    %40 = math.rsqrt %39 : vector<8x1x128xf32>
    %41 = vector.broadcast %8 : vector<1x1x128xf32> to vector<8x1x128xf32>
    %42 = arith.mulf %41, %40 : vector<8x1x128xf32>
    %43 = vector.broadcast %42 : vector<8x1x128xf32> to vector<8x16x128xf32>
    %44 = arith.mulf %32, %43 : vector<8x16x128xf32>
    %45 = vector.broadcast %11 : vector<1x1x128xf32> to vector<8x16x128xf32>
    %46 = arith.addf %44, %45 : vector<8x16x128xf32>
    %cst_19 = arith.constant 0.000000e+00 : f32
    %47 = vector.broadcast %cst_19 : f32 to vector<8x16x128xf32>
    %48 = arith.maximumf %46, %47 : vector<8x16x128xf32>
    %49 = vector.shape_cast %48 : vector<8x16x128xf32> to vector<128x128xf32>
    %c0_20 = arith.constant 0 : index
    %c0_21 = arith.constant 0 : index
    %c0_22 = arith.constant 0 : index
    %50 = vector.load %arg6[%c0_20, %c0_21, %c0_22] : memref<3x128x128xf32, #tpu.memory_space<vmem>>, vector<1x128x128xf32>
    %51 = vector.shape_cast %50 : vector<1x128x128xf32> to vector<128x128xf32>
    %cst_23 = arith.constant dense<0.000000e+00> : vector<128x128xf32>
    %52 = tpu.matmul %49, %51, %cst_23 {dimension_numbers = #tpu.dot_dimension_numbers<[1], [0], [0], [1], [0, 0, 1, 1], [], []>} : vector<128x128xf32>, vector<128x128xf32>, vector<128x128xf32> -> vector<128x128xf32>
    %53 = vector.shape_cast %52 : vector<128x128xf32> to vector<8x16x128xf32>
    %cst_24 = arith.constant dense<0.000000e+00> : vector<8x128xf32>
    %54 = vector.multi_reduction <add>, %53, %cst_24 [1] : vector<8x16x128xf32> to vector<8x128xf32>
    %55 = vector.shape_cast %54 : vector<8x128xf32> to vector<8x1x128xf32>
    %cst_25 = arith.constant 6.250000e-02 : f32
    %56 = vector.broadcast %cst_25 : f32 to vector<8x1x128xf32>
    %57 = arith.mulf %55, %56 : vector<8x1x128xf32>
    %58 = vector.broadcast %57 : vector<8x1x128xf32> to vector<8x16x128xf32>
    %59 = arith.subf %53, %58 : vector<8x16x128xf32>
    %60 = arith.mulf %59, %59 : vector<8x16x128xf32>
    %cst_26 = arith.constant dense<0.000000e+00> : vector<8x128xf32>
    %61 = vector.multi_reduction <add>, %60, %cst_26 [1] : vector<8x16x128xf32> to vector<8x128xf32>
    %62 = vector.shape_cast %61 : vector<8x128xf32> to vector<8x1x128xf32>
    %cst_27 = arith.constant 6.250000e-02 : f32
    %63 = vector.broadcast %cst_27 : f32 to vector<8x1x128xf32>
    %64 = arith.mulf %62, %63 : vector<8x1x128xf32>
    %cst_28 = arith.constant 9.99999974E-6 : f32
    %65 = vector.broadcast %cst_28 : f32 to vector<8x1x128xf32>
    %66 = arith.addf %64, %65 : vector<8x1x128xf32>
    %67 = math.rsqrt %66 : vector<8x1x128xf32>
    %68 = vector.broadcast %14 : vector<1x1x128xf32> to vector<8x1x128xf32>
    %69 = arith.mulf %68, %67 : vector<8x1x128xf32>
    %70 = vector.broadcast %69 : vector<8x1x128xf32> to vector<8x16x128xf32>
    %71 = arith.mulf %59, %70 : vector<8x16x128xf32>
    %72 = vector.broadcast %17 : vector<1x1x128xf32> to vector<8x16x128xf32>
    %73 = arith.addf %71, %72 : vector<8x16x128xf32>
    %cst_29 = arith.constant 0.000000e+00 : f32
    %74 = vector.broadcast %cst_29 : f32 to vector<8x16x128xf32>
    %75 = arith.maximumf %73, %74 : vector<8x16x128xf32>
    %76 = vector.shape_cast %75 : vector<8x16x128xf32> to vector<128x128xf32>
    %c0_30 = arith.constant 0 : index
    %c0_31 = arith.constant 0 : index
    %77 = vector.load %arg8[%c0_30, %c0_31] : memref<128x384xf32, #tpu.memory_space<vmem>>, vector<128x128xf32>
    tpu.vector_store %arg8[%c0_30, %c0_31], %76 {strides = array<i32>} : memref<128x384xf32, #tpu.memory_space<vmem>>, vector<128x128xf32>,
    %cst_32 = arith.constant dense<0.000000e+00> : vector<16x128xf32>
    %78 = tpu.matmul %4, %76, %cst_32 {dimension_numbers = #tpu.dot_dimension_numbers<[1], [0], [0], [1], [0, 0, 1, 1], [], []>} : vector<16x128xf32>, vector<128x128xf32>, vector<16x128xf32> -> vector<16x128xf32>
    %c0_33 = arith.constant 0 : index
    %c0_34 = arith.constant 0 : index
    %79 = vector.load %arg9[%c0_33, %c0_34] : memref<16x384xf32, #tpu.memory_space<vmem>>, vector<16x128xf32>
    tpu.vector_store %arg9[%c0_33, %c0_34], %78 {strides = array<i32>} : memref<16x384xf32, #tpu.memory_space<vmem>>, vector<16x128xf32>,
    %80 = vector.extract_strided_slice %5 {offsets = [4, 0], sizes = [1, 128], strides = [1, 1]} : vector<12x128xf32> to vector<1x128xf32>
    %81 = vector.shape_cast %80 : vector<1x128xf32> to vector<128xf32>
    %82 = vector.shape_cast %81 : vector<128xf32> to vector<1x1x128xf32>
    %83 = vector.extract_strided_slice %5 {offsets = [5, 0], sizes = [1, 128], strides = [1, 1]} : vector<12x128xf32> to vector<1x128xf32>
    %84 = vector.shape_cast %83 : vector<1x128xf32> to vector<128xf32>
    %85 = vector.shape_cast %84 : vector<128xf32> to vector<1x1x128xf32>
    %86 = vector.extract_strided_slice %5 {offsets = [6, 0], sizes = [1, 128], strides = [1, 1]} : vector<12x128xf32> to vector<1x128xf32>
    %87 = vector.shape_cast %86 : vector<1x128xf32> to vector<128xf32>
    %88 = vector.shape_cast %87 : vector<128xf32> to vector<1x1x128xf32>
    %89 = vector.extract_strided_slice %5 {offsets = [7, 0], sizes = [1, 128], strides = [1, 1]} : vector<12x128xf32> to vector<1x128xf32>
    %90 = vector.shape_cast %89 : vector<1x128xf32> to vector<128xf32>
    %91 = vector.shape_cast %90 : vector<128xf32> to vector<1x1x128xf32>
    %c1 = arith.constant 1 : index
    %92 = memref.load %arg1[%c1] : memref<3xf32, #tpu.memory_space<smem>>
    %93 = vector.broadcast %92 : f32 to vector<128x128xf32>
    %94 = arith.mulf %93, %76 : vector<128x128xf32>
    %cst_35 = arith.constant dense<0.000000e+00> : vector<128x128xf32>
    %95 = tpu.matmul %2, %76, %cst_35 {dimension_numbers = #tpu.dot_dimension_numbers<[1], [0], [0], [1], [0, 0, 1, 1], [], []>} : vector<128x128xf32>, vector<128x128xf32>, vector<128x128xf32> -> vector<128x128xf32>
    %96 = arith.addf %94, %95 : vector<128x128xf32>
    %c1_36 = arith.constant 1 : index
    %c0_37 = arith.constant 0 : index
    %c0_38 = arith.constant 0 : index
    %97 = vector.load %arg5[%c1_36, %c0_37, %c0_38] : memref<3x128x128xf32, #tpu.memory_space<vmem>>, vector<1x128x128xf32>
    %98 = vector.shape_cast %97 : vector<1x128x128xf32> to vector<128x128xf32>
    %cst_39 = arith.constant dense<0.000000e+00> : vector<128x128xf32>
    %99 = tpu.matmul %96, %98, %cst_39 {dimension_numbers = #tpu.dot_dimension_numbers<[1], [0], [0], [1], [0, 0, 1, 1], [], []>} : vector<128x128xf32>, vector<128x128xf32>, vector<128x128xf32> -> vector<128x128xf32>
    %100 = vector.shape_cast %99 : vector<128x128xf32> to vector<8x16x128xf32>
    %cst_40 = arith.constant dense<0.000000e+00> : vector<8x128xf32>
    %101 = vector.multi_reduction <add>, %100, %cst_40 [1] : vector<8x16x128xf32> to vector<8x128xf32>
    %102 = vector.shape_cast %101 : vector<8x128xf32> to vector<8x1x128xf32>
    %cst_41 = arith.constant 6.250000e-02 : f32
    %103 = vector.broadcast %cst_41 : f32 to vector<8x1x128xf32>
    %104 = arith.mulf %102, %103 : vector<8x1x128xf32>
    %105 = vector.broadcast %104 : vector<8x1x128xf32> to vector<8x16x128xf32>
    %106 = arith.subf %100, %105 : vector<8x16x128xf32>
    %107 = arith.mulf %106, %106 : vector<8x16x128xf32>
    %cst_42 = arith.constant dense<0.000000e+00> : vector<8x128xf32>
    %108 = vector.multi_reduction <add>, %107, %cst_42 [1] : vector<8x16x128xf32> to vector<8x128xf32>
    %109 = vector.shape_cast %108 : vector<8x128xf32> to vector<8x1x128xf32>
    %cst_43 = arith.constant 6.250000e-02 : f32
    %110 = vector.broadcast %cst_43 : f32 to vector<8x1x128xf32>
    %111 = arith.mulf %109, %110 : vector<8x1x128xf32>
    %cst_44 = arith.constant 9.99999974E-6 : f32
    %112 = vector.broadcast %cst_44 : f32 to vector<8x1x128xf32>
    %113 = arith.addf %111, %112 : vector<8x1x128xf32>
    %114 = math.rsqrt %113 : vector<8x1x128xf32>
    %115 = vector.broadcast %82 : vector<1x1x128xf32> to vector<8x1x128xf32>
    %116 = arith.mulf %115, %114 : vector<8x1x128xf32>
    %117 = vector.broadcast %116 : vector<8x1x128xf32> to vector<8x16x128xf32>
    %118 = arith.mulf %106, %117 : vector<8x16x128xf32>
    %119 = vector.broadcast %85 : vector<1x1x128xf32> to vector<8x16x128xf32>
    %120 = arith.addf %118, %119 : vector<8x16x128xf32>
    %cst_45 = arith.constant 0.000000e+00 : f32
    %121 = vector.broadcast %cst_45 : f32 to vector<8x16x128xf32>
    %122 = arith.maximumf %120, %121 : vector<8x16x128xf32>
    %123 = vector.shape_cast %122 : vector<8x16x128xf32> to vector<128x128xf32>
    %c1_46 = arith.constant 1 : index
    %c0_47 = arith.constant 0 : index
    %c0_48 = arith.constant 0 : index
    %124 = vector.load %arg6[%c1_46, %c0_47, %c0_48] : memref<3x128x128xf32, #tpu.memory_space<vmem>>, vector<1x128x128xf32>
    %125 = vector.shape_cast %124 : vector<1x128x128xf32> to vector<128x128xf32>
    %cst_49 = arith.constant dense<0.000000e+00> : vector<128x128xf32>
    %126 = tpu.matmul %123, %125, %cst_49 {dimension_numbers = #tpu.dot_dimension_numbers<[1], [0], [0], [1], [0, 0, 1, 1], [], []>} : vector<128x128xf32>, vector<128x128xf32>, vector<128x128xf32> -> vector<128x128xf32>
    %127 = vector.shape_cast %126 : vector<128x128xf32> to vector<8x16x128xf32>
    %cst_50 = arith.constant dense<0.000000e+00> : vector<8x128xf32>
    %128 = vector.multi_reduction <add>, %127, %cst_50 [1] : vector<8x16x128xf32> to vector<8x128xf32>
    %129 = vector.shape_cast %128 : vector<8x128xf32> to vector<8x1x128xf32>
    %cst_51 = arith.constant 6.250000e-02 : f32
    %130 = vector.broadcast %cst_51 : f32 to vector<8x1x128xf32>
    %131 = arith.mulf %129, %130 : vector<8x1x128xf32>
    %132 = vector.broadcast %131 : vector<8x1x128xf32> to vector<8x16x128xf32>
    %133 = arith.subf %127, %132 : vector<8x16x128xf32>
    %134 = arith.mulf %133, %133 : vector<8x16x128xf32>
    %cst_52 = arith.constant dense<0.000000e+00> : vector<8x128xf32>
    %135 = vector.multi_reduction <add>, %134, %cst_52 [1] : vector<8x16x128xf32> to vector<8x128xf32>
    %136 = vector.shape_cast %135 : vector<8x128xf32> to vector<8x1x128xf32>
    %cst_53 = arith.constant 6.250000e-02 : f32
    %137 = vector.broadcast %cst_53 : f32 to vector<8x1x128xf32>
    %138 = arith.mulf %136, %137 : vector<8x1x128xf32>
    %cst_54 = arith.constant 9.99999974E-6 : f32
    %139 = vector.broadcast %cst_54 : f32 to vector<8x1x128xf32>
    %140 = arith.addf %138, %139 : vector<8x1x128xf32>
    %141 = math.rsqrt %140 : vector<8x1x128xf32>
    %142 = vector.broadcast %88 : vector<1x1x128xf32> to vector<8x1x128xf32>
    %143 = arith.mulf %142, %141 : vector<8x1x128xf32>
    %144 = vector.broadcast %143 : vector<8x1x128xf32> to vector<8x16x128xf32>
    %145 = arith.mulf %133, %144 : vector<8x16x128xf32>
    %146 = vector.broadcast %91 : vector<1x1x128xf32> to vector<8x16x128xf32>
    %147 = arith.addf %145, %146 : vector<8x16x128xf32>
    %cst_55 = arith.constant 0.000000e+00 : f32
    %148 = vector.broadcast %cst_55 : f32 to vector<8x16x128xf32>
    %149 = arith.maximumf %147, %148 : vector<8x16x128xf32>
    %150 = vector.shape_cast %149 : vector<8x16x128xf32> to vector<128x128xf32>
    %c0_56 = arith.constant 0 : index
    %c128 = arith.constant 128 : index
    %151 = vector.load %arg8[%c0_56, %c128] : memref<128x384xf32, #tpu.memory_space<vmem>>, vector<128x128xf32>
    tpu.vector_store %arg8[%c0_56, %c128], %150 {strides = array<i32>} : memref<128x384xf32, #tpu.memory_space<vmem>>, vector<128x128xf32>,
    %cst_57 = arith.constant dense<0.000000e+00> : vector<16x128xf32>
    %152 = tpu.matmul %4, %150, %cst_57 {dimension_numbers = #tpu.dot_dimension_numbers<[1], [0], [0], [1], [0, 0, 1, 1], [], []>} : vector<16x128xf32>, vector<128x128xf32>, vector<16x128xf32> -> vector<16x128xf32>
    %c0_58 = arith.constant 0 : index
    %c128_59 = arith.constant 128 : index
    %153 = vector.load %arg9[%c0_58, %c128_59] : memref<16x384xf32, #tpu.memory_space<vmem>>, vector<16x128xf32>
    tpu.vector_store %arg9[%c0_58, %c128_59], %152 {strides = array<i32>} : memref<16x384xf32, #tpu.memory_space<vmem>>, vector<16x128xf32>,
    %154 = vector.extract_strided_slice %5 {offsets = [8, 0], sizes = [1, 128], strides = [1, 1]} : vector<12x128xf32> to vector<1x128xf32>
    %155 = vector.shape_cast %154 : vector<1x128xf32> to vector<128xf32>
    %156 = vector.shape_cast %155 : vector<128xf32> to vector<1x1x128xf32>
    %157 = vector.extract_strided_slice %5 {offsets = [9, 0], sizes = [1, 128], strides = [1, 1]} : vector<12x128xf32> to vector<1x128xf32>
    %158 = vector.shape_cast %157 : vector<1x128xf32> to vector<128xf32>
    %159 = vector.shape_cast %158 : vector<128xf32> to vector<1x1x128xf32>
    %160 = vector.extract_strided_slice %5 {offsets = [10, 0], sizes = [1, 128], strides = [1, 1]} : vector<12x128xf32> to vector<1x128xf32>
    %161 = vector.shape_cast %160 : vector<1x128xf32> to vector<128xf32>
    %162 = vector.shape_cast %161 : vector<128xf32> to vector<1x1x128xf32>
    %163 = vector.extract_strided_slice %5 {offsets = [11, 0], sizes = [1, 128], strides = [1, 1]} : vector<12x128xf32> to vector<1x128xf32>
    %164 = vector.shape_cast %163 : vector<1x128xf32> to vector<128xf32>
    %165 = vector.shape_cast %164 : vector<128xf32> to vector<1x1x128xf32>
    %c2 = arith.constant 2 : index
    %166 = memref.load %arg1[%c2] : memref<3xf32, #tpu.memory_space<smem>>
    %167 = vector.broadcast %166 : f32 to vector<128x128xf32>
    %168 = arith.mulf %167, %150 : vector<128x128xf32>
    %cst_60 = arith.constant dense<0.000000e+00> : vector<128x128xf32>
    %169 = tpu.matmul %2, %150, %cst_60 {dimension_numbers = #tpu.dot_dimension_numbers<[1], [0], [0], [1], [0, 0, 1, 1], [], []>} : vector<128x128xf32>, vector<128x128xf32>, vector<128x128xf32> -> vector<128x128xf32>
    %170 = arith.addf %168, %169 : vector<128x128xf32>
    %c2_61 = arith.constant 2 : index
    %c0_62 = arith.constant 0 : index
    %c0_63 = arith.constant 0 : index
    %171 = vector.load %arg5[%c2_61, %c0_62, %c0_63] : memref<3x128x128xf32, #tpu.memory_space<vmem>>, vector<1x128x128xf32>
    %172 = vector.shape_cast %171 : vector<1x128x128xf32> to vector<128x128xf32>
    %cst_64 = arith.constant dense<0.000000e+00> : vector<128x128xf32>
    %173 = tpu.matmul %170, %172, %cst_64 {dimension_numbers = #tpu.dot_dimension_numbers<[1], [0], [0], [1], [0, 0, 1, 1], [], []>} : vector<128x128xf32>, vector<128x128xf32>, vector<128x128xf32> -> vector<128x128xf32>
    %174 = vector.shape_cast %173 : vector<128x128xf32> to vector<8x16x128xf32>
    %cst_65 = arith.constant dense<0.000000e+00> : vector<8x128xf32>
    %175 = vector.multi_reduction <add>, %174, %cst_65 [1] : vector<8x16x128xf32> to vector<8x128xf32>
    %176 = vector.shape_cast %175 : vector<8x128xf32> to vector<8x1x128xf32>
    %cst_66 = arith.constant 6.250000e-02 : f32
    %177 = vector.broadcast %cst_66 : f32 to vector<8x1x128xf32>
    %178 = arith.mulf %176, %177 : vector<8x1x128xf32>
    %179 = vector.broadcast %178 : vector<8x1x128xf32> to vector<8x16x128xf32>
    %180 = arith.subf %174, %179 : vector<8x16x128xf32>
    %181 = arith.mulf %180, %180 : vector<8x16x128xf32>
    %cst_67 = arith.constant dense<0.000000e+00> : vector<8x128xf32>
    %182 = vector.multi_reduction <add>, %181, %cst_67 [1] : vector<8x16x128xf32> to vector<8x128xf32>
    %183 = vector.shape_cast %182 : vector<8x128xf32> to vector<8x1x128xf32>
    %cst_68 = arith.constant 6.250000e-02 : f32
    %184 = vector.broadcast %cst_68 : f32 to vector<8x1x128xf32>
    %185 = arith.mulf %183, %184 : vector<8x1x128xf32>
    %cst_69 = arith.constant 9.99999974E-6 : f32
    %186 = vector.broadcast %cst_69 : f32 to vector<8x1x128xf32>
    %187 = arith.addf %185, %186 : vector<8x1x128xf32>
    %188 = math.rsqrt %187 : vector<8x1x128xf32>
    %189 = vector.broadcast %156 : vector<1x1x128xf32> to vector<8x1x128xf32>
    %190 = arith.mulf %189, %188 : vector<8x1x128xf32>
    %191 = vector.broadcast %190 : vector<8x1x128xf32> to vector<8x16x128xf32>
    %192 = arith.mulf %180, %191 : vector<8x16x128xf32>
    %193 = vector.broadcast %159 : vector<1x1x128xf32> to vector<8x16x128xf32>
    %194 = arith.addf %192, %193 : vector<8x16x128xf32>
    %cst_70 = arith.constant 0.000000e+00 : f32
    %195 = vector.broadcast %cst_70 : f32 to vector<8x16x128xf32>
    %196 = arith.maximumf %194, %195 : vector<8x16x128xf32>
    %197 = vector.shape_cast %196 : vector<8x16x128xf32> to vector<128x128xf32>
    %c2_71 = arith.constant 2 : index
    %c0_72 = arith.constant 0 : index
    %c0_73 = arith.constant 0 : index
    %198 = vector.load %arg6[%c2_71, %c0_72, %c0_73] : memref<3x128x128xf32, #tpu.memory_space<vmem>>, vector<1x128x128xf32>
    %199 = vector.shape_cast %198 : vector<1x128x128xf32> to vector<128x128xf32>
    %cst_74 = arith.constant dense<0.000000e+00> : vector<128x128xf32>
    %200 = tpu.matmul %197, %199, %cst_74 {dimension_numbers = #tpu.dot_dimension_numbers<[1], [0], [0], [1], [0, 0, 1, 1], [], []>} : vector<128x128xf32>, vector<128x128xf32>, vector<128x128xf32> -> vector<128x128xf32>
    %201 = vector.shape_cast %200 : vector<128x128xf32> to vector<8x16x128xf32>
    %cst_75 = arith.constant dense<0.000000e+00> : vector<8x128xf32>
    %202 = vector.multi_reduction <add>, %201, %cst_75 [1] : vector<8x16x128xf32> to vector<8x128xf32>
    %203 = vector.shape_cast %202 : vector<8x128xf32> to vector<8x1x128xf32>
    %cst_76 = arith.constant 6.250000e-02 : f32
    %204 = vector.broadcast %cst_76 : f32 to vector<8x1x128xf32>
    %205 = arith.mulf %203, %204 : vector<8x1x128xf32>
    %206 = vector.broadcast %205 : vector<8x1x128xf32> to vector<8x16x128xf32>
    %207 = arith.subf %201, %206 : vector<8x16x128xf32>
    %208 = arith.mulf %207, %207 : vector<8x16x128xf32>
    %cst_77 = arith.constant dense<0.000000e+00> : vector<8x128xf32>
    %209 = vector.multi_reduction <add>, %208, %cst_77 [1] : vector<8x16x128xf32> to vector<8x128xf32>
    %210 = vector.shape_cast %209 : vector<8x128xf32> to vector<8x1x128xf32>
    %cst_78 = arith.constant 6.250000e-02 : f32
    %211 = vector.broadcast %cst_78 : f32 to vector<8x1x128xf32>
    %212 = arith.mulf %210, %211 : vector<8x1x128xf32>
    %cst_79 = arith.constant 9.99999974E-6 : f32
    %213 = vector.broadcast %cst_79 : f32 to vector<8x1x128xf32>
    %214 = arith.addf %212, %213 : vector<8x1x128xf32>
    %215 = math.rsqrt %214 : vector<8x1x128xf32>
    %216 = vector.broadcast %162 : vector<1x1x128xf32> to vector<8x1x128xf32>
    %217 = arith.mulf %216, %215 : vector<8x1x128xf32>
    %218 = vector.broadcast %217 : vector<8x1x128xf32> to vector<8x16x128xf32>
    %219 = arith.mulf %207, %218 : vector<8x16x128xf32>
    %220 = vector.broadcast %165 : vector<1x1x128xf32> to vector<8x16x128xf32>
    %221 = arith.addf %219, %220 : vector<8x16x128xf32>
    %cst_80 = arith.constant 0.000000e+00 : f32
    %222 = vector.broadcast %cst_80 : f32 to vector<8x16x128xf32>
    %223 = arith.maximumf %221, %222 : vector<8x16x128xf32>
    %224 = vector.shape_cast %223 : vector<8x16x128xf32> to vector<128x128xf32>
    %c0_81 = arith.constant 0 : index
    %c256 = arith.constant 256 : index
    %225 = vector.load %arg8[%c0_81, %c256] : memref<128x384xf32, #tpu.memory_space<vmem>>, vector<128x128xf32>
    tpu.vector_store %arg8[%c0_81, %c256], %224 {strides = array<i32>} : memref<128x384xf32, #tpu.memory_space<vmem>>, vector<128x128xf32>,
    %cst_82 = arith.constant dense<0.000000e+00> : vector<16x128xf32>
    %226 = tpu.matmul %4, %224, %cst_82 {dimension_numbers = #tpu.dot_dimension_numbers<[1], [0], [0], [1], [0, 0, 1, 1], [], []>} : vector<16x128xf32>, vector<128x128xf32>, vector<16x128xf32> -> vector<16x128xf32>
    %c0_83 = arith.constant 0 : index
    %c256_84 = arith.constant 256 : index
    %227 = vector.load %arg9[%c0_83, %c256_84] : memref<16x384xf32, #tpu.memory_space<vmem>>, vector<16x128xf32>
    tpu.vector_store %arg9[%c0_83, %c256_84], %226 {strides = array<i32>} : memref<16x384xf32, #tpu.memory_space<vmem>>, vector<16x128xf32>,
    return
  }
  func.func @transform_0(%arg0: i32, %arg1: memref<3xf32, #tpu.memory_space<smem>>) -> (i32, i32) {
    %c0_i32 = arith.constant 0 : i32
    %c0_i32_0 = arith.constant 0 : i32
    return %arg0, %c0_i32 : i32, i32
  }
  func.func @transform_1(%arg0: i32, %arg1: memref<3xf32, #tpu.memory_space<smem>>) -> (i32, i32, i32) {
    %c0_i32 = arith.constant 0 : i32
    %c0_i32_0 = arith.constant 0 : i32
    %c0_i32_1 = arith.constant 0 : i32
    return %arg0, %c0_i32, %c0_i32_0 : i32, i32, i32
  }
  func.func @transform_2(%arg0: i32, %arg1: memref<3xf32, #tpu.memory_space<smem>>) -> (i32, i32, i32) {
    %c0_i32 = arith.constant 0 : i32
    %c0_i32_0 = arith.constant 0 : i32
    %c0_i32_1 = arith.constant 0 : i32
    return %arg0, %c0_i32, %c0_i32_0 : i32, i32, i32
  }
  func.func @transform_3(%arg0: i32, %arg1: memref<3xf32, #tpu.memory_space<smem>>) -> (i32, i32, i32) {
    %c0_i32 = arith.constant 0 : i32
    %c0_i32_0 = arith.constant 0 : i32
    %c0_i32_1 = arith.constant 0 : i32
    %c0_i32_2 = arith.constant 0 : i32
    return %c0_i32, %c0_i32_0, %c0_i32_1 : i32, i32, i32
  }
  func.func @transform_4(%arg0: i32, %arg1: memref<3xf32, #tpu.memory_space<smem>>) -> (i32, i32, i32) {
    %c0_i32 = arith.constant 0 : i32
    %c0_i32_0 = arith.constant 0 : i32
    %c0_i32_1 = arith.constant 0 : i32
    %c0_i32_2 = arith.constant 0 : i32
    return %c0_i32, %c0_i32_0, %c0_i32_1 : i32, i32, i32
  }
  func.func @transform_5(%arg0: i32, %arg1: memref<3xf32, #tpu.memory_space<smem>>) -> (i32, i32) {
    %c0_i32 = arith.constant 0 : i32
    %c0_i32_0 = arith.constant 0 : i32
    %c0_i32_1 = arith.constant 0 : i32
    return %c0_i32, %c0_i32_0 : i32, i32
  }
  func.func @transform_6(%arg0: i32, %arg1: memref<3xf32, #tpu.memory_space<smem>>) -> (i32, i32) {
    %c0_i32 = arith.constant 0 : i32
    %c0_i32_0 = arith.constant 0 : i32
    return %arg0, %c0_i32 : i32, i32
  }
  func.func @transform_7(%arg0: i32, %arg1: memref<3xf32, #tpu.memory_space<smem>>) -> (i32, i32) {
    %c0_i32 = arith.constant 0 : i32
    %c0_i32_0 = arith.constant 0 : i32
    return %arg0, %c0_i32 : i32, i32
  }
}

</mosaic_0001>

<llo_original>
// kernel: tpu_custom_call.1
$region0: #{tpu_custom_call.1}
  #allocation0 [shape = 'u32[]', space=smem, size = 0x4, offset = 0x4, fixed_abs, tag = 'smem constant byte address 0x4 - core index']
  #allocation1 [shape = 'u32[144,128]{1,0:T(1,128)}', space=vmem, size = 0x12000, scoped, tag = 'internal scratch']
  #allocation2 [shape = 's32[1]{0}', space=sflag, size = 0x4, scoped, tag = 'scoped memory for tpu_custom_call.1']
  #allocation3 [shape = 'u8[512]{0}', space=smem, size = 0x200, scoped, tag = 'prefetched SMEM operand 0']
  %s0 = inlined_call_operand.hbm [shape: f32[3], index: 0, kind: input, shape index: {}]
  %s1 = inlined_call_operand.hbm [shape: f32[256,128], index: 1, kind: input, shape index: {}]
  %s2 = inlined_call_operand.hbm [shape: f32[2,128,128], index: 2, kind: input, shape index: {}]
  %s3 = inlined_call_operand.hbm [shape: f32[2,16,128], index: 3, kind: input, shape index: {}]
  %s4 = inlined_call_operand.hbm [shape: f32[3,128,128], index: 4, kind: input, shape index: {}]
  %s5 = inlined_call_operand.hbm [shape: f32[3,128,128], index: 5, kind: input, shape index: {}]
  %s6 = inlined_call_operand.vmem [shape: f32[12,128], index: 6, kind: input, shape index: {}]
  %s7 = inlined_call_operand.hbm [shape: f32[256,384], index: 7, kind: output, shape index: {0}]
  %s8 = inlined_call_operand.hbm [shape: f32[32,384], index: 8, kind: output, shape index: {1}]
  %9 = xla_tuple %s7, %s8
  %s10 = sld [smem:[#allocation0]]
  $region85: #{tpu_custom_call.1} parent=0
    _
  %s12 = ssub.s32 1, %s10
  %s13 = scalar_select 0, %s12, %s10
  %15 = dma.hbm_to_smem %s0, 16, [#allocation3], [#allocation2]
  %16 = dma.done [#allocation2], 16
  %17 = sfence
  $region1: #{tpu_custom_call.1} parent=0
    #allocation4 [shape = 'u8[131072]{0}', space=vmem, size = 0x20000, scoped, tag = 'input window, operand 1']
    #allocation5 [shape = 's32[2]{0}', space=sflag, size = 0x8, scoped, tag = 'scoped memory for tpu_custom_call.1']
    #allocation6 [shape = 's32[2]{0}', space=sflag, size = 0x8, scoped, tag = 'scoped memory for tpu_custom_call.1']
    #allocation7 [shape = 'u8[131072]{0}', space=vmem, size = 0x20000, scoped, tag = 'input window, operand 2']
    #allocation8 [shape = 's32[2]{0}', space=sflag, size = 0x8, scoped, tag = 'scoped memory for tpu_custom_call.1']
    #allocation9 [shape = 'u8[16384]{0}', space=vmem, size = 0x4000, scoped, tag = 'input window, operand 3']
    #allocation10 [shape = 'u8[196608]{0}', space=vmem, size = 0x30000, scoped, tag = 'input window, operand 4, single buffered']
    #allocation11 [shape = 's32[1]{0}', space=sflag, size = 0x4, scoped, tag = 'scoped memory for tpu_custom_call.1']
    #allocation12 [shape = 'u8[196608]{0}', space=vmem, size = 0x30000, scoped, tag = 'input window, operand 5, single buffered']
    #allocation13 [shape = 'u8[393216]{0}', space=vmem, size = 0x60000, scoped, tag = 'output window, operand 0']
    #allocation14 [shape = 'u8[49152]{0}', space=vmem, size = 0xc000, scoped, tag = 'output window, operand 1']
    #allocation15 [shape = 's32[2]{0}', space=sflag, size = 0x8, scoped, tag = 'scoped memory for tpu_custom_call.1']
    %18 = vsyncpa [#allocation5], 0
    %s19 = scalar_lea.sflag [#allocation5], 1
    %20 = vsyncpa %s19, 0
    %21 = vsyncpa [#allocation8], 0
    %s22 = scalar_lea.sflag [#allocation8], 1
    %23 = vsyncpa %s22, 0
    %24 = vsyncpa [#allocation11], 0
    %25 = vsyncpa [#allocation6], 0
    %s26 = scalar_lea.sflag [#allocation6], 1
    %27 = vsyncpa %s26, 0
    %28 = vsyncpa [#allocation15], 0
    %s29 = scalar_lea.sflag [#allocation15], 1
    %30 = vsyncpa %s29, 0
    loop: start=0, step=1, limit=4
    $region2: #{tpu_custom_call.1} parent=1 // loop_pre_header
      _
    $region3: #{tpu_custom_call.1} parent=1 // loop_header
      %s32 = sphi 0, %s36
      %p33 = scmp.ge.s32.totalorder %s32, 4
      %s42 = sphi 0, %s44
      %s45 = sphi 0, %s42
      %s46 = sphi 0, %s45
      %s62 = sphi 0, %s46
      %s68 = sphi 0, %s70
      %s71 = sphi 0, %s68
      %s72 = sphi 0, %s71
      %s88 = sphi 0, %s72
      %s94 = sphi 0, %s96
      %s97 = sphi 0, %s94
      %s98 = sphi 0, %s97
      %s114 = sphi 0, %s98
      %s118 = sphi 0, %s118
      %s120 = sphi 0, %s118
      %s121 = sphi 0, %s120
      %s135 = sphi 0, %s121
      %s139 = sphi 0, %s139
      %s141 = sphi 0, %s139
      %s142 = sphi 0, %s141
      %s156 = sphi 0, %s142
      %s160 = sphi 0, %s160
      %s162 = sphi 0, %s160
      %s163 = sphi 0, %s162
      %s177 = sphi 0, %s163
      %s183 = sphi 0, %s185
      %s186 = sphi 0, %s183
      %s187 = sphi 0, %s186
      %s203 = sphi 0, %s187
      %s209 = sphi 0, %s211
      %s212 = sphi 0, %s209
      %s213 = sphi 0, %s212
      %s229 = sphi 0, %s213
    $region4: #{tpu_custom_call.1} parent=1 // loop_header_branch
      %35 = sbr.rel (%p33) target = $region8
    $region5: #{tpu_custom_call.1} parent=1 // loop_body
      %s37 = ssub.s32 %s32, 1
      %s38 = ssub.s32 %s32, 2
      %s39 = sadd.s32 %s32, 1
      %s40 = ssub.s32 %s32, %s39
      %p41 = scmp.eq.s32.totalorder %s40, 0
      %s43 = sadd.s32 %s42, 1
      %s44 = scalar_select %p41, %s42, %s43
      %p47 = pneg %p41
      %p48 = scmp.eq.s32.totalorder %s32, 1
      %p49 = por %p47, %p48
      %p50 = scmp.ne.s32.totalorder %s42, %s45
      %p51 = scmp.eq.s32.totalorder %s32, 0
      %p52 = por %p50, %p51
      %p53 = scmp.ne.s32.totalorder %s42, %s45
      %p54 = scmp.eq.s32.totalorder %s37, 1
      %p55 = por %p53, %p54
      %p56 = scmp.ne.s32.totalorder %s45, %s46
      %p57 = scmp.eq.s32.totalorder %s37, 0
      %p58 = por %p56, %p57
      %p59 = scmp.ne.s32.totalorder %s45, %s46
      %p60 = scmp.eq.s32.totalorder %s38, 1
      %p61 = por %p59, %p60
      %p63 = scmp.ne.s32.totalorder %s46, %s62
      %p64 = scmp.eq.s32.totalorder %s38, 0
      %p65 = por %p63, %p64
      %s66 = ssub.s32 %s32, %s39
      %p67 = scmp.eq.s32.totalorder %s66, 0
      %s69 = sadd.s32 %s68, 1
      %s70 = scalar_select %p67, %s68, %s69
      %p73 = pneg %p67
      %p74 = scmp.eq.s32.totalorder %s32, 1
      %p75 = por %p73, %p74
      %p76 = scmp.ne.s32.totalorder %s68, %s71
      %p77 = scmp.eq.s32.totalorder %s32, 0
      %p78 = por %p76, %p77
      %p79 = scmp.ne.s32.totalorder %s68, %s71
      %p80 = scmp.eq.s32.totalorder %s37, 1
      %p81 = por %p79, %p80
      %p82 = scmp.ne.s32.totalorder %s71, %s72
      %p83 = scmp.eq.s32.totalorder %s37, 0
      %p84 = por %p82, %p83
      %p85 = scmp.ne.s32.totalorder %s71, %s72
      %p86 = scmp.eq.s32.totalorder %s38, 1
      %p87 = por %p85, %p86
      %p89 = scmp.ne.s32.totalorder %s72, %s88
      %p90 = scmp.eq.s32.totalorder %s38, 0
      %p91 = por %p89, %p90
      %s92 = ssub.s32 %s32, %s39
      %p93 = scmp.eq.s32.totalorder %s92, 0
      %s95 = sadd.s32 %s94, 1
      %s96 = scalar_select %p93, %s94, %s95
      %p99 = pneg %p93
      %p100 = scmp.eq.s32.totalorder %s32, 1
      %p101 = por %p99, %p100
      %p102 = scmp.ne.s32.totalorder %s94, %s97
      %p103 = scmp.eq.s32.totalorder %s32, 0
      %p104 = por %p102, %p103
      %p105 = scmp.ne.s32.totalorder %s94, %s97
      %p106 = scmp.eq.s32.totalorder %s37, 1
      %p107 = por %p105, %p106
      %p108 = scmp.ne.s32.totalorder %s97, %s98
      %p109 = scmp.eq.s32.totalorder %s37, 0
      %p110 = por %p108, %p109
      %p111 = scmp.ne.s32.totalorder %s97, %s98
      %p112 = scmp.eq.s32.totalorder %s38, 1
      %p113 = por %p111, %p112
      %p115 = scmp.ne.s32.totalorder %s98, %s114
      %p116 = scmp.eq.s32.totalorder %s38, 0
      %p117 = por %p115, %p116
      %s119 = sadd.s32 %s118, 1
      %p122 = scmp.eq.s32.totalorder %s32, 1
      %p123 = scmp.ne.s32.totalorder %s118, %s120
      %p124 = scmp.eq.s32.totalorder %s32, 0
      %p125 = por %p123, %p124
      %p126 = scmp.ne.s32.totalorder %s118, %s120
      %p127 = scmp.eq.s32.totalorder %s37, 1
      %p128 = por %p126, %p127
      %p129 = scmp.ne.s32.totalorder %s120, %s121
      %p130 = scmp.eq.s32.totalorder %s37, 0
      %p131 = por %p129, %p130
      %p132 = scmp.ne.s32.totalorder %s120, %s121
      %p133 = scmp.eq.s32.totalorder %s38, 1
      %p134 = por %p132, %p133
      %p136 = scmp.ne.s32.totalorder %s121, %s135
      %p137 = scmp.eq.s32.totalorder %s38, 0
      %p138 = por %p136, %p137
      %s140 = sadd.s32 %s139, 1
      %p143 = scmp.eq.s32.totalorder %s32, 1
      %p144 = scmp.ne.s32.totalorder %s139, %s141
      %p145 = scmp.eq.s32.totalorder %s32, 0
      %p146 = por %p144, %p145
      %p147 = scmp.ne.s32.totalorder %s139, %s141
      %p148 = scmp.eq.s32.totalorder %s37, 1
      %p149 = por %p147, %p148
      %p150 = scmp.ne.s32.totalorder %s141, %s142
      %p151 = scmp.eq.s32.totalorder %s37, 0
      %p152 = por %p150, %p151
      %p153 = scmp.ne.s32.totalorder %s141, %s142
      %p154 = scmp.eq.s32.totalorder %s38, 1
      %p155 = por %p153, %p154
      %p157 = scmp.ne.s32.totalorder %s142, %s156
      %p158 = scmp.eq.s32.totalorder %s38, 0
      %p159 = por %p157, %p158
      %s161 = sadd.s32 %s160, 1
      %p164 = scmp.eq.s32.totalorder %s32, 1
      %p165 = scmp.ne.s32.totalorder %s160, %s162
      %p166 = scmp.eq.s32.totalorder %s32, 0
      %p167 = por %p165, %p166
      %p168 = scmp.ne.s32.totalorder %s160, %s162
      %p169 = scmp.eq.s32.totalorder %s37, 1
      %p170 = por %p168, %p169
      %p171 = scmp.ne.s32.totalorder %s162, %s163
      %p172 = scmp.eq.s32.totalorder %s37, 0
      %p173 = por %p171, %p172
      %p174 = scmp.ne.s32.totalorder %s162, %s163
      %p175 = scmp.eq.s32.totalorder %s38, 1
      %p176 = por %p174, %p175
      %p178 = scmp.ne.s32.totalorder %s163, %s177
      %p179 = scmp.eq.s32.totalorder %s38, 0
      %p180 = por %p178, %p179
      %s181 = ssub.s32 %s32, %s39
      %p182 = scmp.eq.s32.totalorder %s181, 0
      %s184 = sadd.s32 %s183, 1
      %s185 = scalar_select %p182, %s183, %s184
      %p188 = pneg %p182
      %p189 = scmp.eq.s32.totalorder %s32, 1
      %p190 = por %p188, %p189
      %p191 = scmp.ne.s32.totalorder %s183, %s186
      %p192 = scmp.eq.s32.totalorder %s32, 0
      %p193 = por %p191, %p192
      %p194 = scmp.ne.s32.totalorder %s183, %s186
      %p195 = scmp.eq.s32.totalorder %s37, 1
      %p196 = por %p194, %p195
      %p197 = scmp.ne.s32.totalorder %s186, %s187
      %p198 = scmp.eq.s32.totalorder %s37, 0
      %p199 = por %p197, %p198
      %p200 = scmp.ne.s32.totalorder %s186, %s187
      %p201 = scmp.eq.s32.totalorder %s38, 1
      %p202 = por %p200, %p201
      %p204 = scmp.ne.s32.totalorder %s187, %s203
      %p205 = scmp.eq.s32.totalorder %s38, 0
      %p206 = por %p204, %p205
      %s207 = ssub.s32 %s32, %s39
      %p208 = scmp.eq.s32.totalorder %s207, 0
      %s210 = sadd.s32 %s209, 1
      %s211 = scalar_select %p208, %s209, %s210
      %p214 = pneg %p208
      %p215 = scmp.eq.s32.totalorder %s32, 1
      %p216 = por %p214, %p215
      %p217 = scmp.ne.s32.totalorder %s209, %s212
      %p218 = scmp.eq.s32.totalorder %s32, 0
      %p219 = por %p217, %p218
      %p220 = scmp.ne.s32.totalorder %s209, %s212
      %p221 = scmp.eq.s32.totalorder %s37, 1
      %p222 = por %p220, %p221
      %p223 = scmp.ne.s32.totalorder %s212, %s213
      %p224 = scmp.eq.s32.totalorder %s37, 0
      %p225 = por %p223, %p224
      %p226 = scmp.ne.s32.totalorder %s212, %s213
      %p227 = scmp.eq.s32.totalorder %s38, 1
      %p228 = por %p226, %p227
      %p230 = scmp.ne.s32.totalorder %s213, %s229
      %p231 = scmp.eq.s32.totalorder %s38, 0
      %p232 = por %p230, %p231
      %p233 = scmp.le.s32.totalorder 1, %s32
      %p234 = scmp.lt.s32.totalorder %s32, 3
      %p235 = pnand %p233, %p234
      %p236 = pneg %p235
      // Predicated region
      $region9: #{tpu_custom_call.1} parent=5 // pred_check
        _
      $region10: #{tpu_custom_call.1} parent=5 // pred_check_branch
        %238 = sbr.rel (%p235) target = $region12
      $region11: #{tpu_custom_call.1} parent=5 // pred_region
        %s239 = ssub.s32 %s32, 1
        // Predicated region
        $region13: #{tpu_custom_call.1} parent=11 // pred_check
          %p240 = pneg %p131
        $region14: #{tpu_custom_call.1} parent=11 // pred_check_branch
          %242 = sbr.rel (%p240) target = $region16
        $region15: #{tpu_custom_call.1} parent=11 // pred_region
          %s244 = ssub.s32 6144, 6144
          %245 = vsyncadd [#allocation11], %s244
          %s246 = sshll.u32 [#allocation10], 4
          %s247 = int_to_ptr.vmem [resolvable:$true] %s246
          %252 = dma.hbm_to_vmem [thread:$0]  %s4, 6144, %s247, [#allocation11], 128, 128, 8
        $region16: #{tpu_custom_call.1} parent=11 // pred_fallthru
          _
        // Predicated region
        $region17: #{tpu_custom_call.1} parent=11 // pred_check
          %p253 = pneg %p152
        $region18: #{tpu_custom_call.1} parent=11 // pred_check_branch
          %255 = sbr.rel (%p253) target = $region20
        $region19: #{tpu_custom_call.1} parent=11 // pred_region
          %s257 = ssub.s32 6144, 6144
          %258 = vsyncadd [#allocation11], %s257
          %s259 = sshll.u32 [#allocation12], 4
          %s260 = int_to_ptr.vmem [resolvable:$true] %s259
          %265 = dma.hbm_to_vmem [thread:$0]  %s5, 6144, %s260, [#allocation11], 128, 128, 8
        $region20: #{tpu_custom_call.1} parent=11 // pred_fallthru
          _
        // Predicated region
        $region21: #{tpu_custom_call.1} parent=11 // pred_check
          %p266 = pneg %p173
        $region22: #{tpu_custom_call.1} parent=11 // pred_check_branch
          %268 = sbr.rel (%p266) target = $region24
        $region23: #{tpu_custom_call.1} parent=11 // pred_region
          _
        $region24: #{tpu_custom_call.1} parent=11 // pred_fallthru
          _
      $region12: #{tpu_custom_call.1} parent=5 // pred_fallthru
        _
      %p269 = scmp.lt.s32.totalorder %s32, 2
      // Predicated region
      $region25: #{tpu_custom_call.1} parent=5 // pred_check
        %p270 = pneg %p269
      $region26: #{tpu_custom_call.1} parent=5 // pred_check_branch
        %272 = sbr.rel (%p270) target = $region28
      $region27: #{tpu_custom_call.1} parent=5 // pred_region
        // Predicated region
        $region29: #{tpu_custom_call.1} parent=27 // pred_check
          %p273 = pneg %p52
        $region30: #{tpu_custom_call.1} parent=27 // pred_check_branch
          %275 = sbr.rel (%p273) target = $region32
        $region31: #{tpu_custom_call.1} parent=27 // pred_region
          %s276 = sand.u32 %s42, 1
          %s277 = scalar_lea.sflag [#allocation5], %s276
          %s278 = sand.u32 %s42, 1
          %s279 = smul.addr %s278, 128
          %s280 = scalar_lea.vmem [#allocation4], %s279
          %s281 = smul.u32 16, %s32
          %s283 = ssub.s32 2048, 2048
          %284 = vsyncadd %s277, %s283
          %s285 = smul.addr %s281, 128
          %s286 = scalar_lea.hbm %s1, %s285
          %s287 = sshll.u32 %s280, 4
          %s288 = int_to_ptr.vmem [resolvable:$true] %s287
          %293 = dma.hbm_to_vmem [thread:$0]  %s286, 2048, %s288, %s277, 128, 128, 8
        $region32: #{tpu_custom_call.1} parent=27 // pred_fallthru
          _
        // Predicated region
        $region33: #{tpu_custom_call.1} parent=27 // pred_check
          %p294 = pneg %p78
        $region34: #{tpu_custom_call.1} parent=27 // pred_check_branch
          %296 = sbr.rel (%p294) target = $region36
        $region35: #{tpu_custom_call.1} parent=27 // pred_region
          %s297 = sand.u32 %s32, 1
          %s298 = scalar_lea.sflag [#allocation8], %s297
          %s299 = sand.u32 %s68, 1
          %s300 = smul.addr %s299, 128
          %s301 = scalar_lea.vmem [#allocation7], %s300
          %s303 = ssub.s32 2048, 2048
          %304 = vsyncadd %s298, %s303
          %s305 = smul.addr %s32, 16
          %s306 = smul.addr %s305, 128
          %s307 = scalar_lea.hbm %s2, %s306
          %s308 = sshll.u32 %s301, 4
          %s309 = int_to_ptr.vmem [resolvable:$true] %s308
          %314 = dma.hbm_to_vmem [thread:$0]  %s307, 2048, %s309, %s298, 128, 128, 8
        $region36: #{tpu_custom_call.1} parent=27 // pred_fallthru
          _
        // Predicated region
        $region37: #{tpu_custom_call.1} parent=27 // pred_check
          %p315 = pneg %p104
        $region38: #{tpu_custom_call.1} parent=27 // pred_check_branch
          %317 = sbr.rel (%p315) target = $region40
        $region39: #{tpu_custom_call.1} parent=27 // pred_region
          %s318 = sand.u32 %s32, 1
          %s319 = scalar_lea.sflag [#allocation8], %s318
          %s320 = sand.u32 %s94, 1
          %s321 = smul.addr %s320, 16
          %s322 = scalar_lea.vmem [#allocation9], %s321
          %s324 = ssub.s32 256, 256
          %325 = vsyncadd %s319, %s324
          %s326 = smul.addr %s32, 2
          %s327 = smul.addr %s326, 128
          %s328 = scalar_lea.hbm %s3, %s327
          %s329 = sshll.u32 %s322, 4
          %s330 = int_to_ptr.vmem [resolvable:$true] %s329
          %335 = dma.hbm_to_vmem [thread:$0]  %s328, 256, %s330, %s319, 128, 128, 8
        $region40: #{tpu_custom_call.1} parent=27 // pred_fallthru
          _
      $region28: #{tpu_custom_call.1} parent=5 // pred_fallthru
        _
      %p336 = scmp.le.s32.totalorder 1, %s32
      %p337 = scmp.lt.s32.totalorder %s32, 3
      %p338 = pnand %p336, %p337
      %p339 = pneg %p338
      // Predicated region
      $region41: #{tpu_custom_call.1} parent=5 // pred_check
        _
      $region42: #{tpu_custom_call.1} parent=5 // pred_check_branch
        %341 = sbr.rel (%p338) target = $region44
      $region43: #{tpu_custom_call.1} parent=5 // pred_region
        %s342 = ssub.s32 %s32, 1
        %s343 = sand.u32 %s45, 1
        %s344 = scalar_lea.sflag [#allocation5], %s343
        %s345 = sand.u32 %s45, 1
        %s346 = smul.addr %s345, 128
        %s347 = scalar_lea.vmem [#allocation4], %s346
        // Predicated region
        $region45: #{tpu_custom_call.1} parent=43 // pred_check
          %p348 = pneg %p58
        $region46: #{tpu_custom_call.1} parent=43 // pred_check_branch
          %350 = sbr.rel (%p348) target = $region48
        $region47: #{tpu_custom_call.1} parent=43 // pred_region
          %351 = dma.done %s344, 2048
        $region48: #{tpu_custom_call.1} parent=43 // pred_fallthru
          _
        %s352 = sand.u32 %s37, 1
        %s353 = scalar_lea.sflag [#allocation8], %s352
        %s354 = sand.u32 %s71, 1
        %s355 = smul.addr %s354, 128
        %s356 = scalar_lea.vmem [#allocation7], %s355
        // Predicated region
        $region49: #{tpu_custom_call.1} parent=43 // pred_check
          %p357 = pneg %p84
        $region50: #{tpu_custom_call.1} parent=43 // pred_check_branch
          %359 = sbr.rel (%p357) target = $region52
        $region51: #{tpu_custom_call.1} parent=43 // pred_region
          %360 = dma.done %s353, 2048
        $region52: #{tpu_custom_call.1} parent=43 // pred_fallthru
          _
        %s361 = sand.u32 %s37, 1
        %s362 = scalar_lea.sflag [#allocation8], %s361
        %s363 = sand.u32 %s97, 1
        %s364 = smul.addr %s363, 16
        %s365 = scalar_lea.vmem [#allocation9], %s364
        // Predicated region
        $region53: #{tpu_custom_call.1} parent=43 // pred_check
          %p366 = pneg %p110
        $region54: #{tpu_custom_call.1} parent=43 // pred_check_branch
          %368 = sbr.rel (%p366) target = $region56
        $region55: #{tpu_custom_call.1} parent=43 // pred_region
          %369 = dma.done %s362, 256
        $region56: #{tpu_custom_call.1} parent=43 // pred_fallthru
          _
        // Predicated region
        $region57: #{tpu_custom_call.1} parent=43 // pred_check
          %p370 = pneg %p131
        $region58: #{tpu_custom_call.1} parent=43 // pred_check_branch
          %372 = sbr.rel (%p370) target = $region60
        $region59: #{tpu_custom_call.1} parent=43 // pred_region
          %373 = dma.done [#allocation11], 6144
        $region60: #{tpu_custom_call.1} parent=43 // pred_fallthru
          _
        // Predicated region
        $region61: #{tpu_custom_call.1} parent=43 // pred_check
          %p374 = pneg %p152
        $region62: #{tpu_custom_call.1} parent=43 // pred_check_branch
          %376 = sbr.rel (%p374) target = $region64
        $region63: #{tpu_custom_call.1} parent=43 // pred_region
          %377 = dma.done [#allocation11], 6144
        $region64: #{tpu_custom_call.1} parent=43 // pred_fallthru
          _
        %s378 = sand.u32 %s45, 1
        %s379 = scalar_lea.sflag [#allocation5], %s378
        %s380 = sand.u32 %s45, 1
        %s381 = smul.addr %s380, 128
        %s382 = scalar_lea.vmem [#allocation4], %s381
        %p383 = pneg %p58
        %p384 = pneg %p55
        %s385 = sand.u32 %s37, 1
        %s386 = scalar_lea.sflag [#allocation8], %s385
        %s387 = sand.u32 %s71, 1
        %s388 = smul.addr %s387, 128
        %s389 = scalar_lea.vmem [#allocation7], %s388
        %p390 = pneg %p84
        %p391 = pneg %p81
        %s392 = sand.u32 %s37, 1
        %s393 = scalar_lea.sflag [#allocation8], %s392
        %s394 = sand.u32 %s97, 1
        %s395 = smul.addr %s394, 16
        %s396 = scalar_lea.vmem [#allocation9], %s395
        %p397 = pneg %p110
        %p398 = pneg %p107
        %p399 = pneg %p131
        %p400 = pneg %p128
        %p401 = pneg %p152
        %p402 = pneg %p149
        %p403 = pneg %p173
        %p404 = pneg %p170
        %p405 = pneg %p199
        %p406 = pneg %p196
        %s407 = sand.u32 %s186, 1
        %s408 = scalar_lea.sflag [#allocation6], %s407
        %s409 = sand.u32 %s186, 1
        %s410 = smul.addr %s409, 384
        %s411 = scalar_lea.vmem [#allocation13], %s410
        %p412 = pneg %p225
        %p413 = pneg %p222
        %s414 = sand.u32 %s212, 1
        %s415 = scalar_lea.sflag [#allocation15], %s414
        %s416 = sand.u32 %s212, 1
        %s417 = smul.addr %s416, 48
        %s418 = scalar_lea.vmem [#allocation14], %s417
        %s419 = smul.u32 16, %s37
        %s420 = smul.u32 16, %s37
        %s421 = smul.u32 2, %s37
        %v422 = vld [vmem:[%s347] sm:$0xff]
        %v423 = vld [vmem:[%s347 + $0x8] sm:$0xff]
        %v424 = vld [vmem:[%s347 + $0x10] sm:$0xff]
        %v425 = vld [vmem:[%s347 + $0x18] sm:$0xff]
        %v426 = vld [vmem:[%s347 + $0x20] sm:$0xff]
        %v427 = vld [vmem:[%s347 + $0x28] sm:$0xff]
        %v428 = vld [vmem:[%s347 + $0x30] sm:$0xff]
        %v429 = vld [vmem:[%s347 + $0x38] sm:$0xff]
        %v430 = vld [vmem:[%s347 + $0x40] sm:$0xff]
        %v431 = vld [vmem:[%s347 + $0x48] sm:$0xff]
        %v432 = vld [vmem:[%s347 + $0x50] sm:$0xff]
        %v433 = vld [vmem:[%s347 + $0x58] sm:$0xff]
        %v434 = vld [vmem:[%s347 + $0x60] sm:$0xff]
        %v435 = vld [vmem:[%s347 + $0x68] sm:$0xff]
        %v436 = vld [vmem:[%s347 + $0x70] sm:$0xff]
        %v437 = vld [vmem:[%s347 + $0x78] sm:$0xff]
        %v438 = vld [vmem:[%s356] sm:$0xff]
        %v439 = vld [vmem:[%s356 + $0x8] sm:$0xff]
        %v440 = vld [vmem:[%s356 + $0x10] sm:$0xff]
        %v441 = vld [vmem:[%s356 + $0x18] sm:$0xff]
        %v442 = vld [vmem:[%s356 + $0x20] sm:$0xff]
        %v443 = vld [vmem:[%s356 + $0x28] sm:$0xff]
        %v444 = vld [vmem:[%s356 + $0x30] sm:$0xff]
        %v445 = vld [vmem:[%s356 + $0x38] sm:$0xff]
        %v446 = vld [vmem:[%s356 + $0x40] sm:$0xff]
        %v447 = vld [vmem:[%s356 + $0x48] sm:$0xff]
        %v448 = vld [vmem:[%s356 + $0x50] sm:$0xff]
        %v449 = vld [vmem:[%s356 + $0x58] sm:$0xff]
        %v450 = vld [vmem:[%s356 + $0x60] sm:$0xff]
        %v451 = vld [vmem:[%s356 + $0x68] sm:$0xff]
        %v452 = vld [vmem:[%s356 + $0x70] sm:$0xff]
        %v453 = vld [vmem:[%s356 + $0x78] sm:$0xff]
        %v454 = vld [vmem:[%s365] sm:$0xff]
        %v455 = vld [vmem:[%s365 + $0x8] sm:$0xff]
        %v456 = vld [vmem:[%s6] sm:$0xff]
        %v457 = vld [vmem:[%s6 + $0x8] sm:$0xf]
        %s458 = sld [smem:[#allocation3]]
        %v459 = vstv %s458
        %v460 = vmul.f32 %v459, %v422
        %v461 = vmul.f32 %v459, %v423
        %v462 = vmul.f32 %v459, %v424
        %v463 = vmul.f32 %v459, %v425
        %v464 = vmul.f32 %v459, %v426
        %v465 = vmul.f32 %v459, %v427
        %v466 = vmul.f32 %v459, %v428
        %v467 = vmul.f32 %v459, %v429
        %v468 = vmul.f32 %v459, %v430
        %v469 = vmul.f32 %v459, %v431
        %v470 = vmul.f32 %v459, %v432
        %v471 = vmul.f32 %v459, %v433
        %v472 = vmul.f32 %v459, %v434
        %v473 = vmul.f32 %v459, %v435
        %v474 = vmul.f32 %v459, %v436
        %v475 = vmul.f32 %v459, %v437
        %476 = vmatprep.subr.mxu0 0.0
        %477 = vmatpush1.msra.mxu0 %v422
        %478 = vmatprep.subr.mxu0 0.0
        %479 = vmatpush1.msra.mxu0 %v423
        %480 = vmatprep.subr.mxu0 0.0
        %481 = vmatpush1.msra.mxu0 %v424
        %482 = vmatprep.subr.mxu0 0.0
        %483 = vmatpush1.msra.mxu0 %v425
        %484 = vmatprep.subr.mxu0 0.0
        %485 = vmatpush1.msra.mxu0 %v426
        %486 = vmatprep.subr.mxu0 0.0
        %487 = vmatpush1.msra.mxu0 %v427
        %488 = vmatprep.subr.mxu0 0.0
        %489 = vmatpush1.msra.mxu0 %v428
        %490 = vmatprep.subr.mxu0 0.0
        %491 = vmatpush1.msra.mxu0 %v429
        %492 = vmatprep.subr.mxu0 0.0
        %493 = vmatpush1.msra.mxu0 %v430
        %494 = vmatprep.subr.mxu0 0.0
        %495 = vmatpush1.msra.mxu0 %v431
        %496 = vmatprep.subr.mxu0 0.0
        %497 = vmatpush1.msra.mxu0 %v432
        %498 = vmatprep.subr.mxu0 0.0
        %499 = vmatpush1.msra.mxu0 %v433
        %500 = vmatprep.subr.mxu0 0.0
        %501 = vmatpush1.msra.mxu0 %v434
        %502 = vmatprep.subr.mxu0 0.0
        %503 = vmatpush1.msra.mxu0 %v435
        %504 = vmatprep.subr.mxu0 0.0
        %505 = vmatpush1.msra.mxu0 %v436
        %506 = vmatprep.subr.mxu0 0.0
        %507 = vmatpush1.msra.mxu0 %v437
        %508 = vmatprep.subr.mxu0 0.0
        %509 = vmatpush1.msra.mxu0 0.0
        %510 = vmatprep.subr.mxu0 0.0
        %511 = vmatpush1.msra.mxu0 0.0
        %512 = vmatprep.subr.mxu0 0.0
        %513 = vmatpush1.msra.mxu0 0.0
        %514 = vmatprep.subr.mxu0 0.0
        %515 = vmatpush1.msra.mxu0 0.0
        %516 = vmatprep.subr.mxu0 0.0
        %517 = vmatpush1.msra.mxu0 0.0
        %518 = vmatprep.subr.mxu0 0.0
        %519 = vmatpush1.msra.mxu0 0.0
        %520 = vmatprep.subr.mxu0 0.0
        %521 = vmatpush1.msra.mxu0 0.0
        %522 = vmatprep.subr.mxu0 0.0
        %523 = vmatpush1.msra.mxu0 0.0
        %524 = vmatprep.subr.mxu0 0.0
        %525 = vmatpush1.msra.mxu0 0.0
        %526 = vmatprep.subr.mxu0 0.0
        %527 = vmatpush1.msra.mxu0 0.0
        %528 = vmatprep.subr.mxu0 0.0
        %529 = vmatpush1.msra.mxu0 0.0
        %530 = vmatprep.subr.mxu0 0.0
        %531 = vmatpush1.msra.mxu0 0.0
        %532 = vmatprep.subr.mxu0 0.0
        %533 = vmatpush1.msra.mxu0 0.0
        %534 = vmatprep.subr.mxu0 0.0
        %535 = vmatpush1.msra.mxu0 0.0
        %536 = vmatprep.subr.mxu0 0.0
        %537 = vmatpush1.msra.mxu0 0.0
        %538 = vmatprep.subr.mxu0 0.0
        %539 = vmatpush1.msra.mxu0 0.0
        %540 = vmatprep.mubr.f32.mxu0 0.0
        %541 = vmatmul.mubr.f32.gmra.mrb[0].mxu0 %v438
        %v542 = vpop.f32.mrb[0].mxu0
        %v543 = vadd.f32 0.0, %v542
        %v544 = vpop.f32.mrb[0].mxu0
        %545 = vmatprep.mubr.f32.mxu0 0.0
        %546 = vmatmul.mubr.f32.gmra.mrb[0].mxu0 %v439
        %v547 = vpop.f32.mrb[0].mxu0
        %v548 = vadd.f32 0.0, %v547
        %v549 = vpop.f32.mrb[0].mxu0
        %550 = vmatprep.mubr.f32.mxu0 0.0
        %551 = vmatmul.mubr.f32.gmra.mrb[0].mxu0 %v440
        %v552 = vpop.f32.mrb[0].mxu0
        %v553 = vadd.f32 0.0, %v552
        %v554 = vpop.f32.mrb[0].mxu0
        %555 = vmatprep.mubr.f32.mxu0 0.0
        %556 = vmatmul.mubr.f32.gmra.mrb[0].mxu0 %v441
        %v557 = vpop.f32.mrb[0].mxu0
        %v558 = vadd.f32 0.0, %v557
        %v559 = vpop.f32.mrb[0].mxu0
        %560 = vmatprep.mubr.f32.mxu0 0.0
        %561 = vmatmul.mubr.f32.gmra.mrb[0].mxu0 %v442
        %v562 = vpop.f32.mrb[0].mxu0
        %v563 = vadd.f32 0.0, %v562
        %v564 = vpop.f32.mrb[0].mxu0
        %565 = vmatprep.mubr.f32.mxu0 0.0
        %566 = vmatmul.mubr.f32.gmra.mrb[0].mxu0 %v443
        %v567 = vpop.f32.mrb[0].mxu0
        %v568 = vadd.f32 0.0, %v567
        %v569 = vpop.f32.mrb[0].mxu0
        %570 = vmatprep.mubr.f32.mxu0 0.0
        %571 = vmatmul.mubr.f32.gmra.mrb[0].mxu0 %v444
        %v572 = vpop.f32.mrb[0].mxu0
        %v573 = vadd.f32 0.0, %v572
        %v574 = vpop.f32.mrb[0].mxu0
        %575 = vmatprep.mubr.f32.mxu0 0.0
        %576 = vmatmul.mubr.f32.gmra.mrb[0].mxu0 %v445
        %v577 = vpop.f32.mrb[0].mxu0
        %v578 = vadd.f32 0.0, %v577
        %v579 = vpop.f32.mrb[0].mxu0
        %580 = vmatprep.mubr.f32.mxu0 0.0
        %581 = vmatmul.mubr.f32.gmra.mrb[0].mxu0 %v446
        %v582 = vpop.f32.mrb[0].mxu0
        %v583 = vadd.f32 0.0, %v582
        %v584 = vpop.f32.mrb[0].mxu0
        %585 = vmatprep.mubr.f32.mxu0 0.0
        %586 = vmatmul.mubr.f32.gmra.mrb[0].mxu0 %v447
        %v587 = vpop.f32.mrb[0].mxu0
        %v588 = vadd.f32 0.0, %v587
        %v589 = vpop.f32.mrb[0].mxu0
        %590 = vmatprep.mubr.f32.mxu0 0.0
        %591 = vmatmul.mubr.f32.gmra.mrb[0].mxu0 %v448
        %v592 = vpop.f32.mrb[0].mxu0
        %v593 = vadd.f32 0.0, %v592
        %v594 = vpop.f32.mrb[0].mxu0
        %595 = vmatprep.mubr.f32.mxu0 0.0
        %596 = vmatmul.mubr.f32.gmra.mrb[0].mxu0 %v449
        %v597 = vpop.f32.mrb[0].mxu0
        %v598 = vadd.f32 0.0, %v597
        %v599 = vpop.f32.mrb[0].mxu0
        %600 = vmatprep.mubr.f32.mxu0 0.0
        %601 = vmatmul.mubr.f32.gmra.mrb[0].mxu0 %v450
        %v602 = vpop.f32.mrb[0].mxu0
        %v603 = vadd.f32 0.0, %v602
        %v604 = vpop.f32.mrb[0].mxu0
        %605 = vmatprep.mubr.f32.mxu0 0.0
        %606 = vmatmul.mubr.f32.gmra.mrb[0].mxu0 %v451
        %v607 = vpop.f32.mrb[0].mxu0
        %v608 = vadd.f32 0.0, %v607
        %v609 = vpop.f32.mrb[0].mxu0
        %610 = vmatprep.mubr.f32.mxu0 0.0
        %611 = vmatmul.mubr.f32.gmra.mrb[0].mxu0 %v452
        %v612 = vpop.f32.mrb[0].mxu0
        %v613 = vadd.f32 0.0, %v612
        %v614 = vpop.f32.mrb[0].mxu0
        %615 = vmatprep.mubr.f32.mxu0 0.0
        %616 = vmatmul.mubr.f32.gmra.mrb[0].mxu0 %v453
        %v617 = vpop.f32.mrb[0].mxu0
        %v618 = vadd.f32 0.0, %v617
        %v619 = vpop.f32.mrb[0].mxu0
        %620 = vdwg.mxu0
        %v621 = vadd.f32 %v460, %v543
        %v622 = vadd.f32 %v461, %v548
        %v623 = vadd.f32 %v462, %v553
        %v624 = vadd.f32 %v463, %v558
        %v625 = vadd.f32 %v464, %v563
        %v626 = vadd.f32 %v465, %v568
        %v627 = vadd.f32 %v466, %v573
        %v628 = vadd.f32 %v467, %v578
        %v629 = vadd.f32 %v468, %v583
        %v630 = vadd.f32 %v469, %v588
        %v631 = vadd.f32 %v470, %v593
        %v632 = vadd.f32 %v471, %v598
        %v633 = vadd.f32 %v472, %v603
        %v634 = vadd.f32 %v473, %v608
        %v635 = vadd.f32 %v474, %v613
        %v636 = vadd.f32 %v475, %v618
        %v637 = vld [vmem:[#allocation10] sm:$0xff]
        %v638 = vld [vmem:[#allocation10 + $0x8] sm:$0xff]
        %v639 = vld [vmem:[#allocation10 + $0x10] sm:$0xff]
        %v640 = vld [vmem:[#allocation10 + $0x18] sm:$0xff]
        %v641 = vld [vmem:[#allocation10 + $0x20] sm:$0xff]
        %v642 = vld [vmem:[#allocation10 + $0x28] sm:$0xff]
        %v643 = vld [vmem:[#allocation10 + $0x30] sm:$0xff]
        %v644 = vld [vmem:[#allocation10 + $0x38] sm:$0xff]
        %v645 = vld [vmem:[#allocation10 + $0x40] sm:$0xff]
        %v646 = vld [vmem:[#allocation10 + $0x48] sm:$0xff]
        %v647 = vld [vmem:[#allocation10 + $0x50] sm:$0xff]
        %v648 = vld [vmem:[#allocation10 + $0x58] sm:$0xff]
        %v649 = vld [vmem:[#allocation10 + $0x60] sm:$0xff]
        %v650 = vld [vmem:[#allocation10 + $0x68] sm:$0xff]
        %v651 = vld [vmem:[#allocation10 + $0x70] sm:$0xff]
        %v652 = vld [vmem:[#allocation10 + $0x78] sm:$0xff]
        %653 = vmatprep.subr.mxu0 0.0
        %654 = vmatpush1.msra.mxu0 %v637
        %655 = vmatprep.subr.mxu0 0.0
        %656 = vmatpush1.msra.mxu0 %v638
        %657 = vmatprep.subr.mxu0 0.0
        %658 = vmatpush1.msra.mxu0 %v639
        %659 = vmatprep.subr.mxu0 0.0
        %660 = vmatpush1.msra.mxu0 %v640
        %661 = vmatprep.subr.mxu0 0.0
        %662 = vmatpush1.msra.mxu0 %v641
        %663 = vmatprep.subr.mxu0 0.0
        %664 = vmatpush1.msra.mxu0 %v642
        %665 = vmatprep.subr.mxu0 0.0
        %666 = vmatpush1.msra.mxu0 %v643
        %667 = vmatprep.subr.mxu0 0.0
        %668 = vmatpush1.msra.mxu0 %v644
        %669 = vmatprep.subr.mxu0 0.0
        %670 = vmatpush1.msra.mxu0 %v645
        %671 = vmatprep.subr.mxu0 0.0
        %672 = vmatpush1.msra.mxu0 %v646
        %673 = vmatprep.subr.mxu0 0.0
        %674 = vmatpush1.msra.mxu0 %v647
        %675 = vmatprep.subr.mxu0 0.0
        %676 = vmatpush1.msra.mxu0 %v648
        %677 = vmatprep.subr.mxu0 0.0
        %678 = vmatpush1.msra.mxu0 %v649
        %679 = vmatprep.subr.mxu0 0.0
        %680 = vmatpush1.msra.mxu0 %v650
        %681 = vmatprep.subr.mxu0 0.0
        %682 = vmatpush1.msra.mxu0 %v651
        %683 = vmatprep.subr.mxu0 0.0
        %684 = vmatpush1.msra.mxu0 %v652
        %685 = vmatprep.subr.mxu0 0.0
        %686 = vmatpush1.msra.mxu0 0.0
        %687 = vmatprep.subr.mxu0 0.0
        %688 = vmatpush1.msra.mxu0 0.0
        %689 = vmatprep.subr.mxu0 0.0
        %690 = vmatpush1.msra.mxu0 0.0
        %691 = vmatprep.subr.mxu0 0.0
        %692 = vmatpush1.msra.mxu0 0.0
        %693 = vmatprep.subr.mxu0 0.0
        %694 = vmatpush1.msra.mxu0 0.0
        %695 = vmatprep.subr.mxu0 0.0
        %696 = vmatpush1.msra.mxu0 0.0
        %697 = vmatprep.subr.mxu0 0.0
        %698 = vmatpush1.msra.mxu0 0.0
        %699 = vmatprep.subr.mxu0 0.0
        %700 = vmatpush1.msra.mxu0 0.0
        %701 = vmatprep.subr.mxu0 0.0
        %702 = vmatpush1.msra.mxu0 0.0
        %703 = vmatprep.subr.mxu0 0.0
        %704 = vmatpush1.msra.mxu0 0.0
        %705 = vmatprep.subr.mxu0 0.0
        %706 = vmatpush1.msra.mxu0 0.0
        %707 = vmatprep.subr.mxu0 0.0
        %708 = vmatpush1.msra.mxu0 0.0
        %709 = vmatprep.subr.mxu0 0.0
        %710 = vmatpush1.msra.mxu0 0.0
        %711 = vmatprep.subr.mxu0 0.0
        %712 = vmatpush1.msra.mxu0 0.0
        %713 = vmatprep.subr.mxu0 0.0
        %714 = vmatpush1.msra.mxu0 0.0
        %715 = vmatprep.subr.mxu0 0.0
        %716 = vmatpush1.msra.mxu0 0.0
        %717 = vmatprep.mubr.f32.mxu0 0.0
        %718 = vmatmul.mubr.f32.gmra.mrb[0].mxu0 %v621
        %v719 = vpop.f32.mrb[0].mxu0
        %v720 = vadd.f32 0.0, %v719
        %v721 = vpop.f32.mrb[0].mxu0
        %722 = vmatprep.mubr.f32.mxu0 0.0
        %723 = vmatmul.mubr.f32.gmra.mrb[0].mxu0 %v622
        %v724 = vpop.f32.mrb[0].mxu0
        %v725 = vadd.f32 0.0, %v724
        %v726 = vpop.f32.mrb[0].mxu0
        %727 = vmatprep.mubr.f32.mxu0 0.0
        %728 = vmatmul.mubr.f32.gmra.mrb[0].mxu0 %v623
        %v729 = vpop.f32.mrb[0].mxu0
        %v730 = vadd.f32 0.0, %v729
        %v731 = vpop.f32.mrb[0].mxu0
        %732 = vmatprep.mubr.f32.mxu0 0.0
        %733 = vmatmul.mubr.f32.gmra.mrb[0].mxu0 %v624
        %v734 = vpop.f32.mrb[0].mxu0
        %v735 = vadd.f32 0.0, %v734
        %v736 = vpop.f32.mrb[0].mxu0
        %737 = vmatprep.mubr.f32.mxu0 0.0
        %738 = vmatmul.mubr.f32.gmra.mrb[0].mxu0 %v625
        %v739 = vpop.f32.mrb[0].mxu0
        %v740 = vadd.f32 0.0, %v739
        %v741 = vpop.f32.mrb[0].mxu0
        %742 = vmatprep.mubr.f32.mxu0 0.0
        %743 = vmatmul.mubr.f32.gmra.mrb[0].mxu0 %v626
        %v744 = vpop.f32.mrb[0].mxu0
        %v745 = vadd.f32 0.0, %v744
        %v746 = vpop.f32.mrb[0].mxu0
        %747 = vmatprep.mubr.f32.mxu0 0.0
        %748 = vmatmul.mubr.f32.gmra.mrb[0].mxu0 %v627
        %v749 = vpop.f32.mrb[0].mxu0
        %v750 = vadd.f32 0.0, %v749
        %v751 = vpop.f32.mrb[0].mxu0
        %752 = vmatprep.mubr.f32.mxu0 0.0
        %753 = vmatmul.mubr.f32.gmra.mrb[0].mxu0 %v628
        %v754 = vpop.f32.mrb[0].mxu0
        %v755 = vadd.f32 0.0, %v754
        %v756 = vpop.f32.mrb[0].mxu0
        %757 = vmatprep.mubr.f32.mxu0 0.0
        %758 = vmatmul.mubr.f32.gmra.mrb[0].mxu0 %v629
        %v759 = vpop.f32.mrb[0].mxu0
        %v760 = vadd.f32 0.0, %v759
        %v761 = vpop.f32.mrb[0].mxu0
        %762 = vmatprep.mubr.f32.mxu0 0.0
        %763 = vmatmul.mubr.f32.gmra.mrb[0].mxu0 %v630
        %v764 = vpop.f32.mrb[0].mxu0
        %v765 = vadd.f32 0.0, %v764
        %v766 = vpop.f32.mrb[0].mxu0
        %767 = vmatprep.mubr.f32.mxu0 0.0
        %768 = vmatmul.mubr.f32.gmra.mrb[0].mxu0 %v631
        %v769 = vpop.f32.mrb[0].mxu0
        %v770 = vadd.f32 0.0, %v769
        %v771 = vpop.f32.mrb[0].mxu0
        %772 = vmatprep.mubr.f32.mxu0 0.0
        %773 = vmatmul.mubr.f32.gmra.mrb[0].mxu0 %v632
        %v774 = vpop.f32.mrb[0].mxu0
        %v775 = vadd.f32 0.0, %v774
        %v776 = vpop.f32.mrb[0].mxu0
        %777 = vmatprep.mubr.f32.mxu0 0.0
        %778 = vmatmul.mubr.f32.gmra.mrb[0].mxu0 %v633
        %v779 = vpop.f32.mrb[0].mxu0
        %v780 = vadd.f32 0.0, %v779
        %v781 = vpop.f32.mrb[0].mxu0
        %782 = vmatprep.mubr.f32.mxu0 0.0
        %783 = vmatmul.mubr.f32.gmra.mrb[0].mxu0 %v634
        %v784 = vpop.f32.mrb[0].mxu0
        %v785 = vadd.f32 0.0, %v784
        %v786 = vpop.f32.mrb[0].mxu0
        %787 = vmatprep.mubr.f32.mxu0 0.0
        %788 = vmatmul.mubr.f32.gmra.mrb[0].mxu0 %v635
        %v789 = vpop.f32.mrb[0].mxu0
        %v790 = vadd.f32 0.0, %v789
        %v791 = vpop.f32.mrb[0].mxu0
        %792 = vmatprep.mubr.f32.mxu0 0.0
        %793 = vmatmul.mubr.f32.gmra.mrb[0].mxu0 %v636
        %v794 = vpop.f32.mrb[0].mxu0
        %v795 = vadd.f32 0.0, %v794
        %v796 = vpop.f32.mrb[0].mxu0
        %797 = vdwg.mxu0
        %v798 = vadd.f32 %v720, %v725
        %v799 = vrot.slane %v798, 4
        %v800 = vadd.f32 %v798, %v799
        %v801 = vrot.slane %v800, 2
        %v802 = vadd.f32 %v800, %v801
        %v803 = vrot.slane %v802, 1
        %v804 = vadd.f32 %v802, %v803
        %v805 = vadd.f32 %v730, %v735
        %v806 = vrot.slane %v805, 4
        %v807 = vadd.f32 %v805, %v806
        %v808 = vrot.slane %v807, 2
        %v809 = vadd.f32 %v807, %v808
        %v810 = vrot.slane %v809, 1
        %v811 = vadd.f32 %v809, %v810
        %v812 = vadd.f32 %v740, %v745
        %v813 = vrot.slane %v812, 4
        %v814 = vadd.f32 %v812, %v813
        %v815 = vrot.slane %v814, 2
        %v816 = vadd.f32 %v814, %v815
        %v817 = vrot.slane %v816, 1
        %v818 = vadd.f32 %v816, %v817
        %v819 = vadd.f32 %v750, %v755
        %v820 = vrot.slane %v819, 4
        %v821 = vadd.f32 %v819, %v820
        %v822 = vrot.slane %v821, 2
        %v823 = vadd.f32 %v821, %v822
        %v824 = vrot.slane %v823, 1
        %v825 = vadd.f32 %v823, %v824
        %v826 = vadd.f32 %v760, %v765
        %v827 = vrot.slane %v826, 4
        %v828 = vadd.f32 %v826, %v827
        %v829 = vrot.slane %v828, 2
        %v830 = vadd.f32 %v828, %v829
        %v831 = vrot.slane %v830, 1
        %v832 = vadd.f32 %v830, %v831
        %v833 = vadd.f32 %v770, %v775
        %v834 = vrot.slane %v833, 4
        %v835 = vadd.f32 %v833, %v834
        %v836 = vrot.slane %v835, 2
        %v837 = vadd.f32 %v835, %v836
        %v838 = vrot.slane %v837, 1
        %v839 = vadd.f32 %v837, %v838
        %v840 = vadd.f32 %v780, %v785
        %v841 = vrot.slane %v840, 4
        %v842 = vadd.f32 %v840, %v841
        %v843 = vrot.slane %v842, 2
        %v844 = vadd.f32 %v842, %v843
        %v845 = vrot.slane %v844, 1
        %v846 = vadd.f32 %v844, %v845
        %v847 = vadd.f32 %v790, %v795
        %v848 = vrot.slane %v847, 4
        %v849 = vadd.f32 %v847, %v848
        %v850 = vrot.slane %v849, 2
        %v851 = vadd.f32 %v849, %v850
        %v852 = vrot.slane %v851, 1
        %v853 = vadd.f32 %v851, %v852
        %v854 = vmul.f32 %v804, 0.0625
        %v855 = vmul.f32 %v811, 0.0625
        %v856 = vmul.f32 %v818, 0.0625
        %v857 = vmul.f32 %v825, 0.0625
        %v858 = vmul.f32 %v832, 0.0625
        %v859 = vmul.f32 %v839, 0.0625
        %v860 = vmul.f32 %v846, 0.0625
        %v861 = vmul.f32 %v853, 0.0625
        %v862 = vsub.f32 %v720, %v854
        %v863 = vsub.f32 %v725, %v854
        %v864 = vsub.f32 %v730, %v855
        %v865 = vsub.f32 %v735, %v855
        %v866 = vsub.f32 %v740, %v856
        %v867 = vsub.f32 %v745, %v856
        %v868 = vsub.f32 %v750, %v857
        %v869 = vsub.f32 %v755, %v857
        %v870 = vsub.f32 %v760, %v858
        %v871 = vsub.f32 %v765, %v858
        %v872 = vsub.f32 %v770, %v859
        %v873 = vsub.f32 %v775, %v859
        %v874 = vsub.f32 %v780, %v860
        %v875 = vsub.f32 %v785, %v860
        %v876 = vsub.f32 %v790, %v861
        %v877 = vsub.f32 %v795, %v861
        %v878 = vmul.f32 %v862, %v862
        %v879 = vmul.f32 %v863, %v863
        %v880 = vmul.f32 %v864, %v864
        %v881 = vmul.f32 %v865, %v865
        %v882 = vmul.f32 %v866, %v866
        %v883 = vmul.f32 %v867, %v867
        %v884 = vmul.f32 %v868, %v868
        %v885 = vmul.f32 %v869, %v869
        %v886 = vmul.f32 %v870, %v870
        %v887 = vmul.f32 %v871, %v871
        %v888 = vmul.f32 %v872, %v872
        %v889 = vmul.f32 %v873, %v873
        %v890 = vmul.f32 %v874, %v874
        %v891 = vmul.f32 %v875, %v875
        %v892 = vmul.f32 %v876, %v876
        %v893 = vmul.f32 %v877, %v877
        %v894 = vadd.f32 %v878, %v879
        %v895 = vrot.slane %v894, 4
        %v896 = vadd.f32 %v894, %v895
        %v897 = vrot.slane %v896, 2
        %v898 = vadd.f32 %v896, %v897
        %v899 = vrot.slane %v898, 1
        %v900 = vadd.f32 %v898, %v899
        %v901 = vadd.f32 %v880, %v881
        %v902 = vrot.slane %v901, 4
        %v903 = vadd.f32 %v901, %v902
        %v904 = vrot.slane %v903, 2
        %v905 = vadd.f32 %v903, %v904
        %v906 = vrot.slane %v905, 1
        %v907 = vadd.f32 %v905, %v906
        %v908 = vadd.f32 %v882, %v883
        %v909 = vrot.slane %v908, 4
        %v910 = vadd.f32 %v908, %v909
        %v911 = vrot.slane %v910, 2
        %v912 = vadd.f32 %v910, %v911
        %v913 = vrot.slane %v912, 1
        %v914 = vadd.f32 %v912, %v913
        %v915 = vadd.f32 %v884, %v885
        %v916 = vrot.slane %v915, 4
        %v917 = vadd.f32 %v915, %v916
        %v918 = vrot.slane %v917, 2
        %v919 = vadd.f32 %v917, %v918
        %v920 = vrot.slane %v919, 1
        %v921 = vadd.f32 %v919, %v920
        %v922 = vadd.f32 %v886, %v887
        %v923 = vrot.slane %v922, 4
        %v924 = vadd.f32 %v922, %v923
        %v925 = vrot.slane %v924, 2
        %v926 = vadd.f32 %v924, %v925
        %v927 = vrot.slane %v926, 1
        %v928 = vadd.f32 %v926, %v927
        %v929 = vadd.f32 %v888, %v889
        %v930 = vrot.slane %v929, 4
        %v931 = vadd.f32 %v929, %v930
        %v932 = vrot.slane %v931, 2
        %v933 = vadd.f32 %v931, %v932
        %v934 = vrot.slane %v933, 1
        %v935 = vadd.f32 %v933, %v934
        %v936 = vadd.f32 %v890, %v891
        %v937 = vrot.slane %v936, 4
        %v938 = vadd.f32 %v936, %v937
        %v939 = vrot.slane %v938, 2
        %v940 = vadd.f32 %v938, %v939
        %v941 = vrot.slane %v940, 1
        %v942 = vadd.f32 %v940, %v941
        %v943 = vadd.f32 %v892, %v893
        %v944 = vrot.slane %v943, 4
        %v945 = vadd.f32 %v943, %v944
        %v946 = vrot.slane %v945, 2
        %v947 = vadd.f32 %v945, %v946
        %v948 = vrot.slane %v947, 1
        %v949 = vadd.f32 %v947, %v948
        %v950 = vmul.f32 %v900, 0.0625
        %v951 = vmul.f32 %v907, 0.0625
        %v952 = vmul.f32 %v914, 0.0625
        %v953 = vmul.f32 %v921, 0.0625
        %v954 = vmul.f32 %v928, 0.0625
        %v955 = vmul.f32 %v935, 0.0625
        %v956 = vmul.f32 %v942, 0.0625
        %v957 = vmul.f32 %v949, 0.0625
        %v958 = vadd.f32 %v950, 1e-05
        %v959 = vadd.f32 %v951, 1e-05
        %v960 = vadd.f32 %v952, 1e-05
        %v961 = vadd.f32 %v953, 1e-05
        %v962 = vadd.f32 %v954, 1e-05
        %v963 = vadd.f32 %v955, 1e-05
        %v964 = vadd.f32 %v956, 1e-05
        %v965 = vadd.f32 %v957, 1e-05
        %v966 = vrsqrt.pop %v958
        %v967 = vrsqrt.pop %v959
        %v968 = vrsqrt.pop %v960
        %v969 = vrsqrt.pop %v961
        %v970 = vrsqrt.pop %v962
        %v971 = vrsqrt.pop %v963
        %v972 = vrsqrt.pop %v964
        %v973 = vrsqrt.pop %v965
        %v974 = vmul.f32 %v456, %v966
        %v975 = vmul.f32 %v456, %v967
        %v976 = vmul.f32 %v456, %v968
        %v977 = vmul.f32 %v456, %v969
        %v978 = vmul.f32 %v456, %v970
        %v979 = vmul.f32 %v456, %v971
        %v980 = vmul.f32 %v456, %v972
        %v981 = vmul.f32 %v456, %v973
        %v982 = vlaneseq
        %v983 = vshrl.u32 %v982, 7
        %v984 = vsub.s32 0, %v983
        %v985 = vrot.slane %v974, %v984
        %v986 = vlaneseq
        %v987 = vshrl.u32 %v986, 7
        %v988 = vsub.s32 0, %v987
        %v989 = vrot.slane %v975, %v988
        %v990 = vlaneseq
        %v991 = vshrl.u32 %v990, 7
        %v992 = vsub.s32 0, %v991
        %v993 = vrot.slane %v976, %v992
        %v994 = vlaneseq
        %v995 = vshrl.u32 %v994, 7
        %v996 = vsub.s32 0, %v995
        %v997 = vrot.slane %v977, %v996
        %v998 = vlaneseq
        %v999 = vshrl.u32 %v998, 7
        %v1000 = vsub.s32 0, %v999
        %v1001 = vrot.slane %v978, %v1000
        %v1002 = vlaneseq
        %v1003 = vshrl.u32 %v1002, 7
        %v1004 = vsub.s32 0, %v1003
        %v1005 = vrot.slane %v979, %v1004
        %v1006 = vlaneseq
        %v1007 = vshrl.u32 %v1006, 7
        %v1008 = vsub.s32 0, %v1007
        %v1009 = vrot.slane %v980, %v1008
        %v1010 = vlaneseq
        %v1011 = vshrl.u32 %v1010, 7
        %v1012 = vsub.s32 0, %v1011
        %v1013 = vrot.slane %v981, %v1012
        %v1014 = vmul.f32 %v862, %v985
        %v1015 = vmul.f32 %v863, %v985
        %v1016 = vmul.f32 %v864, %v989
        %v1017 = vmul.f32 %v865, %v989
        %v1018 = vmul.f32 %v866, %v993
        %v1019 = vmul.f32 %v867, %v993
        %v1020 = vmul.f32 %v868, %v997
        %v1021 = vmul.f32 %v869, %v997
        %v1022 = vmul.f32 %v870, %v1001
        %v1023 = vmul.f32 %v871, %v1001
        %v1024 = vmul.f32 %v872, %v1005
        %v1025 = vmul.f32 %v873, %v1005
        %v1026 = vmul.f32 %v874, %v1009
        %v1027 = vmul.f32 %v875, %v1009
        %v1028 = vmul.f32 %v876, %v1013
        %v1029 = vmul.f32 %v877, %v1013
        %v1030 = vlaneseq
        %v1031 = vshrl.u32 %v1030, 7
        %v1032 = vsub.s32 1, %v1031
        %v1033 = vrot.slane %v456, %v1032
        %v1034 = vadd.f32 %v1014, %v1033
        %v1035 = vadd.f32 %v1015, %v1033
        %v1036 = vadd.f32 %v1016, %v1033
        %v1037 = vadd.f32 %v1017, %v1033
        %v1038 = vadd.f32 %v1018, %v1033
        %v1039 = vadd.f32 %v1019, %v1033
        %v1040 = vadd.f32 %v1020, %v1033
        %v1041 = vadd.f32 %v1021, %v1033
        %v1042 = vadd.f32 %v1022, %v1033
        %v1043 = vadd.f32 %v1023, %v1033
        %v1044 = vadd.f32 %v1024, %v1033
        %v1045 = vadd.f32 %v1025, %v1033
        %v1046 = vadd.f32 %v1026, %v1033
        %v1047 = vadd.f32 %v1027, %v1033
        %v1048 = vadd.f32 %v1028, %v1033
        %v1049 = vadd.f32 %v1029, %v1033
        %v1050 = vmax.f32 %v1034, 0.0
        %v1051 = vmax.f32 %v1035, 0.0
        %v1052 = vmax.f32 %v1036, 0.0
        %v1053 = vmax.f32 %v1037, 0.0
        %v1054 = vmax.f32 %v1038, 0.0
        %v1055 = vmax.f32 %v1039, 0.0
        %v1056 = vmax.f32 %v1040, 0.0
        %v1057 = vmax.f32 %v1041, 0.0
        %v1058 = vmax.f32 %v1042, 0.0
        %v1059 = vmax.f32 %v1043, 0.0
        %v1060 = vmax.f32 %v1044, 0.0
        %v1061 = vmax.f32 %v1045, 0.0
        %v1062 = vmax.f32 %v1046, 0.0
        %v1063 = vmax.f32 %v1047, 0.0
        %v1064 = vmax.f32 %v1048, 0.0
        %v1065 = vmax.f32 %v1049, 0.0
        %v1066 = vld [vmem:[#allocation12] sm:$0xff]
        %v1067 = vld [vmem:[#allocation12 + $0x8] sm:$0xff]
        %v1068 = vld [vmem:[#allocation12 + $0x10] sm:$0xff]
        %v1069 = vld [vmem:[#allocation12 + $0x18] sm:$0xff]
        %v1070 = vld [vmem:[#allocation12 + $0x20] sm:$0xff]
        %v1071 = vld [vmem:[#allocation12 + $0x28] sm:$0xff]
        %v1072 = vld [vmem:[#allocation12 + $0x30] sm:$0xff]
        %v1073 = vld [vmem:[#allocation12 + $0x38] sm:$0xff]
        %v1074 = vld [vmem:[#allocation12 + $0x40] sm:$0xff]
        %v1075 = vld [vmem:[#allocation12 + $0x48] sm:$0xff]
        %v1076 = vld [vmem:[#allocation12 + $0x50] sm:$0xff]
        %v1077 = vld [vmem:[#allocation12 + $0x58] sm:$0xff]
        %v1078 = vld [vmem:[#allocation12 + $0x60] sm:$0xff]
        %v1079 = vld [vmem:[#allocation12 + $0x68] sm:$0xff]
        %v1080 = vld [vmem:[#allocation12 + $0x70] sm:$0xff]
        %v1081 = vld [vmem:[#allocation12 + $0x78] sm:$0xff]
        %1082 = vmatprep.subr.mxu0 0.0
        %1083 = vmatpush1.msra.mxu0 %v1066
        %1084 = vmatprep.subr.mxu0 0.0
        %1085 = vmatpush1.msra.mxu0 %v1067
        %1086 = vmatprep.subr.mxu0 0.0
        %1087 = vmatpush1.msra.mxu0 %v1068
        %1088 = vmatprep.subr.mxu0 0.0
        %1089 = vmatpush1.msra.mxu0 %v1069
        %1090 = vmatprep.subr.mxu0 0.0
        %1091 = vmatpush1.msra.mxu0 %v1070
        %1092 = vmatprep.subr.mxu0 0.0
        %1093 = vmatpush1.msra.mxu0 %v1071
        %1094 = vmatprep.subr.mxu0 0.0
        %1095 = vmatpush1.msra.mxu0 %v1072
        %1096 = vmatprep.subr.mxu0 0.0
        %1097 = vmatpush1.msra.mxu0 %v1073
        %1098 = vmatprep.subr.mxu0 0.0
        %1099 = vmatpush1.msra.mxu0 %v1074
        %1100 = vmatprep.subr.mxu0 0.0
        %1101 = vmatpush1.msra.mxu0 %v1075
        %1102 = vmatprep.subr.mxu0 0.0
        %1103 = vmatpush1.msra.mxu0 %v1076
        %1104 = vmatprep.subr.mxu0 0.0
        %1105 = vmatpush1.msra.mxu0 %v1077
        %1106 = vmatprep.subr.mxu0 0.0
        %1107 = vmatpush1.msra.mxu0 %v1078
        %1108 = vmatprep.subr.mxu0 0.0
        %1109 = vmatpush1.msra.mxu0 %v1079
        %1110 = vmatprep.subr.mxu0 0.0
        %1111 = vmatpush1.msra.mxu0 %v1080
        %1112 = vmatprep.subr.mxu0 0.0
        %1113 = vmatpush1.msra.mxu0 %v1081
        %1114 = vmatprep.subr.mxu0 0.0
        %1115 = vmatpush1.msra.mxu0 0.0
        %1116 = vmatprep.subr.mxu0 0.0
        %1117 = vmatpush1.msra.mxu0 0.0
        %1118 = vmatprep.subr.mxu0 0.0
        %1119 = vmatpush1.msra.mxu0 0.0
        %1120 = vmatprep.subr.mxu0 0.0
        %1121 = vmatpush1.msra.mxu0 0.0
        %1122 = vmatprep.subr.mxu0 0.0
        %1123 = vmatpush1.msra.mxu0 0.0
        %1124 = vmatprep.subr.mxu0 0.0
        %1125 = vmatpush1.msra.mxu0 0.0
        %1126 = vmatprep.subr.mxu0 0.0
        %1127 = vmatpush1.msra.mxu0 0.0
        %1128 = vmatprep.subr.mxu0 0.0
        %1129 = vmatpush1.msra.mxu0 0.0
        %1130 = vmatprep.subr.mxu0 0.0
        %1131 = vmatpush1.msra.mxu0 0.0
        %1132 = vmatprep.subr.mxu0 0.0
        %1133 = vmatpush1.msra.mxu0 0.0
        %1134 = vmatprep.subr.mxu0 0.0
        %1135 = vmatpush1.msra.mxu0 0.0
        %1136 = vmatprep.subr.mxu0 0.0
        %1137 = vmatpush1.msra.mxu0 0.0
        %1138 = vmatprep.subr.mxu0 0.0
        %1139 = vmatpush1.msra.mxu0 0.0
        %1140 = vmatprep.subr.mxu0 0.0
        %1141 = vmatpush1.msra.mxu0 0.0
        %1142 = vmatprep.subr.mxu0 0.0
        %1143 = vmatpush1.msra.mxu0 0.0
        %1144 = vmatprep.subr.mxu0 0.0
        %1145 = vmatpush1.msra.mxu0 0.0
        %1146 = vmatprep.mubr.f32.mxu0 0.0
        %1147 = vmatmul.mubr.f32.gmra.mrb[0].mxu0 %v1050
        %v1148 = vpop.f32.mrb[0].mxu0
        %v1149 = vadd.f32 0.0, %v1148
        %v1150 = vpop.f32.mrb[0].mxu0
        %1151 = vmatprep.mubr.f32.mxu0 0.0
        %1152 = vmatmul.mubr.f32.gmra.mrb[0].mxu0 %v1051
        %v1153 = vpop.f32.mrb[0].mxu0
        %v1154 = vadd.f32 0.0, %v1153
        %v1155 = vpop.f32.mrb[0].mxu0
        %1156 = vmatprep.mubr.f32.mxu0 0.0
        %1157 = vmatmul.mubr.f32.gmra.mrb[0].mxu0 %v1052
        %v1158 = vpop.f32.mrb[0].mxu0
        %v1159 = vadd.f32 0.0, %v1158
        %v1160 = vpop.f32.mrb[0].mxu0
        %1161 = vmatprep.mubr.f32.mxu0 0.0
        %1162 = vmatmul.mubr.f32.gmra.mrb[0].mxu0 %v1053
        %v1163 = vpop.f32.mrb[0].mxu0
        %v1164 = vadd.f32 0.0, %v1163
        %v1165 = vpop.f32.mrb[0].mxu0
        %1166 = vmatprep.mubr.f32.mxu0 0.0
        %1167 = vmatmul.mubr.f32.gmra.mrb[0].mxu0 %v1054
        %v1168 = vpop.f32.mrb[0].mxu0
        %v1169 = vadd.f32 0.0, %v1168
        %v1170 = vpop.f32.mrb[0].mxu0
        %1171 = vmatprep.mubr.f32.mxu0 0.0
        %1172 = vmatmul.mubr.f32.gmra.mrb[0].mxu0 %v1055
        %v1173 = vpop.f32.mrb[0].mxu0
        %v1174 = vadd.f32 0.0, %v1173
        %v1175 = vpop.f32.mrb[0].mxu0
        %1176 = vmatprep.mubr.f32.mxu0 0.0
        %1177 = vmatmul.mubr.f32.gmra.mrb[0].mxu0 %v1056
        %v1178 = vpop.f32.mrb[0].mxu0
        %v1179 = vadd.f32 0.0, %v1178
        %v1180 = vpop.f32.mrb[0].mxu0
        %1181 = vmatprep.mubr.f32.mxu0 0.0
        %1182 = vmatmul.mubr.f32.gmra.mrb[0].mxu0 %v1057
        %v1183 = vpop.f32.mrb[0].mxu0
        %v1184 = vadd.f32 0.0, %v1183
        %v1185 = vpop.f32.mrb[0].mxu0
        %1186 = vmatprep.mubr.f32.mxu0 0.0
        %1187 = vmatmul.mubr.f32.gmra.mrb[0].mxu0 %v1058
        %v1188 = vpop.f32.mrb[0].mxu0
        %v1189 = vadd.f32 0.0, %v1188
        %v1190 = vpop.f32.mrb[0].mxu0
        %1191 = vmatprep.mubr.f32.mxu0 0.0
        %1192 = vmatmul.mubr.f32.gmra.mrb[0].mxu0 %v1059
        %v1193 = vpop.f32.mrb[0].mxu0
        %v1194 = vadd.f32 0.0, %v1193
        %v1195 = vpop.f32.mrb[0].mxu0
        %1196 = vmatprep.mubr.f32.mxu0 0.0
        %1197 = vmatmul.mubr.f32.gmra.mrb[0].mxu0 %v1060
        %v1198 = vpop.f32.mrb[0].mxu0
        %v1199 = vadd.f32 0.0, %v1198
        %v1200 = vpop.f32.mrb[0].mxu0
        %1201 = vmatprep.mubr.f32.mxu0 0.0
        %1202 = vmatmul.mubr.f32.gmra.mrb[0].mxu0 %v1061
        %v1203 = vpop.f32.mrb[0].mxu0
        %v1204 = vadd.f32 0.0, %v1203
        %v1205 = vpop.f32.mrb[0].mxu0
        %1206 = vmatprep.mubr.f32.mxu0 0.0
        %1207 = vmatmul.mubr.f32.gmra.mrb[0].mxu0 %v1062
        %v1208 = vpop.f32.mrb[0].mxu0
        %v1209 = vadd.f32 0.0, %v1208
        %v1210 = vpop.f32.mrb[0].mxu0
        %1211 = vmatprep.mubr.f32.mxu0 0.0
        %1212 = vmatmul.mubr.f32.gmra.mrb[0].mxu0 %v1063
        %v1213 = vpop.f32.mrb[0].mxu0
        %v1214 = vadd.f32 0.0, %v1213
        %v1215 = vpop.f32.mrb[0].mxu0
        %1216 = vmatprep.mubr.f32.mxu0 0.0
        %1217 = vmatmul.mubr.f32.gmra.mrb[0].mxu0 %v1064
        %v1218 = vpop.f32.mrb[0].mxu0
        %v1219 = vadd.f32 0.0, %v1218
        %v1220 = vpop.f32.mrb[0].mxu0
        %1221 = vmatprep.mubr.f32.mxu0 0.0
        %1222 = vmatmul.mubr.f32.gmra.mrb[0].mxu0 %v1065
        %v1223 = vpop.f32.mrb[0].mxu0
        %v1224 = vadd.f32 0.0, %v1223
        %v1225 = vpop.f32.mrb[0].mxu0
        %1226 = vdwg.mxu0
        %v1227 = vadd.f32 %v1149, %v1154
        %v1228 = vrot.slane %v1227, 4
        %v1229 = vadd.f32 %v1227, %v1228
        %v1230 = vrot.slane %v1229, 2
        %v1231 = vadd.f32 %v1229, %v1230
        %v1232 = vrot.slane %v1231, 1
        %v1233 = vadd.f32 %v1231, %v1232
        %v1234 = vadd.f32 %v1159, %v1164
        %v1235 = vrot.slane %v1234, 4
        %v1236 = vadd.f32 %v1234, %v1235
        %v1237 = vrot.slane %v1236, 2
        %v1238 = vadd.f32 %v1236, %v1237
        %v1239 = vrot.slane %v1238, 1
        %v1240 = vadd.f32 %v1238, %v1239
        %v1241 = vadd.f32 %v1169, %v1174
        %v1242 = vrot.slane %v1241, 4
        %v1243 = vadd.f32 %v1241, %v1242
        %v1244 = vrot.slane %v1243, 2
        %v1245 = vadd.f32 %v1243, %v1244
        %v1246 = vrot.slane %v1245, 1
        %v1247 = vadd.f32 %v1245, %v1246
        %v1248 = vadd.f32 %v1179, %v1184
        %v1249 = vrot.slane %v1248, 4
        %v1250 = vadd.f32 %v1248, %v1249
        %v1251 = vrot.slane %v1250, 2
        %v1252 = vadd.f32 %v1250, %v1251
        %v1253 = vrot.slane %v1252, 1
        %v1254 = vadd.f32 %v1252, %v1253
        %v1255 = vadd.f32 %v1189, %v1194
        %v1256 = vrot.slane %v1255, 4
        %v1257 = vadd.f32 %v1255, %v1256
        %v1258 = vrot.slane %v1257, 2
        %v1259 = vadd.f32 %v1257, %v1258
        %v1260 = vrot.slane %v1259, 1
        %v1261 = vadd.f32 %v1259, %v1260
        %v1262 = vadd.f32 %v1199, %v1204
        %v1263 = vrot.slane %v1262, 4
        %v1264 = vadd.f32 %v1262, %v1263
        %v1265 = vrot.slane %v1264, 2
        %v1266 = vadd.f32 %v1264, %v1265
        %v1267 = vrot.slane %v1266, 1
        %v1268 = vadd.f32 %v1266, %v1267
        %v1269 = vadd.f32 %v1209, %v1214
        %v1270 = vrot.slane %v1269, 4
        %v1271 = vadd.f32 %v1269, %v1270
        %v1272 = vrot.slane %v1271, 2
        %v1273 = vadd.f32 %v1271, %v1272
        %v1274 = vrot.slane %v1273, 1
        %v1275 = vadd.f32 %v1273, %v1274
        %v1276 = vadd.f32 %v1219, %v1224
        %v1277 = vrot.slane %v1276, 4
        %v1278 = vadd.f32 %v1276, %v1277
        %v1279 = vrot.slane %v1278, 2
        %v1280 = vadd.f32 %v1278, %v1279
        %v1281 = vrot.slane %v1280, 1
        %v1282 = vadd.f32 %v1280, %v1281
        %v1283 = vmul.f32 %v1233, 0.0625
        %v1284 = vmul.f32 %v1240, 0.0625
        %v1285 = vmul.f32 %v1247, 0.0625
        %v1286 = vmul.f32 %v1254, 0.0625
        %v1287 = vmul.f32 %v1261, 0.0625
        %v1288 = vmul.f32 %v1268, 0.0625
        %v1289 = vmul.f32 %v1275, 0.0625
        %v1290 = vmul.f32 %v1282, 0.0625
        %v1291 = vsub.f32 %v1149, %v1283
        %v1292 = vsub.f32 %v1154, %v1283
        %v1293 = vsub.f32 %v1159, %v1284
        %v1294 = vsub.f32 %v1164, %v1284
        %v1295 = vsub.f32 %v1169, %v1285
        %v1296 = vsub.f32 %v1174, %v1285
        %v1297 = vsub.f32 %v1179, %v1286
        %v1298 = vsub.f32 %v1184, %v1286
        %v1299 = vsub.f32 %v1189, %v1287
        %v1300 = vsub.f32 %v1194, %v1287
        %v1301 = vsub.f32 %v1199, %v1288
        %v1302 = vsub.f32 %v1204, %v1288
        %v1303 = vsub.f32 %v1209, %v1289
        %v1304 = vsub.f32 %v1214, %v1289
        %v1305 = vsub.f32 %v1219, %v1290
        %v1306 = vsub.f32 %v1224, %v1290
        %v1307 = vmul.f32 %v1291, %v1291
        %v1308 = vmul.f32 %v1292, %v1292
        %v1309 = vmul.f32 %v1293, %v1293
        %v1310 = vmul.f32 %v1294, %v1294
        %v1311 = vmul.f32 %v1295, %v1295
        %v1312 = vmul.f32 %v1296, %v1296
        %v1313 = vmul.f32 %v1297, %v1297
        %v1314 = vmul.f32 %v1298, %v1298
        %v1315 = vmul.f32 %v1299, %v1299
        %v1316 = vmul.f32 %v1300, %v1300
        %v1317 = vmul.f32 %v1301, %v1301
        %v1318 = vmul.f32 %v1302, %v1302
        %v1319 = vmul.f32 %v1303, %v1303
        %v1320 = vmul.f32 %v1304, %v1304
        %v1321 = vmul.f32 %v1305, %v1305
        %v1322 = vmul.f32 %v1306, %v1306
        %v1323 = vadd.f32 %v1307, %v1308
        %v1324 = vrot.slane %v1323, 4
        %v1325 = vadd.f32 %v1323, %v1324
        %v1326 = vrot.slane %v1325, 2
        %v1327 = vadd.f32 %v1325, %v1326
        %v1328 = vrot.slane %v1327, 1
        %v1329 = vadd.f32 %v1327, %v1328
        %v1330 = vadd.f32 %v1309, %v1310
        %v1331 = vrot.slane %v1330, 4
        %v1332 = vadd.f32 %v1330, %v1331
        %v1333 = vrot.slane %v1332, 2
        %v1334 = vadd.f32 %v1332, %v1333
        %v1335 = vrot.slane %v1334, 1
        %v1336 = vadd.f32 %v1334, %v1335
        %v1337 = vadd.f32 %v1311, %v1312
        %v1338 = vrot.slane %v1337, 4
        %v1339 = vadd.f32 %v1337, %v1338
        %v1340 = vrot.slane %v1339, 2
        %v1341 = vadd.f32 %v1339, %v1340
        %v1342 = vrot.slane %v1341, 1
        %v1343 = vadd.f32 %v1341, %v1342
        %v1344 = vadd.f32 %v1313, %v1314
        %v1345 = vrot.slane %v1344, 4
        %v1346 = vadd.f32 %v1344, %v1345
        %v1347 = vrot.slane %v1346, 2
        %v1348 = vadd.f32 %v1346, %v1347
        %v1349 = vrot.slane %v1348, 1
        %v1350 = vadd.f32 %v1348, %v1349
        %v1351 = vadd.f32 %v1315, %v1316
        %v1352 = vrot.slane %v1351, 4
        %v1353 = vadd.f32 %v1351, %v1352
        %v1354 = vrot.slane %v1353, 2
        %v1355 = vadd.f32 %v1353, %v1354
        %v1356 = vrot.slane %v1355, 1
        %v1357 = vadd.f32 %v1355, %v1356
        %v1358 = vadd.f32 %v1317, %v1318
        %v1359 = vrot.slane %v1358, 4
        %v1360 = vadd.f32 %v1358, %v1359
        %v1361 = vrot.slane %v1360, 2
        %v1362 = vadd.f32 %v1360, %v1361
        %v1363 = vrot.slane %v1362, 1
        %v1364 = vadd.f32 %v1362, %v1363
        %v1365 = vadd.f32 %v1319, %v1320
        %v1366 = vrot.slane %v1365, 4
        %v1367 = vadd.f32 %v1365, %v1366
        %v1368 = vrot.slane %v1367, 2
        %v1369 = vadd.f32 %v1367, %v1368
        %v1370 = vrot.slane %v1369, 1
        %v1371 = vadd.f32 %v1369, %v1370
        %v1372 = vadd.f32 %v1321, %v1322
        %v1373 = vrot.slane %v1372, 4
        %v1374 = vadd.f32 %v1372, %v1373
        %v1375 = vrot.slane %v1374, 2
        %v1376 = vadd.f32 %v1374, %v1375
        %v1377 = vrot.slane %v1376, 1
        %v1378 = vadd.f32 %v1376, %v1377
        %v1379 = vmul.f32 %v1329, 0.0625
        %v1380 = vmul.f32 %v1336, 0.0625
        %v1381 = vmul.f32 %v1343, 0.0625
        %v1382 = vmul.f32 %v1350, 0.0625
        %v1383 = vmul.f32 %v1357, 0.0625
        %v1384 = vmul.f32 %v1364, 0.0625
        %v1385 = vmul.f32 %v1371, 0.0625
        %v1386 = vmul.f32 %v1378, 0.0625
        %v1387 = vadd.f32 %v1379, 1e-05
        %v1388 = vadd.f32 %v1380, 1e-05
        %v1389 = vadd.f32 %v1381, 1e-05
        %v1390 = vadd.f32 %v1382, 1e-05
        %v1391 = vadd.f32 %v1383, 1e-05
        %v1392 = vadd.f32 %v1384, 1e-05
        %v1393 = vadd.f32 %v1385, 1e-05
        %v1394 = vadd.f32 %v1386, 1e-05
        %v1395 = vrsqrt.pop %v1387
        %v1396 = vrsqrt.pop %v1388
        %v1397 = vrsqrt.pop %v1389
        %v1398 = vrsqrt.pop %v1390
        %v1399 = vrsqrt.pop %v1391
        %v1400 = vrsqrt.pop %v1392
        %v1401 = vrsqrt.pop %v1393
        %v1402 = vrsqrt.pop %v1394
        %v1403 = vmul.f32 %v456, %v1395
        %v1404 = vmul.f32 %v456, %v1396
        %v1405 = vmul.f32 %v456, %v1397
        %v1406 = vmul.f32 %v456, %v1398
        %v1407 = vmul.f32 %v456, %v1399
        %v1408 = vmul.f32 %v456, %v1400
        %v1409 = vmul.f32 %v456, %v1401
        %v1410 = vmul.f32 %v456, %v1402
        %v1411 = vlaneseq
        %v1412 = vshrl.u32 %v1411, 7
        %v1413 = vsub.s32 2, %v1412
        %v1414 = vrot.slane %v1403, %v1413
        %v1415 = vlaneseq
        %v1416 = vshrl.u32 %v1415, 7
        %v1417 = vsub.s32 2, %v1416
        %v1418 = vrot.slane %v1404, %v1417
        %v1419 = vlaneseq
        %v1420 = vshrl.u32 %v1419, 7
        %v1421 = vsub.s32 2, %v1420
        %v1422 = vrot.slane %v1405, %v1421
        %v1423 = vlaneseq
        %v1424 = vshrl.u32 %v1423, 7
        %v1425 = vsub.s32 2, %v1424
        %v1426 = vrot.slane %v1406, %v1425
        %v1427 = vlaneseq
        %v1428 = vshrl.u32 %v1427, 7
        %v1429 = vsub.s32 2, %v1428
        %v1430 = vrot.slane %v1407, %v1429
        %v1431 = vlaneseq
        %v1432 = vshrl.u32 %v1431, 7
        %v1433 = vsub.s32 2, %v1432
        %v1434 = vrot.slane %v1408, %v1433
        %v1435 = vlaneseq
        %v1436 = vshrl.u32 %v1435, 7
        %v1437 = vsub.s32 2, %v1436
        %v1438 = vrot.slane %v1409, %v1437
        %v1439 = vlaneseq
        %v1440 = vshrl.u32 %v1439, 7
        %v1441 = vsub.s32 2, %v1440
        %v1442 = vrot.slane %v1410, %v1441
        %v1443 = vmul.f32 %v1291, %v1414
        %v1444 = vmul.f32 %v1292, %v1414
        %v1445 = vmul.f32 %v1293, %v1418
        %v1446 = vmul.f32 %v1294, %v1418
        %v1447 = vmul.f32 %v1295, %v1422
        %v1448 = vmul.f32 %v1296, %v1422
        %v1449 = vmul.f32 %v1297, %v1426
        %v1450 = vmul.f32 %v1298, %v1426
        %v1451 = vmul.f32 %v1299, %v1430
        %v1452 = vmul.f32 %v1300, %v1430
        %v1453 = vmul.f32 %v1301, %v1434
        %v1454 = vmul.f32 %v1302, %v1434
        %v1455 = vmul.f32 %v1303, %v1438
        %v1456 = vmul.f32 %v1304, %v1438
        %v1457 = vmul.f32 %v1305, %v1442
        %v1458 = vmul.f32 %v1306, %v1442
        %v1459 = vlaneseq
        %v1460 = vshrl.u32 %v1459, 7
        %v1461 = vsub.s32 3, %v1460
        %v1462 = vrot.slane %v456, %v1461
        %v1463 = vadd.f32 %v1443, %v1462
        %v1464 = vadd.f32 %v1444, %v1462
        %v1465 = vadd.f32 %v1445, %v1462
        %v1466 = vadd.f32 %v1446, %v1462
        %v1467 = vadd.f32 %v1447, %v1462
        %v1468 = vadd.f32 %v1448, %v1462
        %v1469 = vadd.f32 %v1449, %v1462
        %v1470 = vadd.f32 %v1450, %v1462
        %v1471 = vadd.f32 %v1451, %v1462
        %v1472 = vadd.f32 %v1452, %v1462
        %v1473 = vadd.f32 %v1453, %v1462
        %v1474 = vadd.f32 %v1454, %v1462
        %v1475 = vadd.f32 %v1455, %v1462
        %v1476 = vadd.f32 %v1456, %v1462
        %v1477 = vadd.f32 %v1457, %v1462
        %v1478 = vadd.f32 %v1458, %v1462
        %v1479 = vmax.f32 %v1463, 0.0
        %v1480 = vmax.f32 %v1464, 0.0
        %v1481 = vmax.f32 %v1465, 0.0
        %v1482 = vmax.f32 %v1466, 0.0
        %v1483 = vmax.f32 %v1467, 0.0
        %v1484 = vmax.f32 %v1468, 0.0
        %v1485 = vmax.f32 %v1469, 0.0
        %v1486 = vmax.f32 %v1470, 0.0
        %v1487 = vmax.f32 %v1471, 0.0
        %v1488 = vmax.f32 %v1472, 0.0
        %v1489 = vmax.f32 %v1473, 0.0
        %v1490 = vmax.f32 %v1474, 0.0
        %v1491 = vmax.f32 %v1475, 0.0
        %v1492 = vmax.f32 %v1476, 0.0
        %v1493 = vmax.f32 %v1477, 0.0
        %v1494 = vmax.f32 %v1478, 0.0
        %1495 = vst [vmem:[%s411] sm:$0xff] %v1479
        %1496 = vst [vmem:[%s411 + $0x18] sm:$0xff] %v1480
        %1497 = vst [vmem:[%s411 + $0x30] sm:$0xff] %v1481
        %1498 = vst [vmem:[%s411 + $0x48] sm:$0xff] %v1482
        %1499 = vst [vmem:[%s411 + $0x60] sm:$0xff] %v1483
        %1500 = vst [vmem:[%s411 + $0x78] sm:$0xff] %v1484
        %1501 = vst [vmem:[%s411 + $0x90] sm:$0xff] %v1485
        %1502 = vst [vmem:[%s411 + $0xa8] sm:$0xff] %v1486
        %1503 = vst [vmem:[%s411 + $0xc0] sm:$0xff] %v1487
        %1504 = vst [vmem:[%s411 + $0xd8] sm:$0xff] %v1488
        %1505 = vst [vmem:[%s411 + $0xf0] sm:$0xff] %v1489
        %1506 = vst [vmem:[%s411 + $0x108] sm:$0xff] %v1490
        %1507 = vst [vmem:[%s411 + $0x120] sm:$0xff] %v1491
        %1508 = vst [vmem:[%s411 + $0x138] sm:$0xff] %v1492
        %1509 = vst [vmem:[%s411 + $0x150] sm:$0xff] %v1493
        %1510 = vst [vmem:[%s411 + $0x168] sm:$0xff] %v1494
        %1511 = vmatprep.subr.mxu0 0.0
        %1512 = vmatpush1.msra.mxu0 %v1479
        %1513 = vmatprep.subr.mxu0 0.0
        %1514 = vmatpush1.msra.mxu0 %v1480
        %1515 = vmatprep.subr.mxu0 0.0
        %1516 = vmatpush1.msra.mxu0 %v1481
        %1517 = vmatprep.subr.mxu0 0.0
        %1518 = vmatpush1.msra.mxu0 %v1482
        %1519 = vmatprep.subr.mxu0 0.0
        %1520 = vmatpush1.msra.mxu0 %v1483
        %1521 = vmatprep.subr.mxu0 0.0
        %1522 = vmatpush1.msra.mxu0 %v1484
        %1523 = vmatprep.subr.mxu0 0.0
        %1524 = vmatpush1.msra.mxu0 %v1485
        %1525 = vmatprep.subr.mxu0 0.0
        %1526 = vmatpush1.msra.mxu0 %v1486
        %1527 = vmatprep.subr.mxu0 0.0
        %1528 = vmatpush1.msra.mxu0 %v1487
        %1529 = vmatprep.subr.mxu0 0.0
        %1530 = vmatpush1.msra.mxu0 %v1488
        %1531 = vmatprep.subr.mxu0 0.0
        %1532 = vmatpush1.msra.mxu0 %v1489
        %1533 = vmatprep.subr.mxu0 0.0
        %1534 = vmatpush1.msra.mxu0 %v1490
        %1535 = vmatprep.subr.mxu0 0.0
        %1536 = vmatpush1.msra.mxu0 %v1491
        %1537 = vmatprep.subr.mxu0 0.0
        %1538 = vmatpush1.msra.mxu0 %v1492
        %1539 = vmatprep.subr.mxu0 0.0
        %1540 = vmatpush1.msra.mxu0 %v1493
        %1541 = vmatprep.subr.mxu0 0.0
        %1542 = vmatpush1.msra.mxu0 %v1494
        %1543 = vmatprep.subr.mxu0 0.0
        %1544 = vmatpush1.msra.mxu0 0.0
        %1545 = vmatprep.subr.mxu0 0.0
        %1546 = vmatpush1.msra.mxu0 0.0
        %1547 = vmatprep.subr.mxu0 0.0
        %1548 = vmatpush1.msra.mxu0 0.0
        %1549 = vmatprep.subr.mxu0 0.0
        %1550 = vmatpush1.msra.mxu0 0.0
        %1551 = vmatprep.subr.mxu0 0.0
        %1552 = vmatpush1.msra.mxu0 0.0
        %1553 = vmatprep.subr.mxu0 0.0
        %1554 = vmatpush1.msra.mxu0 0.0
        %1555 = vmatprep.subr.mxu0 0.0
        %1556 = vmatpush1.msra.mxu0 0.0
        %1557 = vmatprep.subr.mxu0 0.0
        %1558 = vmatpush1.msra.mxu0 0.0
        %1559 = vmatprep.subr.mxu0 0.0
        %1560 = vmatpush1.msra.mxu0 0.0
        %1561 = vmatprep.subr.mxu0 0.0
        %1562 = vmatpush1.msra.mxu0 0.0
        %1563 = vmatprep.subr.mxu0 0.0
        %1564 = vmatpush1.msra.mxu0 0.0
        %1565 = vmatprep.subr.mxu0 0.0
        %1566 = vmatpush1.msra.mxu0 0.0
        %1567 = vmatprep.subr.mxu0 0.0
        %1568 = vmatpush1.msra.mxu0 0.0
        %1569 = vmatprep.subr.mxu0 0.0
        %1570 = vmatpush1.msra.mxu0 0.0
        %1571 = vmatprep.subr.mxu0 0.0
        %1572 = vmatpush1.msra.mxu0 0.0
        %1573 = vmatprep.subr.mxu0 0.0
        %1574 = vmatpush1.msra.mxu0 0.0
        %1575 = vmatprep.mubr.f32.mxu0 0.0
        %1576 = vmatmul.mubr.f32.gmra.mrb[0].mxu0 %v454
        %v1577 = vpop.f32.mrb[0].mxu0
        %v1578 = vadd.f32 0.0, %v1577
        %v1579 = vpop.f32.mrb[0].mxu0
        %1580 = vmatprep.mubr.f32.mxu0 0.0
        %1581 = vmatmul.mubr.f32.gmra.mrb[0].mxu0 %v455
        %v1582 = vpop.f32.mrb[0].mxu0
        %v1583 = vadd.f32 0.0, %v1582
        %v1584 = vpop.f32.mrb[0].mxu0
        %1585 = vdwg.mxu0
        %1586 = vst [vmem:[%s418] sm:$0xff] %v1578
        %1587 = vst [vmem:[%s418 + $0x18] sm:$0xff] %v1583
        %s1588 = sld [smem:[#allocation3 + $0x1]]
        %v1589 = vstv %s1588
        %v1590 = vmul.f32 %v1589, %v1479
        %v1591 = vmul.f32 %v1589, %v1480
        %v1592 = vmul.f32 %v1589, %v1481
        %v1593 = vmul.f32 %v1589, %v1482
        %v1594 = vmul.f32 %v1589, %v1483
        %v1595 = vmul.f32 %v1589, %v1484
        %v1596 = vmul.f32 %v1589, %v1485
        %v1597 = vmul.f32 %v1589, %v1486
        %v1598 = vmul.f32 %v1589, %v1487
        %v1599 = vmul.f32 %v1589, %v1488
        %v1600 = vmul.f32 %v1589, %v1489
        %v1601 = vmul.f32 %v1589, %v1490
        %v1602 = vmul.f32 %v1589, %v1491
        %v1603 = vmul.f32 %v1589, %v1492
        %v1604 = vmul.f32 %v1589, %v1493
        %v1605 = vmul.f32 %v1589, %v1494
        %1606 = vmatprep.subr.mxu0 0.0
        %1607 = vmatpush1.msra.mxu0 %v1479
        %1608 = vmatprep.subr.mxu0 0.0
        %1609 = vmatpush1.msra.mxu0 %v1480
        %1610 = vmatprep.subr.mxu0 0.0
        %1611 = vmatpush1.msra.mxu0 %v1481
        %1612 = vmatprep.subr.mxu0 0.0
        %1613 = vmatpush1.msra.mxu0 %v1482
        %1614 = vmatprep.subr.mxu0 0.0
        %1615 = vmatpush1.msra.mxu0 %v1483
        %1616 = vmatprep.subr.mxu0 0.0
        %1617 = vmatpush1.msra.mxu0 %v1484
        %1618 = vmatprep.subr.mxu0 0.0
        %1619 = vmatpush1.msra.mxu0 %v1485
        %1620 = vmatprep.subr.mxu0 0.0
        %1621 = vmatpush1.msra.mxu0 %v1486
        %1622 = vmatprep.subr.mxu0 0.0
        %1623 = vmatpush1.msra.mxu0 %v1487
        %1624 = vmatprep.subr.mxu0 0.0
        %1625 = vmatpush1.msra.mxu0 %v1488
        %1626 = vmatprep.subr.mxu0 0.0
        %1627 = vmatpush1.msra.mxu0 %v1489
        %1628 = vmatprep.subr.mxu0 0.0
        %1629 = vmatpush1.msra.mxu0 %v1490
        %1630 = vmatprep.subr.mxu0 0.0
        %1631 = vmatpush1.msra.mxu0 %v1491
        %1632 = vmatprep.subr.mxu0 0.0
        %1633 = vmatpush1.msra.mxu0 %v1492
        %1634 = vmatprep.subr.mxu0 0.0
        %1635 = vmatpush1.msra.mxu0 %v1493
        %1636 = vmatprep.subr.mxu0 0.0
        %1637 = vmatpush1.msra.mxu0 %v1494
        %1638 = vmatprep.subr.mxu0 0.0
        %1639 = vmatpush1.msra.mxu0 0.0
        %1640 = vmatprep.subr.mxu0 0.0
        %1641 = vmatpush1.msra.mxu0 0.0
        %1642 = vmatprep.subr.mxu0 0.0
        %1643 = vmatpush1.msra.mxu0 0.0
        %1644 = vmatprep.subr.mxu0 0.0
        %1645 = vmatpush1.msra.mxu0 0.0
        %1646 = vmatprep.subr.mxu0 0.0
        %1647 = vmatpush1.msra.mxu0 0.0
        %1648 = vmatprep.subr.mxu0 0.0
        %1649 = vmatpush1.msra.mxu0 0.0
        %1650 = vmatprep.subr.mxu0 0.0
        %1651 = vmatpush1.msra.mxu0 0.0
        %1652 = vmatprep.subr.mxu0 0.0
        %1653 = vmatpush1.msra.mxu0 0.0
        %1654 = vmatprep.subr.mxu0 0.0
        %1655 = vmatpush1.msra.mxu0 0.0
        %1656 = vmatprep.subr.mxu0 0.0
        %1657 = vmatpush1.msra.mxu0 0.0
        %1658 = vmatprep.subr.mxu0 0.0
        %1659 = vmatpush1.msra.mxu0 0.0
        %1660 = vmatprep.subr.mxu0 0.0
        %1661 = vmatpush1.msra.mxu0 0.0
        %1662 = vmatprep.subr.mxu0 0.0
        %1663 = vmatpush1.msra.mxu0 0.0
        %1664 = vmatprep.subr.mxu0 0.0
        %1665 = vmatpush1.msra.mxu0 0.0
        %1666 = vmatprep.subr.mxu0 0.0
        %1667 = vmatpush1.msra.mxu0 0.0
        %1668 = vmatprep.subr.mxu0 0.0
        %1669 = vmatpush1.msra.mxu0 0.0
        %1670 = vmatprep.mubr.f32.mxu0 0.0
        %1671 = vmatmul.mubr.f32.gmra.mrb[0].mxu0 %v438
        %v1672 = vpop.f32.mrb[0].mxu0
        %v1673 = vadd.f32 0.0, %v1672
        %v1674 = vpop.f32.mrb[0].mxu0
        %1675 = vmatprep.mubr.f32.mxu0 0.0
        %1676 = vmatmul.mubr.f32.gmra.mrb[0].mxu0 %v439
        %v1677 = vpop.f32.mrb[0].mxu0
        %v1678 = vadd.f32 0.0, %v1677
        %v1679 = vpop.f32.mrb[0].mxu0
        %1680 = vmatprep.mubr.f32.mxu0 0.0
        %1681 = vmatmul.mubr.f32.gmra.mrb[0].mxu0 %v440
        %v1682 = vpop.f32.mrb[0].mxu0
        %v1683 = vadd.f32 0.0, %v1682
        %v1684 = vpop.f32.mrb[0].mxu0
        %1685 = vmatprep.mubr.f32.mxu0 0.0
        %1686 = vmatmul.mubr.f32.gmra.mrb[0].mxu0 %v441
        %v1687 = vpop.f32.mrb[0].mxu0
        %v1688 = vadd.f32 0.0, %v1687
        %v1689 = vpop.f32.mrb[0].mxu0
        %1690 = vmatprep.mubr.f32.mxu0 0.0
        %1691 = vmatmul.mubr.f32.gmra.mrb[0].mxu0 %v442
        %v1692 = vpop.f32.mrb[0].mxu0
        %v1693 = vadd.f32 0.0, %v1692
        %v1694 = vpop.f32.mrb[0].mxu0
        %1695 = vmatprep.mubr.f32.mxu0 0.0
        %1696 = vmatmul.mubr.f32.gmra.mrb[0].mxu0 %v443
        %v1697 = vpop.f32.mrb[0].mxu0
        %v1698 = vadd.f32 0.0, %v1697
        %v1699 = vpop.f32.mrb[0].mxu0
        %1700 = vmatprep.mubr.f32.mxu0 0.0
        %1701 = vmatmul.mubr.f32.gmra.mrb[0].mxu0 %v444
        %v1702 = vpop.f32.mrb[0].mxu0
        %v1703 = vadd.f32 0.0, %v1702
        %v1704 = vpop.f32.mrb[0].mxu0
        %1705 = vmatprep.mubr.f32.mxu0 0.0
        %1706 = vmatmul.mubr.f32.gmra.mrb[0].mxu0 %v445
        %v1707 = vpop.f32.mrb[0].mxu0
        %v1708 = vadd.f32 0.0, %v1707
        %v1709 = vpop.f32.mrb[0].mxu0
        %1710 = vmatprep.mubr.f32.mxu0 0.0
        %1711 = vmatmul.mubr.f32.gmra.mrb[0].mxu0 %v446
        %v1712 = vpop.f32.mrb[0].mxu0
        %v1713 = vadd.f32 0.0, %v1712
        %v1714 = vpop.f32.mrb[0].mxu0
        %1715 = vmatprep.mubr.f32.mxu0 0.0
        %1716 = vmatmul.mubr.f32.gmra.mrb[0].mxu0 %v447
        %v1717 = vpop.f32.mrb[0].mxu0
        %v1718 = vadd.f32 0.0, %v1717
        %v1719 = vpop.f32.mrb[0].mxu0
        %1720 = vmatprep.mubr.f32.mxu0 0.0
        %1721 = vmatmul.mubr.f32.gmra.mrb[0].mxu0 %v448
        %v1722 = vpop.f32.mrb[0].mxu0
        %v1723 = vadd.f32 0.0, %v1722
        %v1724 = vpop.f32.mrb[0].mxu0
        %1725 = vmatprep.mubr.f32.mxu0 0.0
        %1726 = vmatmul.mubr.f32.gmra.mrb[0].mxu0 %v449
        %v1727 = vpop.f32.mrb[0].mxu0
        %v1728 = vadd.f32 0.0, %v1727
        %v1729 = vpop.f32.mrb[0].mxu0
        %1730 = vmatprep.mubr.f32.mxu0 0.0
        %1731 = vmatmul.mubr.f32.gmra.mrb[0].mxu0 %v450
        %v1732 = vpop.f32.mrb[0].mxu0
        %v1733 = vadd.f32 0.0, %v1732
        %v1734 = vpop.f32.mrb[0].mxu0
        %1735 = vmatprep.mubr.f32.mxu0 0.0
        %1736 = vmatmul.mubr.f32.gmra.mrb[0].mxu0 %v451
        %v1737 = vpop.f32.mrb[0].mxu0
        %v1738 = vadd.f32 0.0, %v1737
        %v1739 = vpop.f32.mrb[0].mxu0
        %1740 = vmatprep.mubr.f32.mxu0 0.0
        %1741 = vmatmul.mubr.f32.gmra.mrb[0].mxu0 %v452
        %v1742 = vpop.f32.mrb[0].mxu0
        %v1743 = vadd.f32 0.0, %v1742
        %v1744 = vpop.f32.mrb[0].mxu0
        %1745 = vmatprep.mubr.f32.mxu0 0.0
        %1746 = vmatmul.mubr.f32.gmra.mrb[0].mxu0 %v453
        %v1747 = vpop.f32.mrb[0].mxu0
        %v1748 = vadd.f32 0.0, %v1747
        %v1749 = vpop.f32.mrb[0].mxu0
        %1750 = vdwg.mxu0
        %v1751 = vadd.f32 %v1590, %v1673
        %v1752 = vadd.f32 %v1591, %v1678
        %v1753 = vadd.f32 %v1592, %v1683
        %v1754 = vadd.f32 %v1593, %v1688
        %v1755 = vadd.f32 %v1594, %v1693
        %v1756 = vadd.f32 %v1595, %v1698
        %v1757 = vadd.f32 %v1596, %v1703
        %v1758 = vadd.f32 %v1597, %v1708
        %v1759 = vadd.f32 %v1598, %v1713
        %v1760 = vadd.f32 %v1599, %v1718
        %v1761 = vadd.f32 %v1600, %v1723
        %v1762 = vadd.f32 %v1601, %v1728
        %v1763 = vadd.f32 %v1602, %v1733
        %v1764 = vadd.f32 %v1603, %v1738
        %v1765 = vadd.f32 %v1604, %v1743
        %v1766 = vadd.f32 %v1605, %v1748
        %s1767 = scalar_lea.vmem [#allocation10], 128
        %v1768 = vld [vmem:[%s1767] sm:$0xff]
        %v1769 = vld [vmem:[%s1767 + $0x8] sm:$0xff]
        %v1770 = vld [vmem:[%s1767 + $0x10] sm:$0xff]
        %v1771 = vld [vmem:[%s1767 + $0x18] sm:$0xff]
        %v1772 = vld [vmem:[%s1767 + $0x20] sm:$0xff]
        %v1773 = vld [vmem:[%s1767 + $0x28] sm:$0xff]
        %v1774 = vld [vmem:[%s1767 + $0x30] sm:$0xff]
        %v1775 = vld [vmem:[%s1767 + $0x38] sm:$0xff]
        %v1776 = vld [vmem:[%s1767 + $0x40] sm:$0xff]
        %v1777 = vld [vmem:[%s1767 + $0x48] sm:$0xff]
        %v1778 = vld [vmem:[%s1767 + $0x50] sm:$0xff]
        %v1779 = vld [vmem:[%s1767 + $0x58] sm:$0xff]
        %v1780 = vld [vmem:[%s1767 + $0x60] sm:$0xff]
        %v1781 = vld [vmem:[%s1767 + $0x68] sm:$0xff]
        %v1782 = vld [vmem:[%s1767 + $0x70] sm:$0xff]
        %v1783 = vld [vmem:[%s1767 + $0x78] sm:$0xff]
        %1784 = vmatprep.subr.mxu0 0.0
        %1785 = vmatpush1.msra.mxu0 %v1768
        %1786 = vmatprep.subr.mxu0 0.0
        %1787 = vmatpush1.msra.mxu0 %v1769
        %1788 = vmatprep.subr.mxu0 0.0
        %1789 = vmatpush1.msra.mxu0 %v1770
        %1790 = vmatprep.subr.mxu0 0.0
        %1791 = vmatpush1.msra.mxu0 %v1771
        %1792 = vmatprep.subr.mxu0 0.0
        %1793 = vmatpush1.msra.mxu0 %v1772
        %1794 = vmatprep.subr.mxu0 0.0
        %1795 = vmatpush1.msra.mxu0 %v1773
        %1796 = vmatprep.subr.mxu0 0.0
        %1797 = vmatpush1.msra.mxu0 %v1774
        %1798 = vmatprep.subr.mxu0 0.0
        %1799 = vmatpush1.msra.mxu0 %v1775
        %1800 = vmatprep.subr.mxu0 0.0
        %1801 = vmatpush1.msra.mxu0 %v1776
        %1802 = vmatprep.subr.mxu0 0.0
        %1803 = vmatpush1.msra.mxu0 %v1777
        %1804 = vmatprep.subr.mxu0 0.0
        %1805 = vmatpush1.msra.mxu0 %v1778
        %1806 = vmatprep.subr.mxu0 0.0
        %1807 = vmatpush1.msra.mxu0 %v1779
        %1808 = vmatprep.subr.mxu0 0.0
        %1809 = vmatpush1.msra.mxu0 %v1780
        %1810 = vmatprep.subr.mxu0 0.0
        %1811 = vmatpush1.msra.mxu0 %v1781
        %1812 = vmatprep.subr.mxu0 0.0
        %1813 = vmatpush1.msra.mxu0 %v1782
        %1814 = vmatprep.subr.mxu0 0.0
        %1815 = vmatpush1.msra.mxu0 %v1783
        %1816 = vmatprep.subr.mxu0 0.0
        %1817 = vmatpush1.msra.mxu0 0.0
        %1818 = vmatprep.subr.mxu0 0.0
        %1819 = vmatpush1.msra.mxu0 0.0
        %1820 = vmatprep.subr.mxu0 0.0
        %1821 = vmatpush1.msra.mxu0 0.0
        %1822 = vmatprep.subr.mxu0 0.0
        %1823 = vmatpush1.msra.mxu0 0.0
        %1824 = vmatprep.subr.mxu0 0.0
        %1825 = vmatpush1.msra.mxu0 0.0
        %1826 = vmatprep.subr.mxu0 0.0
        %1827 = vmatpush1.msra.mxu0 0.0
        %1828 = vmatprep.subr.mxu0 0.0
        %1829 = vmatpush1.msra.mxu0 0.0
        %1830 = vmatprep.subr.mxu0 0.0
        %1831 = vmatpush1.msra.mxu0 0.0
        %1832 = vmatprep.subr.mxu0 0.0
        %1833 = vmatpush1.msra.mxu0 0.0
        %1834 = vmatprep.subr.mxu0 0.0
        %1835 = vmatpush1.msra.mxu0 0.0
        %1836 = vmatprep.subr.mxu0 0.0
        %1837 = vmatpush1.msra.mxu0 0.0
        %1838 = vmatprep.subr.mxu0 0.0
        %1839 = vmatpush1.msra.mxu0 0.0
        %1840 = vmatprep.subr.mxu0 0.0
        %1841 = vmatpush1.msra.mxu0 0.0
        %1842 = vmatprep.subr.mxu0 0.0
        %1843 = vmatpush1.msra.mxu0 0.0
        %1844 = vmatprep.subr.mxu0 0.0
        %1845 = vmatpush1.msra.mxu0 0.0
        %1846 = vmatprep.subr.mxu0 0.0
        %1847 = vmatpush1.msra.mxu0 0.0
        %1848 = vmatprep.mubr.f32.mxu0 0.0
        %1849 = vmatmul.mubr.f32.gmra.mrb[0].mxu0 %v1751
        %v1850 = vpop.f32.mrb[0].mxu0
        %v1851 = vadd.f32 0.0, %v1850
        %v1852 = vpop.f32.mrb[0].mxu0
        %1853 = vmatprep.mubr.f32.mxu0 0.0
        %1854 = vmatmul.mubr.f32.gmra.mrb[0].mxu0 %v1752
        %v1855 = vpop.f32.mrb[0].mxu0
        %v1856 = vadd.f32 0.0, %v1855
        %v1857 = vpop.f32.mrb[0].mxu0
        %1858 = vmatprep.mubr.f32.mxu0 0.0
        %1859 = vmatmul.mubr.f32.gmra.mrb[0].mxu0 %v1753
        %v1860 = vpop.f32.mrb[0].mxu0
        %v1861 = vadd.f32 0.0, %v1860
        %v1862 = vpop.f32.mrb[0].mxu0
        %1863 = vmatprep.mubr.f32.mxu0 0.0
        %1864 = vmatmul.mubr.f32.gmra.mrb[0].mxu0 %v1754
        %v1865 = vpop.f32.mrb[0].mxu0
        %v1866 = vadd.f32 0.0, %v1865
        %v1867 = vpop.f32.mrb[0].mxu0
        %1868 = vmatprep.mubr.f32.mxu0 0.0
        %1869 = vmatmul.mubr.f32.gmra.mrb[0].mxu0 %v1755
        %v1870 = vpop.f32.mrb[0].mxu0
        %v1871 = vadd.f32 0.0, %v1870
        %v1872 = vpop.f32.mrb[0].mxu0
        %1873 = vmatprep.mubr.f32.mxu0 0.0
        %1874 = vmatmul.mubr.f32.gmra.mrb[0].mxu0 %v1756
        %v1875 = vpop.f32.mrb[0].mxu0
        %v1876 = vadd.f32 0.0, %v1875
        %v1877 = vpop.f32.mrb[0].mxu0
        %1878 = vmatprep.mubr.f32.mxu0 0.0
        %1879 = vmatmul.mubr.f32.gmra.mrb[0].mxu0 %v1757
        %v1880 = vpop.f32.mrb[0].mxu0
        %v1881 = vadd.f32 0.0, %v1880
        %v1882 = vpop.f32.mrb[0].mxu0
        %1883 = vmatprep.mubr.f32.mxu0 0.0
        %1884 = vmatmul.mubr.f32.gmra.mrb[0].mxu0 %v1758
        %v1885 = vpop.f32.mrb[0].mxu0
        %v1886 = vadd.f32 0.0, %v1885
        %v1887 = vpop.f32.mrb[0].mxu0
        %1888 = vmatprep.mubr.f32.mxu0 0.0
        %1889 = vmatmul.mubr.f32.gmra.mrb[0].mxu0 %v1759
        %v1890 = vpop.f32.mrb[0].mxu0
        %v1891 = vadd.f32 0.0, %v1890
        %v1892 = vpop.f32.mrb[0].mxu0
        %1893 = vmatprep.mubr.f32.mxu0 0.0
        %1894 = vmatmul.mubr.f32.gmra.mrb[0].mxu0 %v1760
        %v1895 = vpop.f32.mrb[0].mxu0
        %v1896 = vadd.f32 0.0, %v1895
        %v1897 = vpop.f32.mrb[0].mxu0
        %1898 = vmatprep.mubr.f32.mxu0 0.0
        %1899 = vmatmul.mubr.f32.gmra.mrb[0].mxu0 %v1761
        %v1900 = vpop.f32.mrb[0].mxu0
        %v1901 = vadd.f32 0.0, %v1900
        %v1902 = vpop.f32.mrb[0].mxu0
        %1903 = vmatprep.mubr.f32.mxu0 0.0
        %1904 = vmatmul.mubr.f32.gmra.mrb[0].mxu0 %v1762
        %v1905 = vpop.f32.mrb[0].mxu0
        %v1906 = vadd.f32 0.0, %v1905
        %v1907 = vpop.f32.mrb[0].mxu0
        %1908 = vmatprep.mubr.f32.mxu0 0.0
        %1909 = vmatmul.mubr.f32.gmra.mrb[0].mxu0 %v1763
        %v1910 = vpop.f32.mrb[0].mxu0
        %v1911 = vadd.f32 0.0, %v1910
        %v1912 = vpop.f32.mrb[0].mxu0
        %1913 = vmatprep.mubr.f32.mxu0 0.0
        %1914 = vmatmul.mubr.f32.gmra.mrb[0].mxu0 %v1764
        %v1915 = vpop.f32.mrb[0].mxu0
        %v1916 = vadd.f32 0.0, %v1915
        %v1917 = vpop.f32.mrb[0].mxu0
        %1918 = vmatprep.mubr.f32.mxu0 0.0
        %1919 = vmatmul.mubr.f32.gmra.mrb[0].mxu0 %v1765
        %v1920 = vpop.f32.mrb[0].mxu0
        %v1921 = vadd.f32 0.0, %v1920
        %v1922 = vpop.f32.mrb[0].mxu0
        %1923 = vmatprep.mubr.f32.mxu0 0.0
        %1924 = vmatmul.mubr.f32.gmra.mrb[0].mxu0 %v1766
        %v1925 = vpop.f32.mrb[0].mxu0
        %v1926 = vadd.f32 0.0, %v1925
        %v1927 = vpop.f32.mrb[0].mxu0
        %1928 = vdwg.mxu0
        %v1929 = vadd.f32 %v1851, %v1856
        %v1930 = vrot.slane %v1929, 4
        %v1931 = vadd.f32 %v1929, %v1930
        %v1932 = vrot.slane %v1931, 2
        %v1933 = vadd.f32 %v1931, %v1932
        %v1934 = vrot.slane %v1933, 1
        %v1935 = vadd.f32 %v1933, %v1934
        %v1936 = vadd.f32 %v1861, %v1866
        %v1937 = vrot.slane %v1936, 4
        %v1938 = vadd.f32 %v1936, %v1937
        %v1939 = vrot.slane %v1938, 2
        %v1940 = vadd.f32 %v1938, %v1939
        %v1941 = vrot.slane %v1940, 1
        %v1942 = vadd.f32 %v1940, %v1941
        %v1943 = vadd.f32 %v1871, %v1876
        %v1944 = vrot.slane %v1943, 4
        %v1945 = vadd.f32 %v1943, %v1944
        %v1946 = vrot.slane %v1945, 2
        %v1947 = vadd.f32 %v1945, %v1946
        %v1948 = vrot.slane %v1947, 1
        %v1949 = vadd.f32 %v1947, %v1948
        %v1950 = vadd.f32 %v1881, %v1886
        %v1951 = vrot.slane %v1950, 4
        %v1952 = vadd.f32 %v1950, %v1951
        %v1953 = vrot.slane %v1952, 2
        %v1954 = vadd.f32 %v1952, %v1953
        %v1955 = vrot.slane %v1954, 1
        %v1956 = vadd.f32 %v1954, %v1955
        %v1957 = vadd.f32 %v1891, %v1896
        %v1958 = vrot.slane %v1957, 4
        %v1959 = vadd.f32 %v1957, %v1958
        %v1960 = vrot.slane %v1959, 2
        %v1961 = vadd.f32 %v1959, %v1960
        %v1962 = vrot.slane %v1961, 1
        %v1963 = vadd.f32 %v1961, %v1962
        %v1964 = vadd.f32 %v1901, %v1906
        %v1965 = vrot.slane %v1964, 4
        %v1966 = vadd.f32 %v1964, %v1965
        %v1967 = vrot.slane %v1966, 2
        %v1968 = vadd.f32 %v1966, %v1967
        %v1969 = vrot.slane %v1968, 1
        %v1970 = vadd.f32 %v1968, %v1969
        %v1971 = vadd.f32 %v1911, %v1916
        %v1972 = vrot.slane %v1971, 4
        %v1973 = vadd.f32 %v1971, %v1972
        %v1974 = vrot.slane %v1973, 2
        %v1975 = vadd.f32 %v1973, %v1974
        %v1976 = vrot.slane %v1975, 1
        %v1977 = vadd.f32 %v1975, %v1976
        %v1978 = vadd.f32 %v1921, %v1926
        %v1979 = vrot.slane %v1978, 4
        %v1980 = vadd.f32 %v1978, %v1979
        %v1981 = vrot.slane %v1980, 2
        %v1982 = vadd.f32 %v1980, %v1981
        %v1983 = vrot.slane %v1982, 1
        %v1984 = vadd.f32 %v1982, %v1983
        %v1985 = vmul.f32 %v1935, 0.0625
        %v1986 = vmul.f32 %v1942, 0.0625
        %v1987 = vmul.f32 %v1949, 0.0625
        %v1988 = vmul.f32 %v1956, 0.0625
        %v1989 = vmul.f32 %v1963, 0.0625
        %v1990 = vmul.f32 %v1970, 0.0625
        %v1991 = vmul.f32 %v1977, 0.0625
        %v1992 = vmul.f32 %v1984, 0.0625
        %v1993 = vsub.f32 %v1851, %v1985
        %v1994 = vsub.f32 %v1856, %v1985
        %v1995 = vsub.f32 %v1861, %v1986
        %v1996 = vsub.f32 %v1866, %v1986
        %v1997 = vsub.f32 %v1871, %v1987
        %v1998 = vsub.f32 %v1876, %v1987
        %v1999 = vsub.f32 %v1881, %v1988
        %v2000 = vsub.f32 %v1886, %v1988
        %v2001 = vsub.f32 %v1891, %v1989
        %v2002 = vsub.f32 %v1896, %v1989
        %v2003 = vsub.f32 %v1901, %v1990
        %v2004 = vsub.f32 %v1906, %v1990
        %v2005 = vsub.f32 %v1911, %v1991
        %v2006 = vsub.f32 %v1916, %v1991
        %v2007 = vsub.f32 %v1921, %v1992
        %v2008 = vsub.f32 %v1926, %v1992
        %v2009 = vmul.f32 %v1993, %v1993
        %v2010 = vmul.f32 %v1994, %v1994
        %v2011 = vmul.f32 %v1995, %v1995
        %v2012 = vmul.f32 %v1996, %v1996
        %v2013 = vmul.f32 %v1997, %v1997
        %v2014 = vmul.f32 %v1998, %v1998
        %v2015 = vmul.f32 %v1999, %v1999
        %v2016 = vmul.f32 %v2000, %v2000
        %v2017 = vmul.f32 %v2001, %v2001
        %v2018 = vmul.f32 %v2002, %v2002
        %v2019 = vmul.f32 %v2003, %v2003
        %v2020 = vmul.f32 %v2004, %v2004
        %v2021 = vmul.f32 %v2005, %v2005
        %v2022 = vmul.f32 %v2006, %v2006
        %v2023 = vmul.f32 %v2007, %v2007
        %v2024 = vmul.f32 %v2008, %v2008
        %v2025 = vadd.f32 %v2009, %v2010
        %v2026 = vrot.slane %v2025, 4
        %v2027 = vadd.f32 %v2025, %v2026
        %v2028 = vrot.slane %v2027, 2
        %v2029 = vadd.f32 %v2027, %v2028
        %v2030 = vrot.slane %v2029, 1
        %v2031 = vadd.f32 %v2029, %v2030
        %v2032 = vadd.f32 %v2011, %v2012
        %v2033 = vrot.slane %v2032, 4
        %v2034 = vadd.f32 %v2032, %v2033
        %v2035 = vrot.slane %v2034, 2
        %v2036 = vadd.f32 %v2034, %v2035
        %v2037 = vrot.slane %v2036, 1
        %v2038 = vadd.f32 %v2036, %v2037
        %v2039 = vadd.f32 %v2013, %v2014
        %v2040 = vrot.slane %v2039, 4
        %v2041 = vadd.f32 %v2039, %v2040
        %v2042 = vrot.slane %v2041, 2
        %v2043 = vadd.f32 %v2041, %v2042
        %v2044 = vrot.slane %v2043, 1
        %v2045 = vadd.f32 %v2043, %v2044
        %v2046 = vadd.f32 %v2015, %v2016
        %v2047 = vrot.slane %v2046, 4
        %v2048 = vadd.f32 %v2046, %v2047
        %v2049 = vrot.slane %v2048, 2
        %v2050 = vadd.f32 %v2048, %v2049
        %v2051 = vrot.slane %v2050, 1
        %v2052 = vadd.f32 %v2050, %v2051
        %v2053 = vadd.f32 %v2017, %v2018
        %v2054 = vrot.slane %v2053, 4
        %v2055 = vadd.f32 %v2053, %v2054
        %v2056 = vrot.slane %v2055, 2
        %v2057 = vadd.f32 %v2055, %v2056
        %v2058 = vrot.slane %v2057, 1
        %v2059 = vadd.f32 %v2057, %v2058
        %v2060 = vadd.f32 %v2019, %v2020
        %v2061 = vrot.slane %v2060, 4
        %v2062 = vadd.f32 %v2060, %v2061
        %v2063 = vrot.slane %v2062, 2
        %v2064 = vadd.f32 %v2062, %v2063
        %v2065 = vrot.slane %v2064, 1
        %v2066 = vadd.f32 %v2064, %v2065
        %v2067 = vadd.f32 %v2021, %v2022
        %v2068 = vrot.slane %v2067, 4
        %v2069 = vadd.f32 %v2067, %v2068
        %v2070 = vrot.slane %v2069, 2
        %v2071 = vadd.f32 %v2069, %v2070
        %v2072 = vrot.slane %v2071, 1
        %v2073 = vadd.f32 %v2071, %v2072
        %v2074 = vadd.f32 %v2023, %v2024
        %v2075 = vrot.slane %v2074, 4
        %v2076 = vadd.f32 %v2074, %v2075
        %v2077 = vrot.slane %v2076, 2
        %v2078 = vadd.f32 %v2076, %v2077
        %v2079 = vrot.slane %v2078, 1
        %v2080 = vadd.f32 %v2078, %v2079
        %v2081 = vmul.f32 %v2031, 0.0625
        %v2082 = vmul.f32 %v2038, 0.0625
        %v2083 = vmul.f32 %v2045, 0.0625
        %v2084 = vmul.f32 %v2052, 0.0625
        %v2085 = vmul.f32 %v2059, 0.0625
        %v2086 = vmul.f32 %v2066, 0.0625
        %v2087 = vmul.f32 %v2073, 0.0625
        %v2088 = vmul.f32 %v2080, 0.0625
        %v2089 = vadd.f32 %v2081, 1e-05
        %v2090 = vadd.f32 %v2082, 1e-05
        %v2091 = vadd.f32 %v2083, 1e-05
        %v2092 = vadd.f32 %v2084, 1e-05
        %v2093 = vadd.f32 %v2085, 1e-05
        %v2094 = vadd.f32 %v2086, 1e-05
        %v2095 = vadd.f32 %v2087, 1e-05
        %v2096 = vadd.f32 %v2088, 1e-05
        %v2097 = vrsqrt.pop %v2089
        %v2098 = vrsqrt.pop %v2090
        %v2099 = vrsqrt.pop %v2091
        %v2100 = vrsqrt.pop %v2092
        %v2101 = vrsqrt.pop %v2093
        %v2102 = vrsqrt.pop %v2094
        %v2103 = vrsqrt.pop %v2095
        %v2104 = vrsqrt.pop %v2096
        %v2105 = vmul.f32 %v456, %v2097
        %v2106 = vmul.f32 %v456, %v2098
        %v2107 = vmul.f32 %v456, %v2099
        %v2108 = vmul.f32 %v456, %v2100
        %v2109 = vmul.f32 %v456, %v2101
        %v2110 = vmul.f32 %v456, %v2102
        %v2111 = vmul.f32 %v456, %v2103
        %v2112 = vmul.f32 %v456, %v2104
        %v2113 = vlaneseq
        %v2114 = vshrl.u32 %v2113, 7
        %v2115 = vsub.s32 4, %v2114
        %v2116 = vrot.slane %v2105, %v2115
        %v2117 = vlaneseq
        %v2118 = vshrl.u32 %v2117, 7
        %v2119 = vsub.s32 4, %v2118
        %v2120 = vrot.slane %v2106, %v2119
        %v2121 = vlaneseq
        %v2122 = vshrl.u32 %v2121, 7
        %v2123 = vsub.s32 4, %v2122
        %v2124 = vrot.slane %v2107, %v2123
        %v2125 = vlaneseq
        %v2126 = vshrl.u32 %v2125, 7
        %v2127 = vsub.s32 4, %v2126
        %v2128 = vrot.slane %v2108, %v2127
        %v2129 = vlaneseq
        %v2130 = vshrl.u32 %v2129, 7
        %v2131 = vsub.s32 4, %v2130
        %v2132 = vrot.slane %v2109, %v2131
        %v2133 = vlaneseq
        %v2134 = vshrl.u32 %v2133, 7
        %v2135 = vsub.s32 4, %v2134
        %v2136 = vrot.slane %v2110, %v2135
        %v2137 = vlaneseq
        %v2138 = vshrl.u32 %v2137, 7
        %v2139 = vsub.s32 4, %v2138
        %v2140 = vrot.slane %v2111, %v2139
        %v2141 = vlaneseq
        %v2142 = vshrl.u32 %v2141, 7
        %v2143 = vsub.s32 4, %v2142
        %v2144 = vrot.slane %v2112, %v2143
        %v2145 = vmul.f32 %v1993, %v2116
        %v2146 = vmul.f32 %v1994, %v2116
        %v2147 = vmul.f32 %v1995, %v2120
        %v2148 = vmul.f32 %v1996, %v2120
        %v2149 = vmul.f32 %v1997, %v2124
        %v2150 = vmul.f32 %v1998, %v2124
        %v2151 = vmul.f32 %v1999, %v2128
        %v2152 = vmul.f32 %v2000, %v2128
        %v2153 = vmul.f32 %v2001, %v2132
        %v2154 = vmul.f32 %v2002, %v2132
        %v2155 = vmul.f32 %v2003, %v2136
        %v2156 = vmul.f32 %v2004, %v2136
        %v2157 = vmul.f32 %v2005, %v2140
        %v2158 = vmul.f32 %v2006, %v2140
        %v2159 = vmul.f32 %v2007, %v2144
        %v2160 = vmul.f32 %v2008, %v2144
        %v2161 = vlaneseq
        %v2162 = vshrl.u32 %v2161, 7
        %v2163 = vsub.s32 5, %v2162
        %v2164 = vrot.slane %v456, %v2163
        %v2165 = vadd.f32 %v2145, %v2164
        %v2166 = vadd.f32 %v2146, %v2164
        %v2167 = vadd.f32 %v2147, %v2164
        %v2168 = vadd.f32 %v2148, %v2164
        %v2169 = vadd.f32 %v2149, %v2164
        %v2170 = vadd.f32 %v2150, %v2164
        %v2171 = vadd.f32 %v2151, %v2164
        %v2172 = vadd.f32 %v2152, %v2164
        %v2173 = vadd.f32 %v2153, %v2164
        %v2174 = vadd.f32 %v2154, %v2164
        %v2175 = vadd.f32 %v2155, %v2164
        %v2176 = vadd.f32 %v2156, %v2164
        %v2177 = vadd.f32 %v2157, %v2164
        %v2178 = vadd.f32 %v2158, %v2164
        %v2179 = vadd.f32 %v2159, %v2164
        %v2180 = vadd.f32 %v2160, %v2164
        %v2181 = vmax.f32 %v2165, 0.0
        %v2182 = vmax.f32 %v2166, 0.0
        %v2183 = vmax.f32 %v2167, 0.0
        %v2184 = vmax.f32 %v2168, 0.0
        %v2185 = vmax.f32 %v2169, 0.0
        %v2186 = vmax.f32 %v2170, 0.0
        %v2187 = vmax.f32 %v2171, 0.0
        %v2188 = vmax.f32 %v2172, 0.0
        %v2189 = vmax.f32 %v2173, 0.0
        %v2190 = vmax.f32 %v2174, 0.0
        %v2191 = vmax.f32 %v2175, 0.0
        %v2192 = vmax.f32 %v2176, 0.0
        %v2193 = vmax.f32 %v2177, 0.0
        %v2194 = vmax.f32 %v2178, 0.0
        %v2195 = vmax.f32 %v2179, 0.0
        %v2196 = vmax.f32 %v2180, 0.0
        %s2197 = scalar_lea.vmem [#allocation12], 128
        %v2198 = vld [vmem:[%s2197] sm:$0xff]
        %v2199 = vld [vmem:[%s2197 + $0x8] sm:$0xff]
        %v2200 = vld [vmem:[%s2197 + $0x10] sm:$0xff]
        %v2201 = vld [vmem:[%s2197 + $0x18] sm:$0xff]
        %v2202 = vld [vmem:[%s2197 + $0x20] sm:$0xff]
        %v2203 = vld [vmem:[%s2197 + $0x28] sm:$0xff]
        %v2204 = vld [vmem:[%s2197 + $0x30] sm:$0xff]
        %v2205 = vld [vmem:[%s2197 + $0x38] sm:$0xff]
        %v2206 = vld [vmem:[%s2197 + $0x40] sm:$0xff]
        %v2207 = vld [vmem:[%s2197 + $0x48] sm:$0xff]
        %v2208 = vld [vmem:[%s2197 + $0x50] sm:$0xff]
        %v2209 = vld [vmem:[%s2197 + $0x58] sm:$0xff]
        %v2210 = vld [vmem:[%s2197 + $0x60] sm:$0xff]
        %v2211 = vld [vmem:[%s2197 + $0x68] sm:$0xff]
        %v2212 = vld [vmem:[%s2197 + $0x70] sm:$0xff]
        %v2213 = vld [vmem:[%s2197 + $0x78] sm:$0xff]
        %2214 = vmatprep.subr.mxu0 0.0
        %2215 = vmatpush1.msra.mxu0 %v2198
        %2216 = vmatprep.subr.mxu0 0.0
        %2217 = vmatpush1.msra.mxu0 %v2199
        %2218 = vmatprep.subr.mxu0 0.0
        %2219 = vmatpush1.msra.mxu0 %v2200
        %2220 = vmatprep.subr.mxu0 0.0
        %2221 = vmatpush1.msra.mxu0 %v2201
        %2222 = vmatprep.subr.mxu0 0.0
        %2223 = vmatpush1.msra.mxu0 %v2202
        %2224 = vmatprep.subr.mxu0 0.0
        %2225 = vmatpush1.msra.mxu0 %v2203
        %2226 = vmatprep.subr.mxu0 0.0
        %2227 = vmatpush1.msra.mxu0 %v2204
        %2228 = vmatprep.subr.mxu0 0.0
        %2229 = vmatpush1.msra.mxu0 %v2205
        %2230 = vmatprep.subr.mxu0 0.0
        %2231 = vmatpush1.msra.mxu0 %v2206
        %2232 = vmatprep.subr.mxu0 0.0
        %2233 = vmatpush1.msra.mxu0 %v2207
        %2234 = vmatprep.subr.mxu0 0.0
        %2235 = vmatpush1.msra.mxu0 %v2208
        %2236 = vmatprep.subr.mxu0 0.0
        %2237 = vmatpush1.msra.mxu0 %v2209
        %2238 = vmatprep.subr.mxu0 0.0
        %2239 = vmatpush1.msra.mxu0 %v2210
        %2240 = vmatprep.subr.mxu0 0.0
        %2241 = vmatpush1.msra.mxu0 %v2211
        %2242 = vmatprep.subr.mxu0 0.0
        %2243 = vmatpush1.msra.mxu0 %v2212
        %2244 = vmatprep.subr.mxu0 0.0
        %2245 = vmatpush1.msra.mxu0 %v2213
        %2246 = vmatprep.subr.mxu0 0.0
        %2247 = vmatpush1.msra.mxu0 0.0
        %2248 = vmatprep.subr.mxu0 0.0
        %2249 = vmatpush1.msra.mxu0 0.0
        %2250 = vmatprep.subr.mxu0 0.0
        %2251 = vmatpush1.msra.mxu0 0.0
        %2252 = vmatprep.subr.mxu0 0.0
        %2253 = vmatpush1.msra.mxu0 0.0
        %2254 = vmatprep.subr.mxu0 0.0
        %2255 = vmatpush1.msra.mxu0 0.0
        %2256 = vmatprep.subr.mxu0 0.0
        %2257 = vmatpush1.msra.mxu0 0.0
        %2258 = vmatprep.subr.mxu0 0.0
        %2259 = vmatpush1.msra.mxu0 0.0
        %2260 = vmatprep.subr.mxu0 0.0
        %2261 = vmatpush1.msra.mxu0 0.0
        %2262 = vmatprep.subr.mxu0 0.0
        %2263 = vmatpush1.msra.mxu0 0.0
        %2264 = vmatprep.subr.mxu0 0.0
        %2265 = vmatpush1.msra.mxu0 0.0
        %2266 = vmatprep.subr.mxu0 0.0
        %2267 = vmatpush1.msra.mxu0 0.0
        %2268 = vmatprep.subr.mxu0 0.0
        %2269 = vmatpush1.msra.mxu0 0.0
        %2270 = vmatprep.subr.mxu0 0.0
        %2271 = vmatpush1.msra.mxu0 0.0
        %2272 = vmatprep.subr.mxu0 0.0
        %2273 = vmatpush1.msra.mxu0 0.0
        %2274 = vmatprep.subr.mxu0 0.0
        %2275 = vmatpush1.msra.mxu0 0.0
        %2276 = vmatprep.subr.mxu0 0.0
        %2277 = vmatpush1.msra.mxu0 0.0
        %2278 = vmatprep.mubr.f32.mxu0 0.0
        %2279 = vmatmul.mubr.f32.gmra.mrb[0].mxu0 %v2181
        %v2280 = vpop.f32.mrb[0].mxu0
        %v2281 = vadd.f32 0.0, %v2280
        %v2282 = vpop.f32.mrb[0].mxu0
        %2283 = vmatprep.mubr.f32.mxu0 0.0
        %2284 = vmatmul.mubr.f32.gmra.mrb[0].mxu0 %v2182
        %v2285 = vpop.f32.mrb[0].mxu0
        %v2286 = vadd.f32 0.0, %v2285
        %v2287 = vpop.f32.mrb[0].mxu0
        %2288 = vmatprep.mubr.f32.mxu0 0.0
        %2289 = vmatmul.mubr.f32.gmra.mrb[0].mxu0 %v2183
        %v2290 = vpop.f32.mrb[0].mxu0
        %v2291 = vadd.f32 0.0, %v2290
        %v2292 = vpop.f32.mrb[0].mxu0
        %2293 = vmatprep.mubr.f32.mxu0 0.0
        %2294 = vmatmul.mubr.f32.gmra.mrb[0].mxu0 %v2184
        %v2295 = vpop.f32.mrb[0].mxu0
        %v2296 = vadd.f32 0.0, %v2295
        %v2297 = vpop.f32.mrb[0].mxu0
        %2298 = vmatprep.mubr.f32.mxu0 0.0
        %2299 = vmatmul.mubr.f32.gmra.mrb[0].mxu0 %v2185
        %v2300 = vpop.f32.mrb[0].mxu0
        %v2301 = vadd.f32 0.0, %v2300
        %v2302 = vpop.f32.mrb[0].mxu0
        %2303 = vmatprep.mubr.f32.mxu0 0.0
        %2304 = vmatmul.mubr.f32.gmra.mrb[0].mxu0 %v2186
        %v2305 = vpop.f32.mrb[0].mxu0
        %v2306 = vadd.f32 0.0, %v2305
        %v2307 = vpop.f32.mrb[0].mxu0
        %2308 = vmatprep.mubr.f32.mxu0 0.0
        %2309 = vmatmul.mubr.f32.gmra.mrb[0].mxu0 %v2187
        %v2310 = vpop.f32.mrb[0].mxu0
        %v2311 = vadd.f32 0.0, %v2310
        %v2312 = vpop.f32.mrb[0].mxu0
        %2313 = vmatprep.mubr.f32.mxu0 0.0
        %2314 = vmatmul.mubr.f32.gmra.mrb[0].mxu0 %v2188
        %v2315 = vpop.f32.mrb[0].mxu0
        %v2316 = vadd.f32 0.0, %v2315
        %v2317 = vpop.f32.mrb[0].mxu0
        %2318 = vmatprep.mubr.f32.mxu0 0.0
        %2319 = vmatmul.mubr.f32.gmra.mrb[0].mxu0 %v2189
        %v2320 = vpop.f32.mrb[0].mxu0
        %v2321 = vadd.f32 0.0, %v2320
        %v2322 = vpop.f32.mrb[0].mxu0
        %2323 = vmatprep.mubr.f32.mxu0 0.0
        %2324 = vmatmul.mubr.f32.gmra.mrb[0].mxu0 %v2190
        %v2325 = vpop.f32.mrb[0].mxu0
        %v2326 = vadd.f32 0.0, %v2325
        %v2327 = vpop.f32.mrb[0].mxu0
        %2328 = vmatprep.mubr.f32.mxu0 0.0
        %2329 = vmatmul.mubr.f32.gmra.mrb[0].mxu0 %v2191
        %v2330 = vpop.f32.mrb[0].mxu0
        %v2331 = vadd.f32 0.0, %v2330
        %v2332 = vpop.f32.mrb[0].mxu0
        %2333 = vmatprep.mubr.f32.mxu0 0.0
        %2334 = vmatmul.mubr.f32.gmra.mrb[0].mxu0 %v2192
        %v2335 = vpop.f32.mrb[0].mxu0
        %v2336 = vadd.f32 0.0, %v2335
        %v2337 = vpop.f32.mrb[0].mxu0
        %2338 = vmatprep.mubr.f32.mxu0 0.0
        %2339 = vmatmul.mubr.f32.gmra.mrb[0].mxu0 %v2193
        %v2340 = vpop.f32.mrb[0].mxu0
        %v2341 = vadd.f32 0.0, %v2340
        %v2342 = vpop.f32.mrb[0].mxu0
        %2343 = vmatprep.mubr.f32.mxu0 0.0
        %2344 = vmatmul.mubr.f32.gmra.mrb[0].mxu0 %v2194
        %v2345 = vpop.f32.mrb[0].mxu0
        %v2346 = vadd.f32 0.0, %v2345
        %v2347 = vpop.f32.mrb[0].mxu0
        %2348 = vmatprep.mubr.f32.mxu0 0.0
        %2349 = vmatmul.mubr.f32.gmra.mrb[0].mxu0 %v2195
        %v2350 = vpop.f32.mrb[0].mxu0
        %v2351 = vadd.f32 0.0, %v2350
        %v2352 = vpop.f32.mrb[0].mxu0
        %2353 = vmatprep.mubr.f32.mxu0 0.0
        %2354 = vmatmul.mubr.f32.gmra.mrb[0].mxu0 %v2196
        %v2355 = vpop.f32.mrb[0].mxu0
        %v2356 = vadd.f32 0.0, %v2355
        %v2357 = vpop.f32.mrb[0].mxu0
        %2358 = vdwg.mxu0
        %v2359 = vadd.f32 %v2281, %v2286
        %v2360 = vrot.slane %v2359, 4
        %v2361 = vadd.f32 %v2359, %v2360
        %v2362 = vrot.slane %v2361, 2
        %v2363 = vadd.f32 %v2361, %v2362
        %v2364 = vrot.slane %v2363, 1
        %v2365 = vadd.f32 %v2363, %v2364
        %v2366 = vadd.f32 %v2291, %v2296
        %v2367 = vrot.slane %v2366, 4
        %v2368 = vadd.f32 %v2366, %v2367
        %v2369 = vrot.slane %v2368, 2
        %v2370 = vadd.f32 %v2368, %v2369
        %v2371 = vrot.slane %v2370, 1
        %v2372 = vadd.f32 %v2370, %v2371
        %v2373 = vadd.f32 %v2301, %v2306
        %v2374 = vrot.slane %v2373, 4
        %v2375 = vadd.f32 %v2373, %v2374
        %v2376 = vrot.slane %v2375, 2
        %v2377 = vadd.f32 %v2375, %v2376
        %v2378 = vrot.slane %v2377, 1
        %v2379 = vadd.f32 %v2377, %v2378
        %v2380 = vadd.f32 %v2311, %v2316
        %v2381 = vrot.slane %v2380, 4
        %v2382 = vadd.f32 %v2380, %v2381
        %v2383 = vrot.slane %v2382, 2
        %v2384 = vadd.f32 %v2382, %v2383
        %v2385 = vrot.slane %v2384, 1
        %v2386 = vadd.f32 %v2384, %v2385
        %v2387 = vadd.f32 %v2321, %v2326
        %v2388 = vrot.slane %v2387, 4
        %v2389 = vadd.f32 %v2387, %v2388
        %v2390 = vrot.slane %v2389, 2
        %v2391 = vadd.f32 %v2389, %v2390
        %v2392 = vrot.slane %v2391, 1
        %v2393 = vadd.f32 %v2391, %v2392
        %v2394 = vadd.f32 %v2331, %v2336
        %v2395 = vrot.slane %v2394, 4
        %v2396 = vadd.f32 %v2394, %v2395
        %v2397 = vrot.slane %v2396, 2
        %v2398 = vadd.f32 %v2396, %v2397
        %v2399 = vrot.slane %v2398, 1
        %v2400 = vadd.f32 %v2398, %v2399
        %v2401 = vadd.f32 %v2341, %v2346
        %v2402 = vrot.slane %v2401, 4
        %v2403 = vadd.f32 %v2401, %v2402
        %v2404 = vrot.slane %v2403, 2
        %v2405 = vadd.f32 %v2403, %v2404
        %v2406 = vrot.slane %v2405, 1
        %v2407 = vadd.f32 %v2405, %v2406
        %v2408 = vadd.f32 %v2351, %v2356
        %v2409 = vrot.slane %v2408, 4
        %v2410 = vadd.f32 %v2408, %v2409
        %v2411 = vrot.slane %v2410, 2
        %v2412 = vadd.f32 %v2410, %v2411
        %v2413 = vrot.slane %v2412, 1
        %v2414 = vadd.f32 %v2412, %v2413
        %v2415 = vmul.f32 %v2365, 0.0625
        %v2416 = vmul.f32 %v2372, 0.0625
        %v2417 = vmul.f32 %v2379, 0.0625
        %v2418 = vmul.f32 %v2386, 0.0625
        %v2419 = vmul.f32 %v2393, 0.0625
        %v2420 = vmul.f32 %v2400, 0.0625
        %v2421 = vmul.f32 %v2407, 0.0625
        %v2422 = vmul.f32 %v2414, 0.0625
        %v2423 = vsub.f32 %v2281, %v2415
        %v2424 = vsub.f32 %v2286, %v2415
        %v2425 = vsub.f32 %v2291, %v2416
        %v2426 = vsub.f32 %v2296, %v2416
        %v2427 = vsub.f32 %v2301, %v2417
        %v2428 = vsub.f32 %v2306, %v2417
        %v2429 = vsub.f32 %v2311, %v2418
        %v2430 = vsub.f32 %v2316, %v2418
        %v2431 = vsub.f32 %v2321, %v2419
        %v2432 = vsub.f32 %v2326, %v2419
        %v2433 = vsub.f32 %v2331, %v2420
        %v2434 = vsub.f32 %v2336, %v2420
        %v2435 = vsub.f32 %v2341, %v2421
        %v2436 = vsub.f32 %v2346, %v2421
        %v2437 = vsub.f32 %v2351, %v2422
        %v2438 = vsub.f32 %v2356, %v2422
        %v2439 = vmul.f32 %v2423, %v2423
        %v2440 = vmul.f32 %v2424, %v2424
        %v2441 = vmul.f32 %v2425, %v2425
        %v2442 = vmul.f32 %v2426, %v2426
        %v2443 = vmul.f32 %v2427, %v2427
        %v2444 = vmul.f32 %v2428, %v2428
        %v2445 = vmul.f32 %v2429, %v2429
        %v2446 = vmul.f32 %v2430, %v2430
        %v2447 = vmul.f32 %v2431, %v2431
        %v2448 = vmul.f32 %v2432, %v2432
        %v2449 = vmul.f32 %v2433, %v2433
        %v2450 = vmul.f32 %v2434, %v2434
        %v2451 = vmul.f32 %v2435, %v2435
        %v2452 = vmul.f32 %v2436, %v2436
        %v2453 = vmul.f32 %v2437, %v2437
        %v2454 = vmul.f32 %v2438, %v2438
        %v2455 = vadd.f32 %v2439, %v2440
        %v2456 = vrot.slane %v2455, 4
        %v2457 = vadd.f32 %v2455, %v2456
        %v2458 = vrot.slane %v2457, 2
        %v2459 = vadd.f32 %v2457, %v2458
        %v2460 = vrot.slane %v2459, 1
        %v2461 = vadd.f32 %v2459, %v2460
        %v2462 = vadd.f32 %v2441, %v2442
        %v2463 = vrot.slane %v2462, 4
        %v2464 = vadd.f32 %v2462, %v2463
        %v2465 = vrot.slane %v2464, 2
        %v2466 = vadd.f32 %v2464, %v2465
        %v2467 = vrot.slane %v2466, 1
        %v2468 = vadd.f32 %v2466, %v2467
        %v2469 = vadd.f32 %v2443, %v2444
        %v2470 = vrot.slane %v2469, 4
        %v2471 = vadd.f32 %v2469, %v2470
        %v2472 = vrot.slane %v2471, 2
        %v2473 = vadd.f32 %v2471, %v2472
        %v2474 = vrot.slane %v2473, 1
        %v2475 = vadd.f32 %v2473, %v2474
        %v2476 = vadd.f32 %v2445, %v2446
        %v2477 = vrot.slane %v2476, 4
        %v2478 = vadd.f32 %v2476, %v2477
        %v2479 = vrot.slane %v2478, 2
        %v2480 = vadd.f32 %v2478, %v2479
        %v2481 = vrot.slane %v2480, 1
        %v2482 = vadd.f32 %v2480, %v2481
        %v2483 = vadd.f32 %v2447, %v2448
        %v2484 = vrot.slane %v2483, 4
        %v2485 = vadd.f32 %v2483, %v2484
        %v2486 = vrot.slane %v2485, 2
        %v2487 = vadd.f32 %v2485, %v2486
        %v2488 = vrot.slane %v2487, 1
        %v2489 = vadd.f32 %v2487, %v2488
        %v2490 = vadd.f32 %v2449, %v2450
        %v2491 = vrot.slane %v2490, 4
        %v2492 = vadd.f32 %v2490, %v2491
        %v2493 = vrot.slane %v2492, 2
        %v2494 = vadd.f32 %v2492, %v2493
        %v2495 = vrot.slane %v2494, 1
        %v2496 = vadd.f32 %v2494, %v2495
        %v2497 = vadd.f32 %v2451, %v2452
        %v2498 = vrot.slane %v2497, 4
        %v2499 = vadd.f32 %v2497, %v2498
        %v2500 = vrot.slane %v2499, 2
        %v2501 = vadd.f32 %v2499, %v2500
        %v2502 = vrot.slane %v2501, 1
        %v2503 = vadd.f32 %v2501, %v2502
        %v2504 = vadd.f32 %v2453, %v2454
        %v2505 = vrot.slane %v2504, 4
        %v2506 = vadd.f32 %v2504, %v2505
        %v2507 = vrot.slane %v2506, 2
        %v2508 = vadd.f32 %v2506, %v2507
        %v2509 = vrot.slane %v2508, 1
        %v2510 = vadd.f32 %v2508, %v2509
        %v2511 = vmul.f32 %v2461, 0.0625
        %v2512 = vmul.f32 %v2468, 0.0625
        %v2513 = vmul.f32 %v2475, 0.0625
        %v2514 = vmul.f32 %v2482, 0.0625
        %v2515 = vmul.f32 %v2489, 0.0625
        %v2516 = vmul.f32 %v2496, 0.0625
        %v2517 = vmul.f32 %v2503, 0.0625
        %v2518 = vmul.f32 %v2510, 0.0625
        %v2519 = vadd.f32 %v2511, 1e-05
        %v2520 = vadd.f32 %v2512, 1e-05
        %v2521 = vadd.f32 %v2513, 1e-05
        %v2522 = vadd.f32 %v2514, 1e-05
        %v2523 = vadd.f32 %v2515, 1e-05
        %v2524 = vadd.f32 %v2516, 1e-05
        %v2525 = vadd.f32 %v2517, 1e-05
        %v2526 = vadd.f32 %v2518, 1e-05
        %v2527 = vrsqrt.pop %v2519
        %v2528 = vrsqrt.pop %v2520
        %v2529 = vrsqrt.pop %v2521
        %v2530 = vrsqrt.pop %v2522
        %v2531 = vrsqrt.pop %v2523
        %v2532 = vrsqrt.pop %v2524
        %v2533 = vrsqrt.pop %v2525
        %v2534 = vrsqrt.pop %v2526
        %v2535 = vmul.f32 %v456, %v2527
        %v2536 = vmul.f32 %v456, %v2528
        %v2537 = vmul.f32 %v456, %v2529
        %v2538 = vmul.f32 %v456, %v2530
        %v2539 = vmul.f32 %v456, %v2531
        %v2540 = vmul.f32 %v456, %v2532
        %v2541 = vmul.f32 %v456, %v2533
        %v2542 = vmul.f32 %v456, %v2534
        %v2543 = vlaneseq
        %v2544 = vshrl.u32 %v2543, 7
        %v2545 = vsub.s32 6, %v2544
        %v2546 = vrot.slane %v2535, %v2545
        %v2547 = vlaneseq
        %v2548 = vshrl.u32 %v2547, 7
        %v2549 = vsub.s32 6, %v2548
        %v2550 = vrot.slane %v2536, %v2549
        %v2551 = vlaneseq
        %v2552 = vshrl.u32 %v2551, 7
        %v2553 = vsub.s32 6, %v2552
        %v2554 = vrot.slane %v2537, %v2553
        %v2555 = vlaneseq
        %v2556 = vshrl.u32 %v2555, 7
        %v2557 = vsub.s32 6, %v2556
        %v2558 = vrot.slane %v2538, %v2557
        %v2559 = vlaneseq
        %v2560 = vshrl.u32 %v2559, 7
        %v2561 = vsub.s32 6, %v2560
        %v2562 = vrot.slane %v2539, %v2561
        %v2563 = vlaneseq
        %v2564 = vshrl.u32 %v2563, 7
        %v2565 = vsub.s32 6, %v2564
        %v2566 = vrot.slane %v2540, %v2565
        %v2567 = vlaneseq
        %v2568 = vshrl.u32 %v2567, 7
        %v2569 = vsub.s32 6, %v2568
        %v2570 = vrot.slane %v2541, %v2569
        %v2571 = vlaneseq
        %v2572 = vshrl.u32 %v2571, 7
        %v2573 = vsub.s32 6, %v2572
        %v2574 = vrot.slane %v2542, %v2573
        %v2575 = vmul.f32 %v2423, %v2546
        %v2576 = vmul.f32 %v2424, %v2546
        %v2577 = vmul.f32 %v2425, %v2550
        %v2578 = vmul.f32 %v2426, %v2550
        %v2579 = vmul.f32 %v2427, %v2554
        %v2580 = vmul.f32 %v2428, %v2554
        %v2581 = vmul.f32 %v2429, %v2558
        %v2582 = vmul.f32 %v2430, %v2558
        %v2583 = vmul.f32 %v2431, %v2562
        %v2584 = vmul.f32 %v2432, %v2562
        %v2585 = vmul.f32 %v2433, %v2566
        %v2586 = vmul.f32 %v2434, %v2566
        %v2587 = vmul.f32 %v2435, %v2570
        %v2588 = vmul.f32 %v2436, %v2570
        %v2589 = vmul.f32 %v2437, %v2574
        %v2590 = vmul.f32 %v2438, %v2574
        %v2591 = vlaneseq
        %v2592 = vshrl.u32 %v2591, 7
        %v2593 = vsub.s32 7, %v2592
        %v2594 = vrot.slane %v456, %v2593
        %v2595 = vadd.f32 %v2575, %v2594
        %v2596 = vadd.f32 %v2576, %v2594
        %v2597 = vadd.f32 %v2577, %v2594
        %v2598 = vadd.f32 %v2578, %v2594
        %v2599 = vadd.f32 %v2579, %v2594
        %v2600 = vadd.f32 %v2580, %v2594
        %v2601 = vadd.f32 %v2581, %v2594
        %v2602 = vadd.f32 %v2582, %v2594
        %v2603 = vadd.f32 %v2583, %v2594
        %v2604 = vadd.f32 %v2584, %v2594
        %v2605 = vadd.f32 %v2585, %v2594
        %v2606 = vadd.f32 %v2586, %v2594
        %v2607 = vadd.f32 %v2587, %v2594
        %v2608 = vadd.f32 %v2588, %v2594
        %v2609 = vadd.f32 %v2589, %v2594
        %v2610 = vadd.f32 %v2590, %v2594
        %v2611 = vmax.f32 %v2595, 0.0
        %v2612 = vmax.f32 %v2596, 0.0
        %v2613 = vmax.f32 %v2597, 0.0
        %v2614 = vmax.f32 %v2598, 0.0
        %v2615 = vmax.f32 %v2599, 0.0
        %v2616 = vmax.f32 %v2600, 0.0
        %v2617 = vmax.f32 %v2601, 0.0
        %v2618 = vmax.f32 %v2602, 0.0
        %v2619 = vmax.f32 %v2603, 0.0
        %v2620 = vmax.f32 %v2604, 0.0
        %v2621 = vmax.f32 %v2605, 0.0
        %v2622 = vmax.f32 %v2606, 0.0
        %v2623 = vmax.f32 %v2607, 0.0
        %v2624 = vmax.f32 %v2608, 0.0
        %v2625 = vmax.f32 %v2609, 0.0
        %v2626 = vmax.f32 %v2610, 0.0
        %2627 = vst [vmem:[%s411 + $0x8] sm:$0xff] %v2611
        %2628 = vst [vmem:[%s411 + $0x20] sm:$0xff] %v2612
        %2629 = vst [vmem:[%s411 + $0x38] sm:$0xff] %v2613
        %2630 = vst [vmem:[%s411 + $0x50] sm:$0xff] %v2614
        %2631 = vst [vmem:[%s411 + $0x68] sm:$0xff] %v2615
        %2632 = vst [vmem:[%s411 + $0x80] sm:$0xff] %v2616
        %2633 = vst [vmem:[%s411 + $0x98] sm:$0xff] %v2617
        %2634 = vst [vmem:[%s411 + $0xb0] sm:$0xff] %v2618
        %2635 = vst [vmem:[%s411 + $0xc8] sm:$0xff] %v2619
        %2636 = vst [vmem:[%s411 + $0xe0] sm:$0xff] %v2620
        %2637 = vst [vmem:[%s411 + $0xf8] sm:$0xff] %v2621
        %2638 = vst [vmem:[%s411 + $0x110] sm:$0xff] %v2622
        %2639 = vst [vmem:[%s411 + $0x128] sm:$0xff] %v2623
        %2640 = vst [vmem:[%s411 + $0x140] sm:$0xff] %v2624
        %2641 = vst [vmem:[%s411 + $0x158] sm:$0xff] %v2625
        %2642 = vst [vmem:[%s411 + $0x170] sm:$0xff] %v2626
        %2643 = vmatprep.subr.mxu0 0.0
        %2644 = vmatpush1.msra.mxu0 %v2611
        %2645 = vmatprep.subr.mxu0 0.0
        %2646 = vmatpush1.msra.mxu0 %v2612
        %2647 = vmatprep.subr.mxu0 0.0
        %2648 = vmatpush1.msra.mxu0 %v2613
        %2649 = vmatprep.subr.mxu0 0.0
        %2650 = vmatpush1.msra.mxu0 %v2614
        %2651 = vmatprep.subr.mxu0 0.0
        %2652 = vmatpush1.msra.mxu0 %v2615
        %2653 = vmatprep.subr.mxu0 0.0
        %2654 = vmatpush1.msra.mxu0 %v2616
        %2655 = vmatprep.subr.mxu0 0.0
        %2656 = vmatpush1.msra.mxu0 %v2617
        %2657 = vmatprep.subr.mxu0 0.0
        %2658 = vmatpush1.msra.mxu0 %v2618
        %2659 = vmatprep.subr.mxu0 0.0
        %2660 = vmatpush1.msra.mxu0 %v2619
        %2661 = vmatprep.subr.mxu0 0.0
        %2662 = vmatpush1.msra.mxu0 %v2620
        %2663 = vmatprep.subr.mxu0 0.0
        %2664 = vmatpush1.msra.mxu0 %v2621
        %2665 = vmatprep.subr.mxu0 0.0
        %2666 = vmatpush1.msra.mxu0 %v2622
        %2667 = vmatprep.subr.mxu0 0.0
        %2668 = vmatpush1.msra.mxu0 %v2623
        %2669 = vmatprep.subr.mxu0 0.0
        %2670 = vmatpush1.msra.mxu0 %v2624
        %2671 = vmatprep.subr.mxu0 0.0
        %2672 = vmatpush1.msra.mxu0 %v2625
        %2673 = vmatprep.subr.mxu0 0.0
        %2674 = vmatpush1.msra.mxu0 %v2626
        %2675 = vmatprep.subr.mxu0 0.0
        %2676 = vmatpush1.msra.mxu0 0.0
        %2677 = vmatprep.subr.mxu0 0.0
        %2678 = vmatpush1.msra.mxu0 0.0
        %2679 = vmatprep.subr.mxu0 0.0
        %2680 = vmatpush1.msra.mxu0 0.0
        %2681 = vmatprep.subr.mxu0 0.0
        %2682 = vmatpush1.msra.mxu0 0.0
        %2683 = vmatprep.subr.mxu0 0.0
        %2684 = vmatpush1.msra.mxu0 0.0
        %2685 = vmatprep.subr.mxu0 0.0
        %2686 = vmatpush1.msra.mxu0 0.0
        %2687 = vmatprep.subr.mxu0 0.0
        %2688 = vmatpush1.msra.mxu0 0.0
        %2689 = vmatprep.subr.mxu0 0.0
        %2690 = vmatpush1.msra.mxu0 0.0
        %2691 = vmatprep.subr.mxu0 0.0
        %2692 = vmatpush1.msra.mxu0 0.0
        %2693 = vmatprep.subr.mxu0 0.0
        %2694 = vmatpush1.msra.mxu0 0.0
        %2695 = vmatprep.subr.mxu0 0.0
        %2696 = vmatpush1.msra.mxu0 0.0
        %2697 = vmatprep.subr.mxu0 0.0
        %2698 = vmatpush1.msra.mxu0 0.0
        %2699 = vmatprep.subr.mxu0 0.0
        %2700 = vmatpush1.msra.mxu0 0.0
        %2701 = vmatprep.subr.mxu0 0.0
        %2702 = vmatpush1.msra.mxu0 0.0
        %2703 = vmatprep.subr.mxu0 0.0
        %2704 = vmatpush1.msra.mxu0 0.0
        %2705 = vmatprep.subr.mxu0 0.0
        %2706 = vmatpush1.msra.mxu0 0.0
        %2707 = vmatprep.mubr.f32.mxu0 0.0
        %2708 = vmatmul.mubr.f32.gmra.mrb[0].mxu0 %v454
        %v2709 = vpop.f32.mrb[0].mxu0
        %v2710 = vadd.f32 0.0, %v2709
        %v2711 = vpop.f32.mrb[0].mxu0
        %2712 = vmatprep.mubr.f32.mxu0 0.0
        %2713 = vmatmul.mubr.f32.gmra.mrb[0].mxu0 %v455
        %v2714 = vpop.f32.mrb[0].mxu0
        %v2715 = vadd.f32 0.0, %v2714
        %v2716 = vpop.f32.mrb[0].mxu0
        %2717 = vdwg.mxu0
        %2718 = vst [vmem:[%s418 + $0x8] sm:$0xff] %v2710
        %2719 = vst [vmem:[%s418 + $0x20] sm:$0xff] %v2715
        %s2720 = sld [smem:[#allocation3 + $0x2]]
        %v2721 = vstv %s2720
        %v2722 = vmul.f32 %v2721, %v2611
        %v2723 = vmul.f32 %v2721, %v2612
        %v2724 = vmul.f32 %v2721, %v2613
        %v2725 = vmul.f32 %v2721, %v2614
        %v2726 = vmul.f32 %v2721, %v2615
        %v2727 = vmul.f32 %v2721, %v2616
        %v2728 = vmul.f32 %v2721, %v2617
        %v2729 = vmul.f32 %v2721, %v2618
        %v2730 = vmul.f32 %v2721, %v2619
        %v2731 = vmul.f32 %v2721, %v2620
        %v2732 = vmul.f32 %v2721, %v2621
        %v2733 = vmul.f32 %v2721, %v2622
        %v2734 = vmul.f32 %v2721, %v2623
        %v2735 = vmul.f32 %v2721, %v2624
        %v2736 = vmul.f32 %v2721, %v2625
        %v2737 = vmul.f32 %v2721, %v2626
        %2738 = vmatprep.subr.mxu0 0.0
        %2739 = vmatpush1.msra.mxu0 %v2611
        %2740 = vmatprep.subr.mxu0 0.0
        %2741 = vmatpush1.msra.mxu0 %v2612
        %2742 = vmatprep.subr.mxu0 0.0
        %2743 = vmatpush1.msra.mxu0 %v2613
        %2744 = vmatprep.subr.mxu0 0.0
        %2745 = vmatpush1.msra.mxu0 %v2614
        %2746 = vmatprep.subr.mxu0 0.0
        %2747 = vmatpush1.msra.mxu0 %v2615
        %2748 = vmatprep.subr.mxu0 0.0
        %2749 = vmatpush1.msra.mxu0 %v2616
        %2750 = vmatprep.subr.mxu0 0.0
        %2751 = vmatpush1.msra.mxu0 %v2617
        %2752 = vmatprep.subr.mxu0 0.0
        %2753 = vmatpush1.msra.mxu0 %v2618
        %2754 = vmatprep.subr.mxu0 0.0
        %2755 = vmatpush1.msra.mxu0 %v2619
        %2756 = vmatprep.subr.mxu0 0.0
        %2757 = vmatpush1.msra.mxu0 %v2620
        %2758 = vmatprep.subr.mxu0 0.0
        %2759 = vmatpush1.msra.mxu0 %v2621
        %2760 = vmatprep.subr.mxu0 0.0
        %2761 = vmatpush1.msra.mxu0 %v2622
        %2762 = vmatprep.subr.mxu0 0.0
        %2763 = vmatpush1.msra.mxu0 %v2623
        %2764 = vmatprep.subr.mxu0 0.0
        %2765 = vmatpush1.msra.mxu0 %v2624
        %2766 = vmatprep.subr.mxu0 0.0
        %2767 = vmatpush1.msra.mxu0 %v2625
        %2768 = vmatprep.subr.mxu0 0.0
        %2769 = vmatpush1.msra.mxu0 %v2626
        %2770 = vmatprep.subr.mxu0 0.0
        %2771 = vmatpush1.msra.mxu0 0.0
        %2772 = vmatprep.subr.mxu0 0.0
        %2773 = vmatpush1.msra.mxu0 0.0
        %2774 = vmatprep.subr.mxu0 0.0
        %2775 = vmatpush1.msra.mxu0 0.0
        %2776 = vmatprep.subr.mxu0 0.0
        %2777 = vmatpush1.msra.mxu0 0.0
        %2778 = vmatprep.subr.mxu0 0.0
        %2779 = vmatpush1.msra.mxu0 0.0
        %2780 = vmatprep.subr.mxu0 0.0
        %2781 = vmatpush1.msra.mxu0 0.0
        %2782 = vmatprep.subr.mxu0 0.0
        %2783 = vmatpush1.msra.mxu0 0.0
        %2784 = vmatprep.subr.mxu0 0.0
        %2785 = vmatpush1.msra.mxu0 0.0
        %2786 = vmatprep.subr.mxu0 0.0
        %2787 = vmatpush1.msra.mxu0 0.0
        %2788 = vmatprep.subr.mxu0 0.0
        %2789 = vmatpush1.msra.mxu0 0.0
        %2790 = vmatprep.subr.mxu0 0.0
        %2791 = vmatpush1.msra.mxu0 0.0
        %2792 = vmatprep.subr.mxu0 0.0
        %2793 = vmatpush1.msra.mxu0 0.0
        %2794 = vmatprep.subr.mxu0 0.0
        %2795 = vmatpush1.msra.mxu0 0.0
        %2796 = vmatprep.subr.mxu0 0.0
        %2797 = vmatpush1.msra.mxu0 0.0
        %2798 = vmatprep.subr.mxu0 0.0
        %2799 = vmatpush1.msra.mxu0 0.0
        %2800 = vmatprep.subr.mxu0 0.0
        %2801 = vmatpush1.msra.mxu0 0.0
        %2802 = vmatprep.mubr.f32.mxu0 0.0
        %2803 = vmatmul.mubr.f32.gmra.mrb[0].mxu0 %v438
        %v2804 = vpop.f32.mrb[0].mxu0
        %v2805 = vadd.f32 0.0, %v2804
        %v2806 = vpop.f32.mrb[0].mxu0
        %2807 = vmatprep.mubr.f32.mxu0 0.0
        %2808 = vmatmul.mubr.f32.gmra.mrb[0].mxu0 %v439
        %v2809 = vpop.f32.mrb[0].mxu0
        %v2810 = vadd.f32 0.0, %v2809
        %v2811 = vpop.f32.mrb[0].mxu0
        %2812 = vmatprep.mubr.f32.mxu0 0.0
        %2813 = vmatmul.mubr.f32.gmra.mrb[0].mxu0 %v440
        %v2814 = vpop.f32.mrb[0].mxu0
        %v2815 = vadd.f32 0.0, %v2814
        %v2816 = vpop.f32.mrb[0].mxu0
        %2817 = vmatprep.mubr.f32.mxu0 0.0
        %2818 = vmatmul.mubr.f32.gmra.mrb[0].mxu0 %v441
        %v2819 = vpop.f32.mrb[0].mxu0
        %v2820 = vadd.f32 0.0, %v2819
        %v2821 = vpop.f32.mrb[0].mxu0
        %2822 = vmatprep.mubr.f32.mxu0 0.0
        %2823 = vmatmul.mubr.f32.gmra.mrb[0].mxu0 %v442
        %v2824 = vpop.f32.mrb[0].mxu0
        %v2825 = vadd.f32 0.0, %v2824
        %v2826 = vpop.f32.mrb[0].mxu0
        %2827 = vmatprep.mubr.f32.mxu0 0.0
        %2828 = vmatmul.mubr.f32.gmra.mrb[0].mxu0 %v443
        %v2829 = vpop.f32.mrb[0].mxu0
        %v2830 = vadd.f32 0.0, %v2829
        %v2831 = vpop.f32.mrb[0].mxu0
        %2832 = vmatprep.mubr.f32.mxu0 0.0
        %2833 = vmatmul.mubr.f32.gmra.mrb[0].mxu0 %v444
        %v2834 = vpop.f32.mrb[0].mxu0
        %v2835 = vadd.f32 0.0, %v2834
        %v2836 = vpop.f32.mrb[0].mxu0
        %2837 = vmatprep.mubr.f32.mxu0 0.0
        %2838 = vmatmul.mubr.f32.gmra.mrb[0].mxu0 %v445
        %v2839 = vpop.f32.mrb[0].mxu0
        %v2840 = vadd.f32 0.0, %v2839
        %v2841 = vpop.f32.mrb[0].mxu0
        %2842 = vmatprep.mubr.f32.mxu0 0.0
        %2843 = vmatmul.mubr.f32.gmra.mrb[0].mxu0 %v446
        %v2844 = vpop.f32.mrb[0].mxu0
        %v2845 = vadd.f32 0.0, %v2844
        %v2846 = vpop.f32.mrb[0].mxu0
        %2847 = vmatprep.mubr.f32.mxu0 0.0
        %2848 = vmatmul.mubr.f32.gmra.mrb[0].mxu0 %v447
        %v2849 = vpop.f32.mrb[0].mxu0
        %v2850 = vadd.f32 0.0, %v2849
        %v2851 = vpop.f32.mrb[0].mxu0
        %2852 = vmatprep.mubr.f32.mxu0 0.0
        %2853 = vmatmul.mubr.f32.gmra.mrb[0].mxu0 %v448
        %v2854 = vpop.f32.mrb[0].mxu0
        %v2855 = vadd.f32 0.0, %v2854
        %v2856 = vpop.f32.mrb[0].mxu0
        %2857 = vmatprep.mubr.f32.mxu0 0.0
        %2858 = vmatmul.mubr.f32.gmra.mrb[0].mxu0 %v449
        %v2859 = vpop.f32.mrb[0].mxu0
        %v2860 = vadd.f32 0.0, %v2859
        %v2861 = vpop.f32.mrb[0].mxu0
        %2862 = vmatprep.mubr.f32.mxu0 0.0
        %2863 = vmatmul.mubr.f32.gmra.mrb[0].mxu0 %v450
        %v2864 = vpop.f32.mrb[0].mxu0
        %v2865 = vadd.f32 0.0, %v2864
        %v2866 = vpop.f32.mrb[0].mxu0
        %2867 = vmatprep.mubr.f32.mxu0 0.0
        %2868 = vmatmul.mubr.f32.gmra.mrb[0].mxu0 %v451
        %v2869 = vpop.f32.mrb[0].mxu0
        %v2870 = vadd.f32 0.0, %v2869
        %v2871 = vpop.f32.mrb[0].mxu0
        %2872 = vmatprep.mubr.f32.mxu0 0.0
        %2873 = vmatmul.mubr.f32.gmra.mrb[0].mxu0 %v452
        %v2874 = vpop.f32.mrb[0].mxu0
        %v2875 = vadd.f32 0.0, %v2874
        %v2876 = vpop.f32.mrb[0].mxu0
        %2877 = vmatprep.mubr.f32.mxu0 0.0
        %2878 = vmatmul.mubr.f32.gmra.mrb[0].mxu0 %v453
        %v2879 = vpop.f32.mrb[0].mxu0
        %v2880 = vadd.f32 0.0, %v2879
        %v2881 = vpop.f32.mrb[0].mxu0
        %2882 = vdwg.mxu0
        %v2883 = vadd.f32 %v2722, %v2805
        %v2884 = vadd.f32 %v2723, %v2810
        %v2885 = vadd.f32 %v2724, %v2815
        %v2886 = vadd.f32 %v2725, %v2820
        %v2887 = vadd.f32 %v2726, %v2825
        %v2888 = vadd.f32 %v2727, %v2830
        %v2889 = vadd.f32 %v2728, %v2835
        %v2890 = vadd.f32 %v2729, %v2840
        %v2891 = vadd.f32 %v2730, %v2845
        %v2892 = vadd.f32 %v2731, %v2850
        %v2893 = vadd.f32 %v2732, %v2855
        %v2894 = vadd.f32 %v2733, %v2860
        %v2895 = vadd.f32 %v2734, %v2865
        %v2896 = vadd.f32 %v2735, %v2870
        %v2897 = vadd.f32 %v2736, %v2875
        %v2898 = vadd.f32 %v2737, %v2880
        %s2899 = scalar_lea.vmem [#allocation10], 256
        %v2900 = vld [vmem:[%s2899] sm:$0xff]
        %v2901 = vld [vmem:[%s2899 + $0x8] sm:$0xff]
        %v2902 = vld [vmem:[%s2899 + $0x10] sm:$0xff]
        %v2903 = vld [vmem:[%s2899 + $0x18] sm:$0xff]
        %v2904 = vld [vmem:[%s2899 + $0x20] sm:$0xff]
        %v2905 = vld [vmem:[%s2899 + $0x28] sm:$0xff]
        %v2906 = vld [vmem:[%s2899 + $0x30] sm:$0xff]
        %v2907 = vld [vmem:[%s2899 + $0x38] sm:$0xff]
        %v2908 = vld [vmem:[%s2899 + $0x40] sm:$0xff]
        %v2909 = vld [vmem:[%s2899 + $0x48] sm:$0xff]
        %v2910 = vld [vmem:[%s2899 + $0x50] sm:$0xff]
        %v2911 = vld [vmem:[%s2899 + $0x58] sm:$0xff]
        %v2912 = vld [vmem:[%s2899 + $0x60] sm:$0xff]
        %v2913 = vld [vmem:[%s2899 + $0x68] sm:$0xff]
        %v2914 = vld [vmem:[%s2899 + $0x70] sm:$0xff]
        %v2915 = vld [vmem:[%s2899 + $0x78] sm:$0xff]
        %2916 = vmatprep.subr.mxu0 0.0
        %2917 = vmatpush1.msra.mxu0 %v2900
        %2918 = vmatprep.subr.mxu0 0.0
        %2919 = vmatpush1.msra.mxu0 %v2901
        %2920 = vmatprep.subr.mxu0 0.0
        %2921 = vmatpush1.msra.mxu0 %v2902
        %2922 = vmatprep.subr.mxu0 0.0
        %2923 = vmatpush1.msra.mxu0 %v2903
        %2924 = vmatprep.subr.mxu0 0.0
        %2925 = vmatpush1.msra.mxu0 %v2904
        %2926 = vmatprep.subr.mxu0 0.0
        %2927 = vmatpush1.msra.mxu0 %v2905
        %2928 = vmatprep.subr.mxu0 0.0
        %2929 = vmatpush1.msra.mxu0 %v2906
        %2930 = vmatprep.subr.mxu0 0.0
        %2931 = vmatpush1.msra.mxu0 %v2907
        %2932 = vmatprep.subr.mxu0 0.0
        %2933 = vmatpush1.msra.mxu0 %v2908
        %2934 = vmatprep.subr.mxu0 0.0
        %2935 = vmatpush1.msra.mxu0 %v2909
        %2936 = vmatprep.subr.mxu0 0.0
        %2937 = vmatpush1.msra.mxu0 %v2910
        %2938 = vmatprep.subr.mxu0 0.0
        %2939 = vmatpush1.msra.mxu0 %v2911
        %2940 = vmatprep.subr.mxu0 0.0
        %2941 = vmatpush1.msra.mxu0 %v2912
        %2942 = vmatprep.subr.mxu0 0.0
        %2943 = vmatpush1.msra.mxu0 %v2913
        %2944 = vmatprep.subr.mxu0 0.0
        %2945 = vmatpush1.msra.mxu0 %v2914
        %2946 = vmatprep.subr.mxu0 0.0
        %2947 = vmatpush1.msra.mxu0 %v2915
        %2948 = vmatprep.subr.mxu0 0.0
        %2949 = vmatpush1.msra.mxu0 0.0
        %2950 = vmatprep.subr.mxu0 0.0
        %2951 = vmatpush1.msra.mxu0 0.0
        %2952 = vmatprep.subr.mxu0 0.0
        %2953 = vmatpush1.msra.mxu0 0.0
        %2954 = vmatprep.subr.mxu0 0.0
        %2955 = vmatpush1.msra.mxu0 0.0
        %2956 = vmatprep.subr.mxu0 0.0
        %2957 = vmatpush1.msra.mxu0 0.0
        %2958 = vmatprep.subr.mxu0 0.0
        %2959 = vmatpush1.msra.mxu0 0.0
        %2960 = vmatprep.subr.mxu0 0.0
        %2961 = vmatpush1.msra.mxu0 0.0
        %2962 = vmatprep.subr.mxu0 0.0
        %2963 = vmatpush1.msra.mxu0 0.0
        %2964 = vmatprep.subr.mxu0 0.0
        %2965 = vmatpush1.msra.mxu0 0.0
        %2966 = vmatprep.subr.mxu0 0.0
        %2967 = vmatpush1.msra.mxu0 0.0
        %2968 = vmatprep.subr.mxu0 0.0
        %2969 = vmatpush1.msra.mxu0 0.0
        %2970 = vmatprep.subr.mxu0 0.0
        %2971 = vmatpush1.msra.mxu0 0.0
        %2972 = vmatprep.subr.mxu0 0.0
        %2973 = vmatpush1.msra.mxu0 0.0
        %2974 = vmatprep.subr.mxu0 0.0
        %2975 = vmatpush1.msra.mxu0 0.0
        %2976 = vmatprep.subr.mxu0 0.0
        %2977 = vmatpush1.msra.mxu0 0.0
        %2978 = vmatprep.subr.mxu0 0.0
        %2979 = vmatpush1.msra.mxu0 0.0
        %2980 = vmatprep.mubr.f32.mxu0 0.0
        %2981 = vmatmul.mubr.f32.gmra.mrb[0].mxu0 %v2883
        %v2982 = vpop.f32.mrb[0].mxu0
        %v2983 = vadd.f32 0.0, %v2982
        %v2984 = vpop.f32.mrb[0].mxu0
        %2985 = vmatprep.mubr.f32.mxu0 0.0
        %2986 = vmatmul.mubr.f32.gmra.mrb[0].mxu0 %v2884
        %v2987 = vpop.f32.mrb[0].mxu0
        %v2988 = vadd.f32 0.0, %v2987
        %v2989 = vpop.f32.mrb[0].mxu0
        %2990 = vmatprep.mubr.f32.mxu0 0.0
        %2991 = vmatmul.mubr.f32.gmra.mrb[0].mxu0 %v2885
        %v2992 = vpop.f32.mrb[0].mxu0
        %v2993 = vadd.f32 0.0, %v2992
        %v2994 = vpop.f32.mrb[0].mxu0
        %2995 = vmatprep.mubr.f32.mxu0 0.0
        %2996 = vmatmul.mubr.f32.gmra.mrb[0].mxu0 %v2886
        %v2997 = vpop.f32.mrb[0].mxu0
        %v2998 = vadd.f32 0.0, %v2997
        %v2999 = vpop.f32.mrb[0].mxu0
        %3000 = vmatprep.mubr.f32.mxu0 0.0
        %3001 = vmatmul.mubr.f32.gmra.mrb[0].mxu0 %v2887
        %v3002 = vpop.f32.mrb[0].mxu0
        %v3003 = vadd.f32 0.0, %v3002
        %v3004 = vpop.f32.mrb[0].mxu0
        %3005 = vmatprep.mubr.f32.mxu0 0.0
        %3006 = vmatmul.mubr.f32.gmra.mrb[0].mxu0 %v2888
        %v3007 = vpop.f32.mrb[0].mxu0
        %v3008 = vadd.f32 0.0, %v3007
        %v3009 = vpop.f32.mrb[0].mxu0
        %3010 = vmatprep.mubr.f32.mxu0 0.0
        %3011 = vmatmul.mubr.f32.gmra.mrb[0].mxu0 %v2889
        %v3012 = vpop.f32.mrb[0].mxu0
        %v3013 = vadd.f32 0.0, %v3012
        %v3014 = vpop.f32.mrb[0].mxu0
        %3015 = vmatprep.mubr.f32.mxu0 0.0
        %3016 = vmatmul.mubr.f32.gmra.mrb[0].mxu0 %v2890
        %v3017 = vpop.f32.mrb[0].mxu0
        %v3018 = vadd.f32 0.0, %v3017
        %v3019 = vpop.f32.mrb[0].mxu0
        %3020 = vmatprep.mubr.f32.mxu0 0.0
        %3021 = vmatmul.mubr.f32.gmra.mrb[0].mxu0 %v2891
        %v3022 = vpop.f32.mrb[0].mxu0
        %v3023 = vadd.f32 0.0, %v3022
        %v3024 = vpop.f32.mrb[0].mxu0
        %3025 = vmatprep.mubr.f32.mxu0 0.0
        %3026 = vmatmul.mubr.f32.gmra.mrb[0].mxu0 %v2892
        %v3027 = vpop.f32.mrb[0].mxu0
        %v3028 = vadd.f32 0.0, %v3027
        %v3029 = vpop.f32.mrb[0].mxu0
        %3030 = vmatprep.mubr.f32.mxu0 0.0
        %3031 = vmatmul.mubr.f32.gmra.mrb[0].mxu0 %v2893
        %v3032 = vpop.f32.mrb[0].mxu0
        %v3033 = vadd.f32 0.0, %v3032
        %v3034 = vpop.f32.mrb[0].mxu0
        %3035 = vmatprep.mubr.f32.mxu0 0.0
        %3036 = vmatmul.mubr.f32.gmra.mrb[0].mxu0 %v2894
        %v3037 = vpop.f32.mrb[0].mxu0
        %v3038 = vadd.f32 0.0, %v3037
        %v3039 = vpop.f32.mrb[0].mxu0
        %3040 = vmatprep.mubr.f32.mxu0 0.0
        %3041 = vmatmul.mubr.f32.gmra.mrb[0].mxu0 %v2895
        %v3042 = vpop.f32.mrb[0].mxu0
        %v3043 = vadd.f32 0.0, %v3042
        %v3044 = vpop.f32.mrb[0].mxu0
        %3045 = vmatprep.mubr.f32.mxu0 0.0
        %3046 = vmatmul.mubr.f32.gmra.mrb[0].mxu0 %v2896
        %v3047 = vpop.f32.mrb[0].mxu0
        %v3048 = vadd.f32 0.0, %v3047
        %v3049 = vpop.f32.mrb[0].mxu0
        %3050 = vmatprep.mubr.f32.mxu0 0.0
        %3051 = vmatmul.mubr.f32.gmra.mrb[0].mxu0 %v2897
        %v3052 = vpop.f32.mrb[0].mxu0
        %v3053 = vadd.f32 0.0, %v3052
        %v3054 = vpop.f32.mrb[0].mxu0
        %3055 = vmatprep.mubr.f32.mxu0 0.0
        %3056 = vmatmul.mubr.f32.gmra.mrb[0].mxu0 %v2898
        %v3057 = vpop.f32.mrb[0].mxu0
        %v3058 = vadd.f32 0.0, %v3057
        %v3059 = vpop.f32.mrb[0].mxu0
        %3060 = vdwg.mxu0
        %v3061 = vadd.f32 %v2983, %v2988
        %v3062 = vrot.slane %v3061, 4
        %v3063 = vadd.f32 %v3061, %v3062
        %v3064 = vrot.slane %v3063, 2
        %v3065 = vadd.f32 %v3063, %v3064
        %v3066 = vrot.slane %v3065, 1
        %v3067 = vadd.f32 %v3065, %v3066
        %v3068 = vadd.f32 %v2993, %v2998
        %v3069 = vrot.slane %v3068, 4
        %v3070 = vadd.f32 %v3068, %v3069
        %v3071 = vrot.slane %v3070, 2
        %v3072 = vadd.f32 %v3070, %v3071
        %v3073 = vrot.slane %v3072, 1
        %v3074 = vadd.f32 %v3072, %v3073
        %v3075 = vadd.f32 %v3003, %v3008
        %v3076 = vrot.slane %v3075, 4
        %v3077 = vadd.f32 %v3075, %v3076
        %v3078 = vrot.slane %v3077, 2
        %v3079 = vadd.f32 %v3077, %v3078
        %v3080 = vrot.slane %v3079, 1
        %v3081 = vadd.f32 %v3079, %v3080
        %v3082 = vadd.f32 %v3013, %v3018
        %v3083 = vrot.slane %v3082, 4
        %v3084 = vadd.f32 %v3082, %v3083
        %v3085 = vrot.slane %v3084, 2
        %v3086 = vadd.f32 %v3084, %v3085
        %v3087 = vrot.slane %v3086, 1
        %v3088 = vadd.f32 %v3086, %v3087
        %v3089 = vadd.f32 %v3023, %v3028
        %v3090 = vrot.slane %v3089, 4
        %v3091 = vadd.f32 %v3089, %v3090
        %v3092 = vrot.slane %v3091, 2
        %v3093 = vadd.f32 %v3091, %v3092
        %v3094 = vrot.slane %v3093, 1
        %v3095 = vadd.f32 %v3093, %v3094
        %v3096 = vadd.f32 %v3033, %v3038
        %v3097 = vrot.slane %v3096, 4
        %v3098 = vadd.f32 %v3096, %v3097
        %v3099 = vrot.slane %v3098, 2
        %v3100 = vadd.f32 %v3098, %v3099
        %v3101 = vrot.slane %v3100, 1
        %v3102 = vadd.f32 %v3100, %v3101
        %v3103 = vadd.f32 %v3043, %v3048
        %v3104 = vrot.slane %v3103, 4
        %v3105 = vadd.f32 %v3103, %v3104
        %v3106 = vrot.slane %v3105, 2
        %v3107 = vadd.f32 %v3105, %v3106
        %v3108 = vrot.slane %v3107, 1
        %v3109 = vadd.f32 %v3107, %v3108
        %v3110 = vadd.f32 %v3053, %v3058
        %v3111 = vrot.slane %v3110, 4
        %v3112 = vadd.f32 %v3110, %v3111
        %v3113 = vrot.slane %v3112, 2
        %v3114 = vadd.f32 %v3112, %v3113
        %v3115 = vrot.slane %v3114, 1
        %v3116 = vadd.f32 %v3114, %v3115
        %v3117 = vmul.f32 %v3067, 0.0625
        %v3118 = vmul.f32 %v3074, 0.0625
        %v3119 = vmul.f32 %v3081, 0.0625
        %v3120 = vmul.f32 %v3088, 0.0625
        %v3121 = vmul.f32 %v3095, 0.0625
        %v3122 = vmul.f32 %v3102, 0.0625
        %v3123 = vmul.f32 %v3109, 0.0625
        %v3124 = vmul.f32 %v3116, 0.0625
        %v3125 = vsub.f32 %v2983, %v3117
        %v3126 = vsub.f32 %v2988, %v3117
        %v3127 = vsub.f32 %v2993, %v3118
        %v3128 = vsub.f32 %v2998, %v3118
        %v3129 = vsub.f32 %v3003, %v3119
        %v3130 = vsub.f32 %v3008, %v3119
        %v3131 = vsub.f32 %v3013, %v3120
        %v3132 = vsub.f32 %v3018, %v3120
        %v3133 = vsub.f32 %v3023, %v3121
        %v3134 = vsub.f32 %v3028, %v3121
        %v3135 = vsub.f32 %v3033, %v3122
        %v3136 = vsub.f32 %v3038, %v3122
        %v3137 = vsub.f32 %v3043, %v3123
        %v3138 = vsub.f32 %v3048, %v3123
        %v3139 = vsub.f32 %v3053, %v3124
        %v3140 = vsub.f32 %v3058, %v3124
        %v3141 = vmul.f32 %v3125, %v3125
        %v3142 = vmul.f32 %v3126, %v3126
        %v3143 = vmul.f32 %v3127, %v3127
        %v3144 = vmul.f32 %v3128, %v3128
        %v3145 = vmul.f32 %v3129, %v3129
        %v3146 = vmul.f32 %v3130, %v3130
        %v3147 = vmul.f32 %v3131, %v3131
        %v3148 = vmul.f32 %v3132, %v3132
        %v3149 = vmul.f32 %v3133, %v3133
        %v3150 = vmul.f32 %v3134, %v3134
        %v3151 = vmul.f32 %v3135, %v3135
        %v3152 = vmul.f32 %v3136, %v3136
        %v3153 = vmul.f32 %v3137, %v3137
        %v3154 = vmul.f32 %v3138, %v3138
        %v3155 = vmul.f32 %v3139, %v3139
        %v3156 = vmul.f32 %v3140, %v3140
        %v3157 = vadd.f32 %v3141, %v3142
        %v3158 = vrot.slane %v3157, 4
        %v3159 = vadd.f32 %v3157, %v3158
        %v3160 = vrot.slane %v3159, 2
        %v3161 = vadd.f32 %v3159, %v3160
        %v3162 = vrot.slane %v3161, 1
        %v3163 = vadd.f32 %v3161, %v3162
        %v3164 = vadd.f32 %v3143, %v3144
        %v3165 = vrot.slane %v3164, 4
        %v3166 = vadd.f32 %v3164, %v3165
        %v3167 = vrot.slane %v3166, 2
        %v3168 = vadd.f32 %v3166, %v3167
        %v3169 = vrot.slane %v3168, 1
        %v3170 = vadd.f32 %v3168, %v3169
        %v3171 = vadd.f32 %v3145, %v3146
        %v3172 = vrot.slane %v3171, 4
        %v3173 = vadd.f32 %v3171, %v3172
        %v3174 = vrot.slane %v3173, 2
        %v3175 = vadd.f32 %v3173, %v3174
        %v3176 = vrot.slane %v3175, 1
        %v3177 = vadd.f32 %v3175, %v3176
        %v3178 = vadd.f32 %v3147, %v3148
        %v3179 = vrot.slane %v3178, 4
        %v3180 = vadd.f32 %v3178, %v3179
        %v3181 = vrot.slane %v3180, 2
        %v3182 = vadd.f32 %v3180, %v3181
        %v3183 = vrot.slane %v3182, 1
        %v3184 = vadd.f32 %v3182, %v3183
        %v3185 = vadd.f32 %v3149, %v3150
        %v3186 = vrot.slane %v3185, 4
        %v3187 = vadd.f32 %v3185, %v3186
        %v3188 = vrot.slane %v3187, 2
        %v3189 = vadd.f32 %v3187, %v3188
        %v3190 = vrot.slane %v3189, 1
        %v3191 = vadd.f32 %v3189, %v3190
        %v3192 = vadd.f32 %v3151, %v3152
        %v3193 = vrot.slane %v3192, 4
        %v3194 = vadd.f32 %v3192, %v3193
        %v3195 = vrot.slane %v3194, 2
        %v3196 = vadd.f32 %v3194, %v3195
        %v3197 = vrot.slane %v3196, 1
        %v3198 = vadd.f32 %v3196, %v3197
        %v3199 = vadd.f32 %v3153, %v3154
        %v3200 = vrot.slane %v3199, 4
        %v3201 = vadd.f32 %v3199, %v3200
        %v3202 = vrot.slane %v3201, 2
        %v3203 = vadd.f32 %v3201, %v3202
        %v3204 = vrot.slane %v3203, 1
        %v3205 = vadd.f32 %v3203, %v3204
        %v3206 = vadd.f32 %v3155, %v3156
        %v3207 = vrot.slane %v3206, 4
        %v3208 = vadd.f32 %v3206, %v3207
        %v3209 = vrot.slane %v3208, 2
        %v3210 = vadd.f32 %v3208, %v3209
        %v3211 = vrot.slane %v3210, 1
        %v3212 = vadd.f32 %v3210, %v3211
        %v3213 = vmul.f32 %v3163, 0.0625
        %v3214 = vmul.f32 %v3170, 0.0625
        %v3215 = vmul.f32 %v3177, 0.0625
        %v3216 = vmul.f32 %v3184, 0.0625
        %v3217 = vmul.f32 %v3191, 0.0625
        %v3218 = vmul.f32 %v3198, 0.0625
        %v3219 = vmul.f32 %v3205, 0.0625
        %v3220 = vmul.f32 %v3212, 0.0625
        %v3221 = vadd.f32 %v3213, 1e-05
        %v3222 = vadd.f32 %v3214, 1e-05
        %v3223 = vadd.f32 %v3215, 1e-05
        %v3224 = vadd.f32 %v3216, 1e-05
        %v3225 = vadd.f32 %v3217, 1e-05
        %v3226 = vadd.f32 %v3218, 1e-05
        %v3227 = vadd.f32 %v3219, 1e-05
        %v3228 = vadd.f32 %v3220, 1e-05
        %v3229 = vrsqrt.pop %v3221
        %v3230 = vrsqrt.pop %v3222
        %v3231 = vrsqrt.pop %v3223
        %v3232 = vrsqrt.pop %v3224
        %v3233 = vrsqrt.pop %v3225
        %v3234 = vrsqrt.pop %v3226
        %v3235 = vrsqrt.pop %v3227
        %v3236 = vrsqrt.pop %v3228
        %v3237 = vmul.f32 %v457, %v3229
        %v3238 = vmul.f32 %v457, %v3230
        %v3239 = vmul.f32 %v457, %v3231
        %v3240 = vmul.f32 %v457, %v3232
        %v3241 = vmul.f32 %v457, %v3233
        %v3242 = vmul.f32 %v457, %v3234
        %v3243 = vmul.f32 %v457, %v3235
        %v3244 = vmul.f32 %v457, %v3236
        %v3245 = vlaneseq
        %v3246 = vshrl.u32 %v3245, 7
        %v3247 = vsub.s32 0, %v3246
        %v3248 = vrot.slane %v3237, %v3247
        %v3249 = vlaneseq
        %v3250 = vshrl.u32 %v3249, 7
        %v3251 = vsub.s32 0, %v3250
        %v3252 = vrot.slane %v3238, %v3251
        %v3253 = vlaneseq
        %v3254 = vshrl.u32 %v3253, 7
        %v3255 = vsub.s32 0, %v3254
        %v3256 = vrot.slane %v3239, %v3255
        %v3257 = vlaneseq
        %v3258 = vshrl.u32 %v3257, 7
        %v3259 = vsub.s32 0, %v3258
        %v3260 = vrot.slane %v3240, %v3259
        %v3261 = vlaneseq
        %v3262 = vshrl.u32 %v3261, 7
        %v3263 = vsub.s32 0, %v3262
        %v3264 = vrot.slane %v3241, %v3263
        %v3265 = vlaneseq
        %v3266 = vshrl.u32 %v3265, 7
        %v3267 = vsub.s32 0, %v3266
        %v3268 = vrot.slane %v3242, %v3267
        %v3269 = vlaneseq
        %v3270 = vshrl.u32 %v3269, 7
        %v3271 = vsub.s32 0, %v3270
        %v3272 = vrot.slane %v3243, %v3271
        %v3273 = vlaneseq
        %v3274 = vshrl.u32 %v3273, 7
        %v3275 = vsub.s32 0, %v3274
        %v3276 = vrot.slane %v3244, %v3275
        %v3277 = vmul.f32 %v3125, %v3248
        %v3278 = vmul.f32 %v3126, %v3248
        %v3279 = vmul.f32 %v3127, %v3252
        %v3280 = vmul.f32 %v3128, %v3252
        %v3281 = vmul.f32 %v3129, %v3256
        %v3282 = vmul.f32 %v3130, %v3256
        %v3283 = vmul.f32 %v3131, %v3260
        %v3284 = vmul.f32 %v3132, %v3260
        %v3285 = vmul.f32 %v3133, %v3264
        %v3286 = vmul.f32 %v3134, %v3264
        %v3287 = vmul.f32 %v3135, %v3268
        %v3288 = vmul.f32 %v3136, %v3268
        %v3289 = vmul.f32 %v3137, %v3272
        %v3290 = vmul.f32 %v3138, %v3272
        %v3291 = vmul.f32 %v3139, %v3276
        %v3292 = vmul.f32 %v3140, %v3276
        %v3293 = vlaneseq
        %v3294 = vshrl.u32 %v3293, 7
        %v3295 = vsub.s32 1, %v3294
        %v3296 = vrot.slane %v457, %v3295
        %v3297 = vadd.f32 %v3277, %v3296
        %v3298 = vadd.f32 %v3278, %v3296
        %v3299 = vadd.f32 %v3279, %v3296
        %v3300 = vadd.f32 %v3280, %v3296
        %v3301 = vadd.f32 %v3281, %v3296
        %v3302 = vadd.f32 %v3282, %v3296
        %v3303 = vadd.f32 %v3283, %v3296
        %v3304 = vadd.f32 %v3284, %v3296
        %v3305 = vadd.f32 %v3285, %v3296
        %v3306 = vadd.f32 %v3286, %v3296
        %v3307 = vadd.f32 %v3287, %v3296
        %v3308 = vadd.f32 %v3288, %v3296
        %v3309 = vadd.f32 %v3289, %v3296
        %v3310 = vadd.f32 %v3290, %v3296
        %v3311 = vadd.f32 %v3291, %v3296
        %v3312 = vadd.f32 %v3292, %v3296
        %v3313 = vmax.f32 %v3297, 0.0
        %v3314 = vmax.f32 %v3298, 0.0
        %v3315 = vmax.f32 %v3299, 0.0
        %v3316 = vmax.f32 %v3300, 0.0
        %v3317 = vmax.f32 %v3301, 0.0
        %v3318 = vmax.f32 %v3302, 0.0
        %v3319 = vmax.f32 %v3303, 0.0
        %v3320 = vmax.f32 %v3304, 0.0
        %v3321 = vmax.f32 %v3305, 0.0
        %v3322 = vmax.f32 %v3306, 0.0
        %v3323 = vmax.f32 %v3307, 0.0
        %v3324 = vmax.f32 %v3308, 0.0
        %v3325 = vmax.f32 %v3309, 0.0
        %v3326 = vmax.f32 %v3310, 0.0
        %v3327 = vmax.f32 %v3311, 0.0
        %v3328 = vmax.f32 %v3312, 0.0
        %s3329 = scalar_lea.vmem [#allocation12], 256
        %v3330 = vld [vmem:[%s3329] sm:$0xff]
        %v3331 = vld [vmem:[%s3329 + $0x8] sm:$0xff]
        %v3332 = vld [vmem:[%s3329 + $0x10] sm:$0xff]
        %v3333 = vld [vmem:[%s3329 + $0x18] sm:$0xff]
        %v3334 = vld [vmem:[%s3329 + $0x20] sm:$0xff]
        %v3335 = vld [vmem:[%s3329 + $0x28] sm:$0xff]
        %v3336 = vld [vmem:[%s3329 + $0x30] sm:$0xff]
        %v3337 = vld [vmem:[%s3329 + $0x38] sm:$0xff]
        %v3338 = vld [vmem:[%s3329 + $0x40] sm:$0xff]
        %v3339 = vld [vmem:[%s3329 + $0x48] sm:$0xff]
        %v3340 = vld [vmem:[%s3329 + $0x50] sm:$0xff]
        %v3341 = vld [vmem:[%s3329 + $0x58] sm:$0xff]
        %v3342 = vld [vmem:[%s3329 + $0x60] sm:$0xff]
        %v3343 = vld [vmem:[%s3329 + $0x68] sm:$0xff]
        %v3344 = vld [vmem:[%s3329 + $0x70] sm:$0xff]
        %v3345 = vld [vmem:[%s3329 + $0x78] sm:$0xff]
        %3346 = vmatprep.subr.mxu0 0.0
        %3347 = vmatpush1.msra.mxu0 %v3330
        %3348 = vmatprep.subr.mxu0 0.0
        %3349 = vmatpush1.msra.mxu0 %v3331
        %3350 = vmatprep.subr.mxu0 0.0
        %3351 = vmatpush1.msra.mxu0 %v3332
        %3352 = vmatprep.subr.mxu0 0.0
        %3353 = vmatpush1.msra.mxu0 %v3333
        %3354 = vmatprep.subr.mxu0 0.0
        %3355 = vmatpush1.msra.mxu0 %v3334
        %3356 = vmatprep.subr.mxu0 0.0
        %3357 = vmatpush1.msra.mxu0 %v3335
        %3358 = vmatprep.subr.mxu0 0.0
        %3359 = vmatpush1.msra.mxu0 %v3336
        %3360 = vmatprep.subr.mxu0 0.0
        %3361 = vmatpush1.msra.mxu0 %v3337
        %3362 = vmatprep.subr.mxu0 0.0
        %3363 = vmatpush1.msra.mxu0 %v3338
        %3364 = vmatprep.subr.mxu0 0.0
        %3365 = vmatpush1.msra.mxu0 %v3339
        %3366 = vmatprep.subr.mxu0 0.0
        %3367 = vmatpush1.msra.mxu0 %v3340
        %3368 = vmatprep.subr.mxu0 0.0
        %3369 = vmatpush1.msra.mxu0 %v3341
        %3370 = vmatprep.subr.mxu0 0.0
        %3371 = vmatpush1.msra.mxu0 %v3342
        %3372 = vmatprep.subr.mxu0 0.0
        %3373 = vmatpush1.msra.mxu0 %v3343
        %3374 = vmatprep.subr.mxu0 0.0
        %3375 = vmatpush1.msra.mxu0 %v3344
        %3376 = vmatprep.subr.mxu0 0.0
        %3377 = vmatpush1.msra.mxu0 %v3345
        %3378 = vmatprep.subr.mxu0 0.0
        %3379 = vmatpush1.msra.mxu0 0.0
        %3380 = vmatprep.subr.mxu0 0.0
        %3381 = vmatpush1.msra.mxu0 0.0
        %3382 = vmatprep.subr.mxu0 0.0
        %3383 = vmatpush1.msra.mxu0 0.0
        %3384 = vmatprep.subr.mxu0 0.0
        %3385 = vmatpush1.msra.mxu0 0.0
        %3386 = vmatprep.subr.mxu0 0.0
        %3387 = vmatpush1.msra.mxu0 0.0
        %3388 = vmatprep.subr.mxu0 0.0
        %3389 = vmatpush1.msra.mxu0 0.0
        %3390 = vmatprep.subr.mxu0 0.0
        %3391 = vmatpush1.msra.mxu0 0.0
        %3392 = vmatprep.subr.mxu0 0.0
        %3393 = vmatpush1.msra.mxu0 0.0
        %3394 = vmatprep.subr.mxu0 0.0
        %3395 = vmatpush1.msra.mxu0 0.0
        %3396 = vmatprep.subr.mxu0 0.0
        %3397 = vmatpush1.msra.mxu0 0.0
        %3398 = vmatprep.subr.mxu0 0.0
        %3399 = vmatpush1.msra.mxu0 0.0
        %3400 = vmatprep.subr.mxu0 0.0
        %3401 = vmatpush1.msra.mxu0 0.0
        %3402 = vmatprep.subr.mxu0 0.0
        %3403 = vmatpush1.msra.mxu0 0.0
        %3404 = vmatprep.subr.mxu0 0.0
        %3405 = vmatpush1.msra.mxu0 0.0
        %3406 = vmatprep.subr.mxu0 0.0
        %3407 = vmatpush1.msra.mxu0 0.0
        %3408 = vmatprep.subr.mxu0 0.0
        %3409 = vmatpush1.msra.mxu0 0.0
        %3410 = vmatprep.mubr.f32.mxu0 0.0
        %3411 = vmatmul.mubr.f32.gmra.mrb[0].mxu0 %v3313
        %v3412 = vpop.f32.mrb[0].mxu0
        %v3413 = vadd.f32 0.0, %v3412
        %v3414 = vpop.f32.mrb[0].mxu0
        %3415 = vmatprep.mubr.f32.mxu0 0.0
        %3416 = vmatmul.mubr.f32.gmra.mrb[0].mxu0 %v3314
        %v3417 = vpop.f32.mrb[0].mxu0
        %v3418 = vadd.f32 0.0, %v3417
        %v3419 = vpop.f32.mrb[0].mxu0
        %3420 = vmatprep.mubr.f32.mxu0 0.0
        %3421 = vmatmul.mubr.f32.gmra.mrb[0].mxu0 %v3315
        %v3422 = vpop.f32.mrb[0].mxu0
        %v3423 = vadd.f32 0.0, %v3422
        %v3424 = vpop.f32.mrb[0].mxu0
        %3425 = vmatprep.mubr.f32.mxu0 0.0
        %3426 = vmatmul.mubr.f32.gmra.mrb[0].mxu0 %v3316
        %v3427 = vpop.f32.mrb[0].mxu0
        %v3428 = vadd.f32 0.0, %v3427
        %v3429 = vpop.f32.mrb[0].mxu0
        %3430 = vmatprep.mubr.f32.mxu0 0.0
        %3431 = vmatmul.mubr.f32.gmra.mrb[0].mxu0 %v3317
        %v3432 = vpop.f32.mrb[0].mxu0
        %v3433 = vadd.f32 0.0, %v3432
        %v3434 = vpop.f32.mrb[0].mxu0
        %3435 = vmatprep.mubr.f32.mxu0 0.0
        %3436 = vmatmul.mubr.f32.gmra.mrb[0].mxu0 %v3318
        %v3437 = vpop.f32.mrb[0].mxu0
        %v3438 = vadd.f32 0.0, %v3437
        %v3439 = vpop.f32.mrb[0].mxu0
        %3440 = vmatprep.mubr.f32.mxu0 0.0
        %3441 = vmatmul.mubr.f32.gmra.mrb[0].mxu0 %v3319
        %v3442 = vpop.f32.mrb[0].mxu0
        %v3443 = vadd.f32 0.0, %v3442
        %v3444 = vpop.f32.mrb[0].mxu0
        %3445 = vmatprep.mubr.f32.mxu0 0.0
        %3446 = vmatmul.mubr.f32.gmra.mrb[0].mxu0 %v3320
        %v3447 = vpop.f32.mrb[0].mxu0
        %v3448 = vadd.f32 0.0, %v3447
        %v3449 = vpop.f32.mrb[0].mxu0
        %3450 = vmatprep.mubr.f32.mxu0 0.0
        %3451 = vmatmul.mubr.f32.gmra.mrb[0].mxu0 %v3321
        %v3452 = vpop.f32.mrb[0].mxu0
        %v3453 = vadd.f32 0.0, %v3452
        %v3454 = vpop.f32.mrb[0].mxu0
        %3455 = vmatprep.mubr.f32.mxu0 0.0
        %3456 = vmatmul.mubr.f32.gmra.mrb[0].mxu0 %v3322
        %v3457 = vpop.f32.mrb[0].mxu0
        %v3458 = vadd.f32 0.0, %v3457
        %v3459 = vpop.f32.mrb[0].mxu0
        %3460 = vmatprep.mubr.f32.mxu0 0.0
        %3461 = vmatmul.mubr.f32.gmra.mrb[0].mxu0 %v3323
        %v3462 = vpop.f32.mrb[0].mxu0
        %v3463 = vadd.f32 0.0, %v3462
        %v3464 = vpop.f32.mrb[0].mxu0
        %3465 = vmatprep.mubr.f32.mxu0 0.0
        %3466 = vmatmul.mubr.f32.gmra.mrb[0].mxu0 %v3324
        %v3467 = vpop.f32.mrb[0].mxu0
        %v3468 = vadd.f32 0.0, %v3467
        %v3469 = vpop.f32.mrb[0].mxu0
        %3470 = vmatprep.mubr.f32.mxu0 0.0
        %3471 = vmatmul.mubr.f32.gmra.mrb[0].mxu0 %v3325
        %v3472 = vpop.f32.mrb[0].mxu0
        %v3473 = vadd.f32 0.0, %v3472
        %v3474 = vpop.f32.mrb[0].mxu0
        %3475 = vmatprep.mubr.f32.mxu0 0.0
        %3476 = vmatmul.mubr.f32.gmra.mrb[0].mxu0 %v3326
        %v3477 = vpop.f32.mrb[0].mxu0
        %v3478 = vadd.f32 0.0, %v3477
        %v3479 = vpop.f32.mrb[0].mxu0
        %3480 = vmatprep.mubr.f32.mxu0 0.0
        %3481 = vmatmul.mubr.f32.gmra.mrb[0].mxu0 %v3327
        %v3482 = vpop.f32.mrb[0].mxu0
        %v3483 = vadd.f32 0.0, %v3482
        %v3484 = vpop.f32.mrb[0].mxu0
        %3485 = vmatprep.mubr.f32.mxu0 0.0
        %3486 = vmatmul.mubr.f32.gmra.mrb[0].mxu0 %v3328
        %v3487 = vpop.f32.mrb[0].mxu0
        %v3488 = vadd.f32 0.0, %v3487
        %v3489 = vpop.f32.mrb[0].mxu0
        %3490 = vdwg.mxu0
        %v3491 = vadd.f32 %v3413, %v3418
        %v3492 = vrot.slane %v3491, 4
        %v3493 = vadd.f32 %v3491, %v3492
        %v3494 = vrot.slane %v3493, 2
        %v3495 = vadd.f32 %v3493, %v3494
        %v3496 = vrot.slane %v3495, 1
        %v3497 = vadd.f32 %v3495, %v3496
        %v3498 = vadd.f32 %v3423, %v3428
        %v3499 = vrot.slane %v3498, 4
        %v3500 = vadd.f32 %v3498, %v3499
        %v3501 = vrot.slane %v3500, 2
        %v3502 = vadd.f32 %v3500, %v3501
        %v3503 = vrot.slane %v3502, 1
        %v3504 = vadd.f32 %v3502, %v3503
        %v3505 = vadd.f32 %v3433, %v3438
        %v3506 = vrot.slane %v3505, 4
        %v3507 = vadd.f32 %v3505, %v3506
        %v3508 = vrot.slane %v3507, 2
        %v3509 = vadd.f32 %v3507, %v3508
        %v3510 = vrot.slane %v3509, 1
        %v3511 = vadd.f32 %v3509, %v3510
        %v3512 = vadd.f32 %v3443, %v3448
        %v3513 = vrot.slane %v3512, 4
        %v3514 = vadd.f32 %v3512, %v3513
        %v3515 = vrot.slane %v3514, 2
        %v3516 = vadd.f32 %v3514, %v3515
        %v3517 = vrot.slane %v3516, 1
        %v3518 = vadd.f32 %v3516, %v3517
        %v3519 = vadd.f32 %v3453, %v3458
        %v3520 = vrot.slane %v3519, 4
        %v3521 = vadd.f32 %v3519, %v3520
        %v3522 = vrot.slane %v3521, 2
        %v3523 = vadd.f32 %v3521, %v3522
        %v3524 = vrot.slane %v3523, 1
        %v3525 = vadd.f32 %v3523, %v3524
        %v3526 = vadd.f32 %v3463, %v3468
        %v3527 = vrot.slane %v3526, 4
        %v3528 = vadd.f32 %v3526, %v3527
        %v3529 = vrot.slane %v3528, 2
        %v3530 = vadd.f32 %v3528, %v3529
        %v3531 = vrot.slane %v3530, 1
        %v3532 = vadd.f32 %v3530, %v3531
        %v3533 = vadd.f32 %v3473, %v3478
        %v3534 = vrot.slane %v3533, 4
        %v3535 = vadd.f32 %v3533, %v3534
        %v3536 = vrot.slane %v3535, 2
        %v3537 = vadd.f32 %v3535, %v3536
        %v3538 = vrot.slane %v3537, 1
        %v3539 = vadd.f32 %v3537, %v3538
        %v3540 = vadd.f32 %v3483, %v3488
        %v3541 = vrot.slane %v3540, 4
        %v3542 = vadd.f32 %v3540, %v3541
        %v3543 = vrot.slane %v3542, 2
        %v3544 = vadd.f32 %v3542, %v3543
        %v3545 = vrot.slane %v3544, 1
        %v3546 = vadd.f32 %v3544, %v3545
        %v3547 = vmul.f32 %v3497, 0.0625
        %v3548 = vmul.f32 %v3504, 0.0625
        %v3549 = vmul.f32 %v3511, 0.0625
        %v3550 = vmul.f32 %v3518, 0.0625
        %v3551 = vmul.f32 %v3525, 0.0625
        %v3552 = vmul.f32 %v3532, 0.0625
        %v3553 = vmul.f32 %v3539, 0.0625
        %v3554 = vmul.f32 %v3546, 0.0625
        %v3555 = vsub.f32 %v3413, %v3547
        %v3556 = vsub.f32 %v3418, %v3547
        %v3557 = vsub.f32 %v3423, %v3548
        %v3558 = vsub.f32 %v3428, %v3548
        %v3559 = vsub.f32 %v3433, %v3549
        %v3560 = vsub.f32 %v3438, %v3549
        %v3561 = vsub.f32 %v3443, %v3550
        %v3562 = vsub.f32 %v3448, %v3550
        %v3563 = vsub.f32 %v3453, %v3551
        %v3564 = vsub.f32 %v3458, %v3551
        %v3565 = vsub.f32 %v3463, %v3552
        %v3566 = vsub.f32 %v3468, %v3552
        %v3567 = vsub.f32 %v3473, %v3553
        %v3568 = vsub.f32 %v3478, %v3553
        %v3569 = vsub.f32 %v3483, %v3554
        %v3570 = vsub.f32 %v3488, %v3554
        %v3571 = vmul.f32 %v3555, %v3555
        %v3572 = vmul.f32 %v3556, %v3556
        %v3573 = vmul.f32 %v3557, %v3557
        %v3574 = vmul.f32 %v3558, %v3558
        %v3575 = vmul.f32 %v3559, %v3559
        %v3576 = vmul.f32 %v3560, %v3560
        %v3577 = vmul.f32 %v3561, %v3561
        %v3578 = vmul.f32 %v3562, %v3562
        %v3579 = vmul.f32 %v3563, %v3563
        %v3580 = vmul.f32 %v3564, %v3564
        %v3581 = vmul.f32 %v3565, %v3565
        %v3582 = vmul.f32 %v3566, %v3566
        %v3583 = vmul.f32 %v3567, %v3567
        %v3584 = vmul.f32 %v3568, %v3568
        %v3585 = vmul.f32 %v3569, %v3569
        %v3586 = vmul.f32 %v3570, %v3570
        %v3587 = vadd.f32 %v3571, %v3572
        %v3588 = vrot.slane %v3587, 4
        %v3589 = vadd.f32 %v3587, %v3588
        %v3590 = vrot.slane %v3589, 2
        %v3591 = vadd.f32 %v3589, %v3590
        %v3592 = vrot.slane %v3591, 1
        %v3593 = vadd.f32 %v3591, %v3592
        %v3594 = vadd.f32 %v3573, %v3574
        %v3595 = vrot.slane %v3594, 4
        %v3596 = vadd.f32 %v3594, %v3595
        %v3597 = vrot.slane %v3596, 2
        %v3598 = vadd.f32 %v3596, %v3597
        %v3599 = vrot.slane %v3598, 1
        %v3600 = vadd.f32 %v3598, %v3599
        %v3601 = vadd.f32 %v3575, %v3576
        %v3602 = vrot.slane %v3601, 4
        %v3603 = vadd.f32 %v3601, %v3602
        %v3604 = vrot.slane %v3603, 2
        %v3605 = vadd.f32 %v3603, %v3604
        %v3606 = vrot.slane %v3605, 1
        %v3607 = vadd.f32 %v3605, %v3606
        %v3608 = vadd.f32 %v3577, %v3578
        %v3609 = vrot.slane %v3608, 4
        %v3610 = vadd.f32 %v3608, %v3609
        %v3611 = vrot.slane %v3610, 2
        %v3612 = vadd.f32 %v3610, %v3611
        %v3613 = vrot.slane %v3612, 1
        %v3614 = vadd.f32 %v3612, %v3613
        %v3615 = vadd.f32 %v3579, %v3580
        %v3616 = vrot.slane %v3615, 4
        %v3617 = vadd.f32 %v3615, %v3616
        %v3618 = vrot.slane %v3617, 2
        %v3619 = vadd.f32 %v3617, %v3618
        %v3620 = vrot.slane %v3619, 1
        %v3621 = vadd.f32 %v3619, %v3620
        %v3622 = vadd.f32 %v3581, %v3582
        %v3623 = vrot.slane %v3622, 4
        %v3624 = vadd.f32 %v3622, %v3623
        %v3625 = vrot.slane %v3624, 2
        %v3626 = vadd.f32 %v3624, %v3625
        %v3627 = vrot.slane %v3626, 1
        %v3628 = vadd.f32 %v3626, %v3627
        %v3629 = vadd.f32 %v3583, %v3584
        %v3630 = vrot.slane %v3629, 4
        %v3631 = vadd.f32 %v3629, %v3630
        %v3632 = vrot.slane %v3631, 2
        %v3633 = vadd.f32 %v3631, %v3632
        %v3634 = vrot.slane %v3633, 1
        %v3635 = vadd.f32 %v3633, %v3634
        %v3636 = vadd.f32 %v3585, %v3586
        %v3637 = vrot.slane %v3636, 4
        %v3638 = vadd.f32 %v3636, %v3637
        %v3639 = vrot.slane %v3638, 2
        %v3640 = vadd.f32 %v3638, %v3639
        %v3641 = vrot.slane %v3640, 1
        %v3642 = vadd.f32 %v3640, %v3641
        %v3643 = vmul.f32 %v3593, 0.0625
        %v3644 = vmul.f32 %v3600, 0.0625
        %v3645 = vmul.f32 %v3607, 0.0625
        %v3646 = vmul.f32 %v3614, 0.0625
        %v3647 = vmul.f32 %v3621, 0.0625
        %v3648 = vmul.f32 %v3628, 0.0625
        %v3649 = vmul.f32 %v3635, 0.0625
        %v3650 = vmul.f32 %v3642, 0.0625
        %v3651 = vadd.f32 %v3643, 1e-05
        %v3652 = vadd.f32 %v3644, 1e-05
        %v3653 = vadd.f32 %v3645, 1e-05
        %v3654 = vadd.f32 %v3646, 1e-05
        %v3655 = vadd.f32 %v3647, 1e-05
        %v3656 = vadd.f32 %v3648, 1e-05
        %v3657 = vadd.f32 %v3649, 1e-05
        %v3658 = vadd.f32 %v3650, 1e-05
        %v3659 = vrsqrt.pop %v3651
        %v3660 = vrsqrt.pop %v3652
        %v3661 = vrsqrt.pop %v3653
        %v3662 = vrsqrt.pop %v3654
        %v3663 = vrsqrt.pop %v3655
        %v3664 = vrsqrt.pop %v3656
        %v3665 = vrsqrt.pop %v3657
        %v3666 = vrsqrt.pop %v3658
        %v3667 = vmul.f32 %v457, %v3659
        %v3668 = vmul.f32 %v457, %v3660
        %v3669 = vmul.f32 %v457, %v3661
        %v3670 = vmul.f32 %v457, %v3662
        %v3671 = vmul.f32 %v457, %v3663
        %v3672 = vmul.f32 %v457, %v3664
        %v3673 = vmul.f32 %v457, %v3665
        %v3674 = vmul.f32 %v457, %v3666
        %v3675 = vlaneseq
        %v3676 = vshrl.u32 %v3675, 7
        %v3677 = vsub.s32 2, %v3676
        %v3678 = vrot.slane %v3667, %v3677
        %v3679 = vlaneseq
        %v3680 = vshrl.u32 %v3679, 7
        %v3681 = vsub.s32 2, %v3680
        %v3682 = vrot.slane %v3668, %v3681
        %v3683 = vlaneseq
        %v3684 = vshrl.u32 %v3683, 7
        %v3685 = vsub.s32 2, %v3684
        %v3686 = vrot.slane %v3669, %v3685
        %v3687 = vlaneseq
        %v3688 = vshrl.u32 %v3687, 7
        %v3689 = vsub.s32 2, %v3688
        %v3690 = vrot.slane %v3670, %v3689
        %v3691 = vlaneseq
        %v3692 = vshrl.u32 %v3691, 7
        %v3693 = vsub.s32 2, %v3692
        %v3694 = vrot.slane %v3671, %v3693
        %v3695 = vlaneseq
        %v3696 = vshrl.u32 %v3695, 7
        %v3697 = vsub.s32 2, %v3696
        %v3698 = vrot.slane %v3672, %v3697
        %v3699 = vlaneseq
        %v3700 = vshrl.u32 %v3699, 7
        %v3701 = vsub.s32 2, %v3700
        %v3702 = vrot.slane %v3673, %v3701
        %v3703 = vlaneseq
        %v3704 = vshrl.u32 %v3703, 7
        %v3705 = vsub.s32 2, %v3704
        %v3706 = vrot.slane %v3674, %v3705
        %v3707 = vmul.f32 %v3555, %v3678
        %v3708 = vmul.f32 %v3556, %v3678
        %v3709 = vmul.f32 %v3557, %v3682
        %v3710 = vmul.f32 %v3558, %v3682
        %v3711 = vmul.f32 %v3559, %v3686
        %v3712 = vmul.f32 %v3560, %v3686
        %v3713 = vmul.f32 %v3561, %v3690
        %v3714 = vmul.f32 %v3562, %v3690
        %v3715 = vmul.f32 %v3563, %v3694
        %v3716 = vmul.f32 %v3564, %v3694
        %v3717 = vmul.f32 %v3565, %v3698
        %v3718 = vmul.f32 %v3566, %v3698
        %v3719 = vmul.f32 %v3567, %v3702
        %v3720 = vmul.f32 %v3568, %v3702
        %v3721 = vmul.f32 %v3569, %v3706
        %v3722 = vmul.f32 %v3570, %v3706
        %v3723 = vlaneseq
        %v3724 = vshrl.u32 %v3723, 7
        %v3725 = vsub.s32 3, %v3724
        %v3726 = vrot.slane %v457, %v3725
        %v3727 = vadd.f32 %v3707, %v3726
        %v3728 = vadd.f32 %v3708, %v3726
        %v3729 = vadd.f32 %v3709, %v3726
        %v3730 = vadd.f32 %v3710, %v3726
        %v3731 = vadd.f32 %v3711, %v3726
        %v3732 = vadd.f32 %v3712, %v3726
        %v3733 = vadd.f32 %v3713, %v3726
        %v3734 = vadd.f32 %v3714, %v3726
        %v3735 = vadd.f32 %v3715, %v3726
        %v3736 = vadd.f32 %v3716, %v3726
        %v3737 = vadd.f32 %v3717, %v3726
        %v3738 = vadd.f32 %v3718, %v3726
        %v3739 = vadd.f32 %v3719, %v3726
        %v3740 = vadd.f32 %v3720, %v3726
        %v3741 = vadd.f32 %v3721, %v3726
        %v3742 = vadd.f32 %v3722, %v3726
        %v3743 = vmax.f32 %v3727, 0.0
        %v3744 = vmax.f32 %v3728, 0.0
        %v3745 = vmax.f32 %v3729, 0.0
        %v3746 = vmax.f32 %v3730, 0.0
        %v3747 = vmax.f32 %v3731, 0.0
        %v3748 = vmax.f32 %v3732, 0.0
        %v3749 = vmax.f32 %v3733, 0.0
        %v3750 = vmax.f32 %v3734, 0.0
        %v3751 = vmax.f32 %v3735, 0.0
        %v3752 = vmax.f32 %v3736, 0.0
        %v3753 = vmax.f32 %v3737, 0.0
        %v3754 = vmax.f32 %v3738, 0.0
        %v3755 = vmax.f32 %v3739, 0.0
        %v3756 = vmax.f32 %v3740, 0.0
        %v3757 = vmax.f32 %v3741, 0.0
        %v3758 = vmax.f32 %v3742, 0.0
        %3759 = vst [vmem:[%s411 + $0x10] sm:$0xff] %v3743
        %3760 = vst [vmem:[%s411 + $0x28] sm:$0xff] %v3744
        %3761 = vst [vmem:[%s411 + $0x40] sm:$0xff] %v3745
        %3762 = vst [vmem:[%s411 + $0x58] sm:$0xff] %v3746
        %3763 = vst [vmem:[%s411 + $0x70] sm:$0xff] %v3747
        %3764 = vst [vmem:[%s411 + $0x88] sm:$0xff] %v3748
        %3765 = vst [vmem:[%s411 + $0xa0] sm:$0xff] %v3749
        %3766 = vst [vmem:[%s411 + $0xb8] sm:$0xff] %v3750
        %3767 = vst [vmem:[%s411 + $0xd0] sm:$0xff] %v3751
        %3768 = vst [vmem:[%s411 + $0xe8] sm:$0xff] %v3752
        %3769 = vst [vmem:[%s411 + $0x100] sm:$0xff] %v3753
        %3770 = vst [vmem:[%s411 + $0x118] sm:$0xff] %v3754
        %3771 = vst [vmem:[%s411 + $0x130] sm:$0xff] %v3755
        %3772 = vst [vmem:[%s411 + $0x148] sm:$0xff] %v3756
        %3773 = vst [vmem:[%s411 + $0x160] sm:$0xff] %v3757
        %3774 = vst [vmem:[%s411 + $0x178] sm:$0xff] %v3758
        %3775 = vmatprep.subr.mxu0 0.0
        %3776 = vmatpush1.msra.mxu0 %v3743
        %3777 = vmatprep.subr.mxu0 0.0
        %3778 = vmatpush1.msra.mxu0 %v3744
        %3779 = vmatprep.subr.mxu0 0.0
        %3780 = vmatpush1.msra.mxu0 %v3745
        %3781 = vmatprep.subr.mxu0 0.0
        %3782 = vmatpush1.msra.mxu0 %v3746
        %3783 = vmatprep.subr.mxu0 0.0
        %3784 = vmatpush1.msra.mxu0 %v3747
        %3785 = vmatprep.subr.mxu0 0.0
        %3786 = vmatpush1.msra.mxu0 %v3748
        %3787 = vmatprep.subr.mxu0 0.0
        %3788 = vmatpush1.msra.mxu0 %v3749
        %3789 = vmatprep.subr.mxu0 0.0
        %3790 = vmatpush1.msra.mxu0 %v3750
        %3791 = vmatprep.subr.mxu0 0.0
        %3792 = vmatpush1.msra.mxu0 %v3751
        %3793 = vmatprep.subr.mxu0 0.0
        %3794 = vmatpush1.msra.mxu0 %v3752
        %3795 = vmatprep.subr.mxu0 0.0
        %3796 = vmatpush1.msra.mxu0 %v3753
        %3797 = vmatprep.subr.mxu0 0.0
        %3798 = vmatpush1.msra.mxu0 %v3754
        %3799 = vmatprep.subr.mxu0 0.0
        %3800 = vmatpush1.msra.mxu0 %v3755
        %3801 = vmatprep.subr.mxu0 0.0
        %3802 = vmatpush1.msra.mxu0 %v3756
        %3803 = vmatprep.subr.mxu0 0.0
        %3804 = vmatpush1.msra.mxu0 %v3757
        %3805 = vmatprep.subr.mxu0 0.0
        %3806 = vmatpush1.msra.mxu0 %v3758
        %3807 = vmatprep.subr.mxu0 0.0
        %3808 = vmatpush1.msra.mxu0 0.0
        %3809 = vmatprep.subr.mxu0 0.0
        %3810 = vmatpush1.msra.mxu0 0.0
        %3811 = vmatprep.subr.mxu0 0.0
        %3812 = vmatpush1.msra.mxu0 0.0
        %3813 = vmatprep.subr.mxu0 0.0
        %3814 = vmatpush1.msra.mxu0 0.0
        %3815 = vmatprep.subr.mxu0 0.0
        %3816 = vmatpush1.msra.mxu0 0.0
        %3817 = vmatprep.subr.mxu0 0.0
        %3818 = vmatpush1.msra.mxu0 0.0
        %3819 = vmatprep.subr.mxu0 0.0
        %3820 = vmatpush1.msra.mxu0 0.0
        %3821 = vmatprep.subr.mxu0 0.0
        %3822 = vmatpush1.msra.mxu0 0.0
        %3823 = vmatprep.subr.mxu0 0.0
        %3824 = vmatpush1.msra.mxu0 0.0
        %3825 = vmatprep.subr.mxu0 0.0
        %3826 = vmatpush1.msra.mxu0 0.0
        %3827 = vmatprep.subr.mxu0 0.0
        %3828 = vmatpush1.msra.mxu0 0.0
        %3829 = vmatprep.subr.mxu0 0.0
        %3830 = vmatpush1.msra.mxu0 0.0
        %3831 = vmatprep.subr.mxu0 0.0
        %3832 = vmatpush1.msra.mxu0 0.0
        %3833 = vmatprep.subr.mxu0 0.0
        %3834 = vmatpush1.msra.mxu0 0.0
        %3835 = vmatprep.subr.mxu0 0.0
        %3836 = vmatpush1.msra.mxu0 0.0
        %3837 = vmatprep.subr.mxu0 0.0
        %3838 = vmatpush1.msra.mxu0 0.0
        %3839 = vmatprep.mubr.f32.mxu0 0.0
        %3840 = vmatmul.mubr.f32.gmra.mrb[0].mxu0 %v454
        %v3841 = vpop.f32.mrb[0].mxu0
        %v3842 = vadd.f32 0.0, %v3841
        %v3843 = vpop.f32.mrb[0].mxu0
        %3844 = vmatprep.mubr.f32.mxu0 0.0
        %3845 = vmatmul.mubr.f32.gmra.mrb[0].mxu0 %v455
        %v3846 = vpop.f32.mrb[0].mxu0
        %v3847 = vadd.f32 0.0, %v3846
        %v3848 = vpop.f32.mrb[0].mxu0
        %3849 = vdwg.mxu0
        %3850 = vst [vmem:[%s418 + $0x10] sm:$0xff] %v3842
        %3851 = vst [vmem:[%s418 + $0x28] sm:$0xff] %v3847
        %s3852 = sand.u32 %s186, 1
        %s3853 = scalar_lea.sflag [#allocation6], %s3852
        %s3854 = sand.u32 %s186, 1
        %s3855 = smul.addr %s3854, 384
        %s3856 = scalar_lea.vmem [#allocation13], %s3855
        %s3857 = sand.u32 %s212, 1
        %s3858 = scalar_lea.sflag [#allocation15], %s3857
        %s3859 = sand.u32 %s212, 1
        %s3860 = smul.addr %s3859, 48
        %s3861 = scalar_lea.vmem [#allocation14], %s3860
        // Predicated region
        $region65: #{tpu_custom_call.1} parent=43 // pred_check
          %p3862 = pneg %p196
        $region66: #{tpu_custom_call.1} parent=43 // pred_check_branch
          %3864 = sbr.rel (%p3862) target = $region68
        $region67: #{tpu_custom_call.1} parent=43 // pred_region
          %s3865 = smul.u32 16, %s37
          %s3867 = ssub.s32 6144, 6144
          %3868 = vsyncadd %s3853, %s3867
          %s3869 = smul.addr %s3865, 3
          %s3870 = smul.addr %s3869, 128
          %s3871 = scalar_lea.hbm %s7, %s3870
          %s3872 = sshll.u32 %s3856, 4
          %s3873 = int_to_ptr.vmem [resolvable:$true] %s3872
          %3878 = dma.vmem_to_hbm [thread:$0]  %s3873, 6144, %s3871, %s3853, 384, 384, 24
        $region68: #{tpu_custom_call.1} parent=43 // pred_fallthru
          _
        // Predicated region
        $region69: #{tpu_custom_call.1} parent=43 // pred_check
          %p3879 = pneg %p222
        $region70: #{tpu_custom_call.1} parent=43 // pred_check_branch
          %3881 = sbr.rel (%p3879) target = $region72
        $region71: #{tpu_custom_call.1} parent=43 // pred_region
          %s3882 = smul.u32 2, %s37
          %s3884 = ssub.s32 768, 768
          %3885 = vsyncadd %s3858, %s3884
          %s3886 = smul.addr %s3882, 3
          %s3887 = smul.addr %s3886, 128
          %s3888 = scalar_lea.hbm %s8, %s3887
          %s3889 = sshll.u32 %s3861, 4
          %s3890 = int_to_ptr.vmem [resolvable:$true] %s3889
          %3895 = dma.vmem_to_hbm [thread:$0]  %s3890, 768, %s3888, %s3858, 384, 384, 24
        $region72: #{tpu_custom_call.1} parent=43 // pred_fallthru
          _
      $region44: #{tpu_custom_call.1} parent=5 // pred_fallthru
        _
      %p3896 = scmp.le.s32.totalorder 2, %s32
      // Predicated region
      $region73: #{tpu_custom_call.1} parent=5 // pred_check
        %p3897 = pneg %p3896
      $region74: #{tpu_custom_call.1} parent=5 // pred_check_branch
        %3899 = sbr.rel (%p3897) target = $region76
      $region75: #{tpu_custom_call.1} parent=5 // pred_region
        %s3900 = ssub.s32 %s32, 2
        // Predicated region
        $region77: #{tpu_custom_call.1} parent=75 // pred_check
          %p3901 = pneg %p202
        $region78: #{tpu_custom_call.1} parent=75 // pred_check_branch
          %3903 = sbr.rel (%p3901) target = $region80
        $region79: #{tpu_custom_call.1} parent=75 // pred_region
          %s3904 = sand.u32 %s187, 1
          %s3905 = scalar_lea.sflag [#allocation6], %s3904
          %s3906 = sand.u32 %s187, 1
          %s3907 = smul.addr %s3906, 384
          %s3908 = scalar_lea.vmem [#allocation13], %s3907
          %3909 = dma.done %s3905, 6144
        $region80: #{tpu_custom_call.1} parent=75 // pred_fallthru
          _
        // Predicated region
        $region81: #{tpu_custom_call.1} parent=75 // pred_check
          %p3910 = pneg %p228
        $region82: #{tpu_custom_call.1} parent=75 // pred_check_branch
          %3912 = sbr.rel (%p3910) target = $region84
        $region83: #{tpu_custom_call.1} parent=75 // pred_region
          %s3913 = sand.u32 %s213, 1
          %s3914 = scalar_lea.sflag [#allocation15], %s3913
          %s3915 = sand.u32 %s213, 1
          %s3916 = smul.addr %s3915, 48
          %s3917 = scalar_lea.vmem [#allocation14], %s3916
          %3918 = dma.done %s3914, 768
        $region84: #{tpu_custom_call.1} parent=75 // pred_fallthru
          _
      $region76: #{tpu_custom_call.1} parent=5 // pred_fallthru
        _
    $region6: #{tpu_custom_call.1} parent=1 // loop_footer
      %s36 = sadd.s32 1, %s32
    $region7: #{tpu_custom_call.1} parent=1 // loop_footer_branch
      %31 = sbr.rel target = $region3
    $region8: #{tpu_custom_call.1} parent=1 // loop_exit
      _
    %3919 = vsyncpa [#allocation5], 1
    %s3920 = scalar_lea.sflag [#allocation5], 1
    %3921 = vsyncpa %s3920, 1
    %3922 = vsyncpa [#allocation8], 1
    %s3923 = scalar_lea.sflag [#allocation8], 1
    %3924 = vsyncpa %s3923, 1
    %3925 = vsyncpa [#allocation11], 1
    %3926 = vsyncpa [#allocation6], 1
    %s3927 = scalar_lea.sflag [#allocation6], 1
    %3928 = vsyncpa %s3927, 1
    %3929 = vsyncpa [#allocation15], 1
    %s3930 = scalar_lea.sflag [#allocation15], 1
    %3931 = vsyncpa %s3930, 1

</llo_original>
